<compile_context>
chip_gen: v7x
topology: tpu7x:2x2x1
jax: 0.10.0
libtpu: 0.0.40
codegen_flags: <defaults>
</compile_context>

<pallas_src>
import jax
import jax.numpy as jnp
from jax import lax
from jax.experimental import pallas as pl
from jax.experimental.pallas import tpu as pltpu


def _sigmoid(z):
    # Same formula used in the in-kernel and reference paths so they match closely.
    return 1.0 / (1.0 + jnp.exp(-z))


def _recurrent_ac_kernel(
    x_ref,                    # (T, TB, OBS)   time-major obs tile
    h0_ref, c0_ref,           # (TB, F)        initial LSTM state tile
    w_fe_ref, b_fe_ref,       # (OBS, F), (1, F)
    w_ih_ref, w_hh_ref,       # (F, 4F), (F, 4F)    gate order: i, f, g, o
    b_g_ref,                  # (1, 4F)             b_ih + b_hh
    w1_ref, b1_ref,           # (F, 2H), (1, 2H)    fused pi/vf first layer
    w2_ref, b2_ref,           # (2H, OUTW), (1, OUTW)  fused block-diagonal pi/vf second layer
    out_ref,                  # (T, TB, OUTW)  lane-dense fused output (pi lanes 0..A-1, vf lane A)
    h_out_ref, c_out_ref,     # (TB, F)        final LSTM state
    xg_scr,                   # VMEM (T, TB, 4F) f32  precomputed input-gate pre-activations
    h_all_scr,                # VMEM (T, TB, F)  f32  per-step LSTM hidden states
    h_scr, c_scr,             # VMEM (TB, F)     f32  recurrent carry
):
    T = x_ref.shape[0]
    TB = x_ref.shape[1]
    F = h0_ref.shape[1]

    # Hoist weights and pre-broadcast biases once per kernel invocation (keep out of loops).
    w_fe = w_fe_ref[...]
    w_ih = w_ih_ref[...]
    w_hh = w_hh_ref[...]
    w1 = w1_ref[...]
    w2 = w2_ref[...]
    b_fe = jnp.broadcast_to(b_fe_ref[...], (TB, b_fe_ref.shape[1]))
    b_g = jnp.broadcast_to(b_g_ref[...], (TB, b_g_ref.shape[1]))
    b1 = jnp.broadcast_to(b1_ref[...], (TB, b1_ref.shape[1]))
    b2 = jnp.broadcast_to(b2_ref[...], (TB, b2_ref.shape[1]))

    # ---- Phase 1: feature extractor + input-gate contribution for every time step ----
    # (off the recurrence critical path; weight regs loaded once, streamed over all steps)
    def pre(t, carry):
        x_t = x_ref[t]                                                      # (TB, OBS)
        feat = jnp.dot(x_t, w_fe, preferred_element_type=jnp.float32) + b_fe
        feat = jnp.maximum(feat, 0.0)                                       # (TB, F)
        xg_scr[t] = jnp.dot(feat, w_ih, preferred_element_type=jnp.float32) + b_g
        return carry

    lax.fori_loop(0, T, pre, 0, unroll=True)

    # ---- Phase 2: tight LSTM recurrence (PyTorch gate order i, f, g, o) ----
    h_scr[...] = h0_ref[...]
    c_scr[...] = c0_ref[...]

    def step(t, carry):
        h_prev = h_scr[...]
        c_prev = c_scr[...]
        gates = xg_scr[t] + jnp.dot(h_prev, w_hh, preferred_element_type=jnp.float32)
        i_g = _sigmoid(gates[:, 0 * F:1 * F])
        f_g = _sigmoid(gates[:, 1 * F:2 * F])
        g_g = jnp.tanh(gates[:, 2 * F:3 * F])
        o_g = _sigmoid(gates[:, 3 * F:4 * F])
        c_t = f_g * c_prev + i_g * g_g
        h_t = o_g * jnp.tanh(c_t)
        h_scr[...] = h_t
        c_scr[...] = c_t
        h_all_scr[t] = h_t
        return carry

    lax.fori_loop(0, T, step, 0, unroll=True)

    h_out_ref[...] = h_scr[...]
    c_out_ref[...] = c_scr[...]

    # ---- Phase 3: fused pi/vf heads -> single lane-dense 128-wide output slab ----
    def head(t, carry):
        h_t = h_all_scr[t]                                                  # (TB, F)
        hid = jnp.dot(h_t, w1, preferred_element_type=jnp.float32) + b1
        hid = jnp.maximum(hid, 0.0)                                         # (TB, 2H)
        out_t = jnp.dot(hid, w2, preferred_element_type=jnp.float32) + b2   # (TB, OUTW)
        out_ref[t] = jnp.maximum(out_t, 0.0)
        return carry

    lax.fori_loop(0, T, head, 0, unroll=True)


def _round_up(x, m):
    return ((x + m - 1) // m) * m


def _choose_batch_tile(B, T, OBS, F, OUTW, batch_tile, budget_bytes=24 << 20):
    """Biggest sublane-aligned batch tile whose resident VMEM footprint stays under budget."""
    TB = min(batch_tile, _round_up(B, 8))
    TB = _round_up(TB, 8)

    def footprint(tb):
        per_row = T * (2 * OBS + 2 * OUTW + 4 * F + F) * 4   # x/out double-buffered, xg, h_all
        state = 6 * F * 4                                    # h0/c0 (2-buf) + h/c carry
        return tb * (per_row + state)

    while TB > 8 and footprint(TB) > budget_bytes:
        TB = max(8, _round_up(TB // 2, 8))
    return TB


def recurrent_actor_critic_forward(obs, h0, c0, params, *, batch_tile=256):
    """Fused forward of RecurrentActorCriticModel.

    obs: (B, T, obs_dim) f32 -- B sequences of T flattened observations (the add_time_dimension
         view of the module's (n=B*T, obs_dim) input, batch-major).
    h0, c0: (B, F) f32 -- per-sequence initial LSTM state (num_layers=1, layer axis squeezed).
    params: module weights; Linear/LSTM weights stored pre-transposed as (in, out).

    Returns:
      logits: (B*T, num_outputs)   -- module forward() logits, row order b*T + t
      value:  (B*T,)               -- value_function()
      h_T, c_T: (B, 1, F)          -- next LSTM state (layer axis restored, batch-major)
    """
    B, T, OBS = obs.shape
    F = params["w_fe"].shape[1]
    H = params["w_p0"].shape[1]
    A = params["w_p1"].shape[1]
    H2 = 2 * H
    OUTW = _round_up(A + 1, 128)     # lane-dense fused output width (pi lanes 0..A-1, vf lane A)
    f32 = jnp.float32

    # ---- Fused weight prep (layout plumbing outside the kernel) ----
    b_g = params["b_ih"] + params["b_hh"]                               # (1, 4F)
    w1 = jnp.concatenate([params["w_p0"], params["w_v0"]], axis=1)      # (F, 2H)
    b1 = jnp.concatenate([params["b_p0"], params["b_v0"]], axis=1)      # (1, 2H)
    w2 = jnp.zeros((H2, OUTW), f32)
    w2 = w2.at[:H, :A].set(params["w_p1"])                              # pi 2nd layer -> lanes 0..A-1
    w2 = w2.at[H:, A:A + 1].set(params["w_v1"])                         # vf 2nd layer -> lane A
    b2 = jnp.zeros((1, OUTW), f32)
    b2 = b2.at[:, :A].set(params["b_p1"])
    b2 = b2.at[:, A:A + 1].set(params["b_v1"])

    # ---- Batch padding / tiling (sublane aligned, big tiles when B is large) ----
    TB = _choose_batch_tile(B, T, OBS, F, OUTW, batch_tile)
    B_pad = _round_up(B, TB)

    x_tm = jnp.transpose(obs, (1, 0, 2))                                # (T, B, OBS) time-major
    x_tm = jnp.pad(x_tm, ((0, 0), (0, B_pad - B), (0, 0)))
    h0_p = jnp.pad(h0, ((0, B_pad - B), (0, 0)))
    c0_p = jnp.pad(c0, ((0, B_pad - B), (0, 0)))

    const2d = lambda shape: pl.BlockSpec(shape, lambda i: (0, 0))       # VMEM-resident weights

    rows = B_pad * T
    weight_elems = OBS * F + 2 * F * 4 * F + F * H2 + H2 * OUTW
    cost = pl.CostEstimate(
        flops=2 * rows * weight_elems,
        transcendentals=rows * 6 * F,
        bytes_accessed=4 * (int(x_tm.size) + rows * OUTW + 4 * B_pad * F + weight_elems),
    )

    out, h_T, c_T = pl.pallas_call(
        _recurrent_ac_kernel,
        out_shape=(
            jax.ShapeDtypeStruct((T, B_pad, OUTW), f32),
            jax.ShapeDtypeStruct((B_pad, F), f32),
            jax.ShapeDtypeStruct((B_pad, F), f32),
        ),
        grid_spec=pltpu.PrefetchScalarGridSpec(
            num_scalar_prefetch=0,
            grid=(B_pad // TB,),
            in_specs=[
                pl.BlockSpec((T, TB, OBS), lambda i: (0, i, 0)),        # obs tile
                pl.BlockSpec((TB, F), lambda i: (i, 0)),                # h0 tile
                pl.BlockSpec((TB, F), lambda i: (i, 0)),                # c0 tile
                const2d((OBS, F)), const2d((1, F)),                     # feature extractor
                const2d((F, 4 * F)), const2d((F, 4 * F)), const2d((1, 4 * F)),   # LSTM
                const2d((F, H2)), const2d((1, H2)),                     # fused head layer 1
                const2d((H2, OUTW)), const2d((1, OUTW)),                # fused head layer 2
            ],
            out_specs=(
                pl.BlockSpec((T, TB, OUTW), lambda i: (0, i, 0)),
                pl.BlockSpec((TB, F), lambda i: (i, 0)),
                pl.BlockSpec((TB, F), lambda i: (i, 0)),
            ),
            scratch_shapes=[
                pltpu.VMEM((T, TB, 4 * F), f32),   # precomputed input-gate pre-activations
                pltpu.VMEM((T, TB, F), f32),       # per-step hidden states
                pltpu.VMEM((TB, F), f32),          # h carry
                pltpu.VMEM((TB, F), f32),          # c carry
            ],
        ),
        compiler_params=pltpu.CompilerParams(
            dimension_semantics=("parallel",),   # batch tiles are independent -> dual-TC sharding
        ),
        cost_estimate=cost,
    )(
        x_tm, h0_p, c0_p,
        params["w_fe"], params["b_fe"],
        params["w_ih"], params["w_hh"], b_g,
        w1, b1, w2, b2,
    )

    # Un-fuse / un-pad in the wrapper (row order b*T + t matches the module's reshape(n, -1)).
    out = jnp.transpose(out[:, :B, :], (1, 0, 2)).reshape(B * T, OUTW)
    logits = out[:, :A]
    value = out[:, A]
    h_T = h_T[:B][:, None, :]
    c_T = c_T[:B][:, None, :]
    return logits, value, h_T, c_T


def _init_linear(key, fan_in, fan_out):
    """PyTorch-Linear-like uniform(-1/sqrt(fan_in), 1/sqrt(fan_in)); weight stored as (in, out)."""
    kw, kb = jax.random.split(key)
    bound = 1.0 / jnp.sqrt(jnp.float32(fan_in))
    w = jax.random.uniform(kw, (fan_in, fan_out), jnp.float32, -bound, bound)
    b = jax.random.uniform(kb, (1, fan_out), jnp.float32, -bound, bound)
    return w, b


def _init_lstm(key, input_size, hidden_size):
    """PyTorch-LSTM-like uniform(-1/sqrt(H), 1/sqrt(H)); weights stored as (in, 4H), gates i,f,g,o."""
    k1, k2, k3, k4 = jax.random.split(key, 4)
    bound = 1.0 / jnp.sqrt(jnp.float32(hidden_size))
    w_ih = jax.random.uniform(k1, (input_size, 4 * hidden_size), jnp.float32, -bound, bound)
    w_hh = jax.random.uniform(k2, (hidden_size, 4 * hidden_size), jnp.float32, -bound, bound)
    b_ih = jax.random.uniform(k3, (1, 4 * hidden_size), jnp.float32, -bound, bound)
    b_hh = jax.random.uniform(k4, (1, 4 * hidden_size), jnp.float32, -bound, bound)
    return w_ih, w_hh, b_ih, b_hh


def _reference_forward(obs, h0, c0, p):
    """Pure-JAX (unfused) reference of the same math, for correctness checking."""
    relu = lambda z: jnp.maximum(z, 0.0)
    B, T, OBS = obs.shape
    F = p["w_fe"].shape[1]
    feat = relu(obs.reshape(B * T, OBS) @ p["w_fe"] + p["b_fe"]).reshape(B, T, F)

    def cell(carry, x_t):
        h, c = carry
        gates = x_t @ p["w_ih"] + h @ p["w_hh"] + p["b_ih"] + p["b_hh"]
        i = _sigmoid(gates[:, 0 * F:1 * F])
        f = _sigmoid(gates[:, 1 * F:2 * F])
        g = jnp.tanh(gates[:, 2 * F:3 * F])
        o = _sigmoid(gates[:, 3 * F:4 * F])
        c = f * c + i * g
        h = o * jnp.tanh(c)
        return (h, c), h

    (h_T, c_T), hs = jax.lax.scan(cell, (h0, c0), jnp.transpose(feat, (1, 0, 2)))
    lstm_out = jnp.transpose(hs, (1, 0, 2)).reshape(B * T, F)
    pi = relu(relu(lstm_out @ p["w_p0"] + p["b_p0"]) @ p["w_p1"] + p["b_p1"])
    vf = relu(relu(lstm_out @ p["w_v0"] + p["b_v0"]) @ p["w_v1"] + p["b_v1"])[:, 0]
    return pi, vf, h_T[:, None, :], c_T[:, None, :]


if __name__ == "__main__":
    # Small, forward-consistent shapes.
    B = 2            # sequences
    T = 8            # time steps per sequence (n = B*T flat rows)
    OBS = 32         # flattened observation dim
    FEAT = 32        # feature_extractor.feature_size == LSTM hidden size
    HIDDEN = 128     # pi_hidden_layers = vf_hidden_layers = [128]
    NUM_OUTPUTS = 4  # action logits

    root = jax.random.PRNGKey(0)
    kx, kh, kc, kfe, klstm, kp0, kp1, kv0, kv1 = jax.random.split(root, 9)

    obs = jax.random.normal(kx, (B, T, OBS), jnp.float32)
    # The module's learnable h_0/c_0 are zero-initialized; use a small random state here so the
    # recurrent state path is actually exercised by the check.
    h0 = 0.1 * jax.random.normal(kh, (B, FEAT), jnp.float32)
    c0 = 0.1 * jax.random.normal(kc, (B, FEAT), jnp.float32)

    params = {}
    params["w_fe"], params["b_fe"] = _init_linear(kfe, OBS, FEAT)
    (params["w_ih"], params["w_hh"],
     params["b_ih"], params["b_hh"]) = _init_lstm(klstm, FEAT, FEAT)
    params["w_p0"], params["b_p0"] = _init_linear(kp0, FEAT, HIDDEN)
    params["w_p1"], params["b_p1"] = _init_linear(kp1, HIDDEN, NUM_OUTPUTS)
    params["w_v0"], params["b_v0"] = _init_linear(kv0, FEAT, HIDDEN)
    params["w_v1"], params["b_v1"] = _init_linear(kv1, HIDDEN, 1)

    logits, value, h_T, c_T = jax.block_until_ready(
        recurrent_actor_critic_forward(obs, h0, c0, params))

    ref_pi, ref_v, ref_h, ref_c = _reference_forward(obs, h0, c0, params)
    assert logits.shape == (B * T, NUM_OUTPUTS)
    assert value.shape == (B * T,)
    assert h_T.shape == (B, 1, FEAT) and c_T.shape == (B, 1, FEAT)
    assert jnp.allclose(logits, ref_pi, atol=1e-4, rtol=1e-4)
    assert jnp.allclose(value, ref_v, atol=1e-4, rtol=1e-4)
    assert jnp.allclose(h_T, ref_h, atol=1e-4, rtol=1e-4)
    assert jnp.allclose(c_T, ref_c, atol=1e-4, rtol=1e-4)

    print("KERNEL_OK")
</pallas_src>

<mosaic_0001>
module attributes {stable_mosaic.version = 11 : i64} {
  func.func @_recurrent_ac_kernel(%arg0: i32, %arg1: memref<8x8x32xf32, #tpu.memory_space<vmem>>, %arg2: memref<8x32xf32, #tpu.memory_space<vmem>>, %arg3: memref<8x32xf32, #tpu.memory_space<vmem>>, %arg4: memref<32x32xf32, #tpu.memory_space<vmem>>, %arg5: memref<1x32xf32, #tpu.memory_space<vmem>>, %arg6: memref<32x128xf32, #tpu.memory_space<vmem>>, %arg7: memref<32x128xf32, #tpu.memory_space<vmem>>, %arg8: memref<1x128xf32, #tpu.memory_space<vmem>>, %arg9: memref<32x256xf32, #tpu.memory_space<vmem>>, %arg10: memref<1x256xf32, #tpu.memory_space<vmem>>, %arg11: memref<256x128xf32, #tpu.memory_space<vmem>>, %arg12: memref<1x128xf32, #tpu.memory_space<vmem>>, %arg13: memref<8x8x128xf32, #tpu.memory_space<vmem>>, %arg14: memref<8x32xf32, #tpu.memory_space<vmem>>, %arg15: memref<8x32xf32, #tpu.memory_space<vmem>>, %arg16: memref<8x8x128xf32, #tpu.memory_space<vmem>>, %arg17: memref<8x8x32xf32, #tpu.memory_space<vmem>>, %arg18: memref<8x32xf32, #tpu.memory_space<vmem>>, %arg19: memref<8x32xf32, #tpu.memory_space<vmem>>) attributes {dimension_semantics = [#tpu.dimension_semantics<parallel>], iteration_bounds = array<i64: 1>, scalar_prefetch = 0 : i64, scratch_operands = 4 : i64, tpu.core_type = #tpu.core_type<tc>, window_params = [{transform_indices = @transform_0, window_bounds = array<i64: 8, 8, 32>}, {transform_indices = @transform_1, window_bounds = array<i64: 8, 32>}, {transform_indices = @transform_2, window_bounds = array<i64: 8, 32>}, {pipeline_mode = #tpu.pipeline_mode<synchronous>, transform_indices = @transform_3, window_bounds = array<i64: 32, 32>}, {pipeline_mode = #tpu.pipeline_mode<synchronous>, transform_indices = @transform_4, window_bounds = array<i64: 1, 32>}, {pipeline_mode = #tpu.pipeline_mode<synchronous>, transform_indices = @transform_5, window_bounds = array<i64: 32, 128>}, {pipeline_mode = #tpu.pipeline_mode<synchronous>, transform_indices = @transform_6, window_bounds = array<i64: 32, 128>}, {pipeline_mode = #tpu.pipeline_mode<synchronous>, transform_indices = @transform_7, window_bounds = array<i64: 1, 128>}, {pipeline_mode = #tpu.pipeline_mode<synchronous>, transform_indices = @transform_8, window_bounds = array<i64: 32, 256>}, {pipeline_mode = #tpu.pipeline_mode<synchronous>, transform_indices = @transform_9, window_bounds = array<i64: 1, 256>}, {pipeline_mode = #tpu.pipeline_mode<synchronous>, transform_indices = @transform_10, window_bounds = array<i64: 256, 128>}, {pipeline_mode = #tpu.pipeline_mode<synchronous>, transform_indices = @transform_11, window_bounds = array<i64: 1, 128>}, {transform_indices = @transform_12, window_bounds = array<i64: 8, 8, 128>}, {transform_indices = @transform_13, window_bounds = array<i64: 8, 32>}, {transform_indices = @transform_14, window_bounds = array<i64: 8, 32>}]} {
    %c0 = arith.constant 0 : index
    %c0_0 = arith.constant 0 : index
    %0 = vector.load %arg4[%c0, %c0_0] : memref<32x32xf32, #tpu.memory_space<vmem>>, vector<32x32xf32>
    %c0_1 = arith.constant 0 : index
    %c0_2 = arith.constant 0 : index
    %1 = vector.load %arg6[%c0_1, %c0_2] : memref<32x128xf32, #tpu.memory_space<vmem>>, vector<32x128xf32>
    %c0_3 = arith.constant 0 : index
    %c0_4 = arith.constant 0 : index
    %2 = vector.load %arg7[%c0_3, %c0_4] : memref<32x128xf32, #tpu.memory_space<vmem>>, vector<32x128xf32>
    %c0_5 = arith.constant 0 : index
    %c0_6 = arith.constant 0 : index
    %3 = vector.load %arg9[%c0_5, %c0_6] : memref<32x256xf32, #tpu.memory_space<vmem>>, vector<32x256xf32>
    %c0_7 = arith.constant 0 : index
    %c0_8 = arith.constant 0 : index
    %4 = vector.load %arg11[%c0_7, %c0_8] : memref<256x128xf32, #tpu.memory_space<vmem>>, vector<256x128xf32>
    %c0_9 = arith.constant 0 : index
    %c0_10 = arith.constant 0 : index
    %5 = vector.load %arg5[%c0_9, %c0_10] : memref<1x32xf32, #tpu.memory_space<vmem>>, vector<1x32xf32>
    %6 = vector.shape_cast %5 : vector<1x32xf32> to vector<1x32xf32>
    %7 = vector.broadcast %6 : vector<1x32xf32> to vector<8x32xf32>
    %c0_11 = arith.constant 0 : index
    %c0_12 = arith.constant 0 : index
    %8 = vector.load %arg8[%c0_11, %c0_12] : memref<1x128xf32, #tpu.memory_space<vmem>>, vector<1x128xf32>
    %9 = vector.shape_cast %8 : vector<1x128xf32> to vector<1x128xf32>
    %10 = vector.broadcast %9 : vector<1x128xf32> to vector<8x128xf32>
    %c0_13 = arith.constant 0 : index
    %c0_14 = arith.constant 0 : index
    %11 = vector.load %arg10[%c0_13, %c0_14] : memref<1x256xf32, #tpu.memory_space<vmem>>, vector<1x256xf32>
    %12 = vector.shape_cast %11 : vector<1x256xf32> to vector<1x256xf32>
    %13 = vector.broadcast %12 : vector<1x256xf32> to vector<8x256xf32>
    %c0_15 = arith.constant 0 : index
    %c0_16 = arith.constant 0 : index
    %14 = vector.load %arg12[%c0_15, %c0_16] : memref<1x128xf32, #tpu.memory_space<vmem>>, vector<1x128xf32>
    %15 = vector.shape_cast %14 : vector<1x128xf32> to vector<1x128xf32>
    %16 = vector.broadcast %15 : vector<1x128xf32> to vector<8x128xf32>
    %c0_i32 = arith.constant 0 : i32
    %17 = arith.index_cast %c0_i32 : i32 to index
    %c0_17 = arith.constant 0 : index
    %c0_18 = arith.constant 0 : index
    %18 = vector.load %arg1[%17, %c0_17, %c0_18] : memref<8x8x32xf32, #tpu.memory_space<vmem>>, vector<1x8x32xf32>
    %19 = vector.shape_cast %18 : vector<1x8x32xf32> to vector<8x32xf32>
    %cst = arith.constant dense<0.000000e+00> : vector<8x32xf32>
    %20 = tpu.matmul %19, %0, %cst {dimension_numbers = #tpu.dot_dimension_numbers<[1], [0], [0], [1], [0, 0, 1, 1], [], []>} : vector<8x32xf32>, vector<32x32xf32>, vector<8x32xf32> -> vector<8x32xf32>
    %21 = arith.addf %20, %7 : vector<8x32xf32>
    %cst_19 = arith.constant 0.000000e+00 : f32
    %22 = vector.broadcast %cst_19 : f32 to vector<8x32xf32>
    %23 = arith.maximumf %21, %22 : vector<8x32xf32>
    %cst_20 = arith.constant dense<0.000000e+00> : vector<8x128xf32>
    %24 = tpu.matmul %23, %1, %cst_20 {dimension_numbers = #tpu.dot_dimension_numbers<[1], [0], [0], [1], [0, 0, 1, 1], [], []>} : vector<8x32xf32>, vector<32x128xf32>, vector<8x128xf32> -> vector<8x128xf32>
    %25 = arith.addf %24, %10 : vector<8x128xf32>
    %26 = arith.index_cast %c0_i32 : i32 to index
    %c0_21 = arith.constant 0 : index
    %c0_22 = arith.constant 0 : index
    %27 = vector.load %arg16[%26, %c0_21, %c0_22] : memref<8x8x128xf32, #tpu.memory_space<vmem>>, vector<1x8x128xf32>
    %28 = vector.shape_cast %27 : vector<1x8x128xf32> to vector<8x128xf32>
    %29 = vector.shape_cast %25 : vector<8x128xf32> to vector<1x8x128xf32>
    tpu.vector_store %arg16[%26, %c0_21, %c0_22], %29 {strides = array<i32>} : memref<8x8x128xf32, #tpu.memory_space<vmem>>, vector<1x8x128xf32>,
    %c1_i32 = arith.constant 1 : i32
    %30 = arith.index_cast %c1_i32 : i32 to index
    %c0_23 = arith.constant 0 : index
    %c0_24 = arith.constant 0 : index
    %31 = vector.load %arg1[%30, %c0_23, %c0_24] : memref<8x8x32xf32, #tpu.memory_space<vmem>>, vector<1x8x32xf32>
    %32 = vector.shape_cast %31 : vector<1x8x32xf32> to vector<8x32xf32>
    %cst_25 = arith.constant dense<0.000000e+00> : vector<8x32xf32>
    %33 = tpu.matmul %32, %0, %cst_25 {dimension_numbers = #tpu.dot_dimension_numbers<[1], [0], [0], [1], [0, 0, 1, 1], [], []>} : vector<8x32xf32>, vector<32x32xf32>, vector<8x32xf32> -> vector<8x32xf32>
    %34 = arith.addf %33, %7 : vector<8x32xf32>
    %cst_26 = arith.constant 0.000000e+00 : f32
    %35 = vector.broadcast %cst_26 : f32 to vector<8x32xf32>
    %36 = arith.maximumf %34, %35 : vector<8x32xf32>
    %cst_27 = arith.constant dense<0.000000e+00> : vector<8x128xf32>
    %37 = tpu.matmul %36, %1, %cst_27 {dimension_numbers = #tpu.dot_dimension_numbers<[1], [0], [0], [1], [0, 0, 1, 1], [], []>} : vector<8x32xf32>, vector<32x128xf32>, vector<8x128xf32> -> vector<8x128xf32>
    %38 = arith.addf %37, %10 : vector<8x128xf32>
    %39 = arith.index_cast %c1_i32 : i32 to index
    %c0_28 = arith.constant 0 : index
    %c0_29 = arith.constant 0 : index
    %40 = vector.load %arg16[%39, %c0_28, %c0_29] : memref<8x8x128xf32, #tpu.memory_space<vmem>>, vector<1x8x128xf32>
    %41 = vector.shape_cast %40 : vector<1x8x128xf32> to vector<8x128xf32>
    %42 = vector.shape_cast %38 : vector<8x128xf32> to vector<1x8x128xf32>
    tpu.vector_store %arg16[%39, %c0_28, %c0_29], %42 {strides = array<i32>} : memref<8x8x128xf32, #tpu.memory_space<vmem>>, vector<1x8x128xf32>,
    %c2_i32 = arith.constant 2 : i32
    %43 = arith.index_cast %c2_i32 : i32 to index
    %c0_30 = arith.constant 0 : index
    %c0_31 = arith.constant 0 : index
    %44 = vector.load %arg1[%43, %c0_30, %c0_31] : memref<8x8x32xf32, #tpu.memory_space<vmem>>, vector<1x8x32xf32>
    %45 = vector.shape_cast %44 : vector<1x8x32xf32> to vector<8x32xf32>
    %cst_32 = arith.constant dense<0.000000e+00> : vector<8x32xf32>
    %46 = tpu.matmul %45, %0, %cst_32 {dimension_numbers = #tpu.dot_dimension_numbers<[1], [0], [0], [1], [0, 0, 1, 1], [], []>} : vector<8x32xf32>, vector<32x32xf32>, vector<8x32xf32> -> vector<8x32xf32>
    %47 = arith.addf %46, %7 : vector<8x32xf32>
    %cst_33 = arith.constant 0.000000e+00 : f32
    %48 = vector.broadcast %cst_33 : f32 to vector<8x32xf32>
    %49 = arith.maximumf %47, %48 : vector<8x32xf32>
    %cst_34 = arith.constant dense<0.000000e+00> : vector<8x128xf32>
    %50 = tpu.matmul %49, %1, %cst_34 {dimension_numbers = #tpu.dot_dimension_numbers<[1], [0], [0], [1], [0, 0, 1, 1], [], []>} : vector<8x32xf32>, vector<32x128xf32>, vector<8x128xf32> -> vector<8x128xf32>
    %51 = arith.addf %50, %10 : vector<8x128xf32>
    %52 = arith.index_cast %c2_i32 : i32 to index
    %c0_35 = arith.constant 0 : index
    %c0_36 = arith.constant 0 : index
    %53 = vector.load %arg16[%52, %c0_35, %c0_36] : memref<8x8x128xf32, #tpu.memory_space<vmem>>, vector<1x8x128xf32>
    %54 = vector.shape_cast %53 : vector<1x8x128xf32> to vector<8x128xf32>
    %55 = vector.shape_cast %51 : vector<8x128xf32> to vector<1x8x128xf32>
    tpu.vector_store %arg16[%52, %c0_35, %c0_36], %55 {strides = array<i32>} : memref<8x8x128xf32, #tpu.memory_space<vmem>>, vector<1x8x128xf32>,
    %c3_i32 = arith.constant 3 : i32
    %56 = arith.index_cast %c3_i32 : i32 to index
    %c0_37 = arith.constant 0 : index
    %c0_38 = arith.constant 0 : index
    %57 = vector.load %arg1[%56, %c0_37, %c0_38] : memref<8x8x32xf32, #tpu.memory_space<vmem>>, vector<1x8x32xf32>
    %58 = vector.shape_cast %57 : vector<1x8x32xf32> to vector<8x32xf32>
    %cst_39 = arith.constant dense<0.000000e+00> : vector<8x32xf32>
    %59 = tpu.matmul %58, %0, %cst_39 {dimension_numbers = #tpu.dot_dimension_numbers<[1], [0], [0], [1], [0, 0, 1, 1], [], []>} : vector<8x32xf32>, vector<32x32xf32>, vector<8x32xf32> -> vector<8x32xf32>
    %60 = arith.addf %59, %7 : vector<8x32xf32>
    %cst_40 = arith.constant 0.000000e+00 : f32
    %61 = vector.broadcast %cst_40 : f32 to vector<8x32xf32>
    %62 = arith.maximumf %60, %61 : vector<8x32xf32>
    %cst_41 = arith.constant dense<0.000000e+00> : vector<8x128xf32>
    %63 = tpu.matmul %62, %1, %cst_41 {dimension_numbers = #tpu.dot_dimension_numbers<[1], [0], [0], [1], [0, 0, 1, 1], [], []>} : vector<8x32xf32>, vector<32x128xf32>, vector<8x128xf32> -> vector<8x128xf32>
    %64 = arith.addf %63, %10 : vector<8x128xf32>
    %65 = arith.index_cast %c3_i32 : i32 to index
    %c0_42 = arith.constant 0 : index
    %c0_43 = arith.constant 0 : index
    %66 = vector.load %arg16[%65, %c0_42, %c0_43] : memref<8x8x128xf32, #tpu.memory_space<vmem>>, vector<1x8x128xf32>
    %67 = vector.shape_cast %66 : vector<1x8x128xf32> to vector<8x128xf32>
    %68 = vector.shape_cast %64 : vector<8x128xf32> to vector<1x8x128xf32>
    tpu.vector_store %arg16[%65, %c0_42, %c0_43], %68 {strides = array<i32>} : memref<8x8x128xf32, #tpu.memory_space<vmem>>, vector<1x8x128xf32>,
    %c4_i32 = arith.constant 4 : i32
    %69 = arith.index_cast %c4_i32 : i32 to index
    %c0_44 = arith.constant 0 : index
    %c0_45 = arith.constant 0 : index
    %70 = vector.load %arg1[%69, %c0_44, %c0_45] : memref<8x8x32xf32, #tpu.memory_space<vmem>>, vector<1x8x32xf32>
    %71 = vector.shape_cast %70 : vector<1x8x32xf32> to vector<8x32xf32>
    %cst_46 = arith.constant dense<0.000000e+00> : vector<8x32xf32>
    %72 = tpu.matmul %71, %0, %cst_46 {dimension_numbers = #tpu.dot_dimension_numbers<[1], [0], [0], [1], [0, 0, 1, 1], [], []>} : vector<8x32xf32>, vector<32x32xf32>, vector<8x32xf32> -> vector<8x32xf32>
    %73 = arith.addf %72, %7 : vector<8x32xf32>
    %cst_47 = arith.constant 0.000000e+00 : f32
    %74 = vector.broadcast %cst_47 : f32 to vector<8x32xf32>
    %75 = arith.maximumf %73, %74 : vector<8x32xf32>
    %cst_48 = arith.constant dense<0.000000e+00> : vector<8x128xf32>
    %76 = tpu.matmul %75, %1, %cst_48 {dimension_numbers = #tpu.dot_dimension_numbers<[1], [0], [0], [1], [0, 0, 1, 1], [], []>} : vector<8x32xf32>, vector<32x128xf32>, vector<8x128xf32> -> vector<8x128xf32>
    %77 = arith.addf %76, %10 : vector<8x128xf32>
    %78 = arith.index_cast %c4_i32 : i32 to index
    %c0_49 = arith.constant 0 : index
    %c0_50 = arith.constant 0 : index
    %79 = vector.load %arg16[%78, %c0_49, %c0_50] : memref<8x8x128xf32, #tpu.memory_space<vmem>>, vector<1x8x128xf32>
    %80 = vector.shape_cast %79 : vector<1x8x128xf32> to vector<8x128xf32>
    %81 = vector.shape_cast %77 : vector<8x128xf32> to vector<1x8x128xf32>
    tpu.vector_store %arg16[%78, %c0_49, %c0_50], %81 {strides = array<i32>} : memref<8x8x128xf32, #tpu.memory_space<vmem>>, vector<1x8x128xf32>,
    %c5_i32 = arith.constant 5 : i32
    %82 = arith.index_cast %c5_i32 : i32 to index
    %c0_51 = arith.constant 0 : index
    %c0_52 = arith.constant 0 : index
    %83 = vector.load %arg1[%82, %c0_51, %c0_52] : memref<8x8x32xf32, #tpu.memory_space<vmem>>, vector<1x8x32xf32>
    %84 = vector.shape_cast %83 : vector<1x8x32xf32> to vector<8x32xf32>
    %cst_53 = arith.constant dense<0.000000e+00> : vector<8x32xf32>
    %85 = tpu.matmul %84, %0, %cst_53 {dimension_numbers = #tpu.dot_dimension_numbers<[1], [0], [0], [1], [0, 0, 1, 1], [], []>} : vector<8x32xf32>, vector<32x32xf32>, vector<8x32xf32> -> vector<8x32xf32>
    %86 = arith.addf %85, %7 : vector<8x32xf32>
    %cst_54 = arith.constant 0.000000e+00 : f32
    %87 = vector.broadcast %cst_54 : f32 to vector<8x32xf32>
    %88 = arith.maximumf %86, %87 : vector<8x32xf32>
    %cst_55 = arith.constant dense<0.000000e+00> : vector<8x128xf32>
    %89 = tpu.matmul %88, %1, %cst_55 {dimension_numbers = #tpu.dot_dimension_numbers<[1], [0], [0], [1], [0, 0, 1, 1], [], []>} : vector<8x32xf32>, vector<32x128xf32>, vector<8x128xf32> -> vector<8x128xf32>
    %90 = arith.addf %89, %10 : vector<8x128xf32>
    %91 = arith.index_cast %c5_i32 : i32 to index
    %c0_56 = arith.constant 0 : index
    %c0_57 = arith.constant 0 : index
    %92 = vector.load %arg16[%91, %c0_56, %c0_57] : memref<8x8x128xf32, #tpu.memory_space<vmem>>, vector<1x8x128xf32>
    %93 = vector.shape_cast %92 : vector<1x8x128xf32> to vector<8x128xf32>
    %94 = vector.shape_cast %90 : vector<8x128xf32> to vector<1x8x128xf32>
    tpu.vector_store %arg16[%91, %c0_56, %c0_57], %94 {strides = array<i32>} : memref<8x8x128xf32, #tpu.memory_space<vmem>>, vector<1x8x128xf32>,
    %c6_i32 = arith.constant 6 : i32
    %95 = arith.index_cast %c6_i32 : i32 to index
    %c0_58 = arith.constant 0 : index
    %c0_59 = arith.constant 0 : index
    %96 = vector.load %arg1[%95, %c0_58, %c0_59] : memref<8x8x32xf32, #tpu.memory_space<vmem>>, vector<1x8x32xf32>
    %97 = vector.shape_cast %96 : vector<1x8x32xf32> to vector<8x32xf32>
    %cst_60 = arith.constant dense<0.000000e+00> : vector<8x32xf32>
    %98 = tpu.matmul %97, %0, %cst_60 {dimension_numbers = #tpu.dot_dimension_numbers<[1], [0], [0], [1], [0, 0, 1, 1], [], []>} : vector<8x32xf32>, vector<32x32xf32>, vector<8x32xf32> -> vector<8x32xf32>
    %99 = arith.addf %98, %7 : vector<8x32xf32>
    %cst_61 = arith.constant 0.000000e+00 : f32
    %100 = vector.broadcast %cst_61 : f32 to vector<8x32xf32>
    %101 = arith.maximumf %99, %100 : vector<8x32xf32>
    %cst_62 = arith.constant dense<0.000000e+00> : vector<8x128xf32>
    %102 = tpu.matmul %101, %1, %cst_62 {dimension_numbers = #tpu.dot_dimension_numbers<[1], [0], [0], [1], [0, 0, 1, 1], [], []>} : vector<8x32xf32>, vector<32x128xf32>, vector<8x128xf32> -> vector<8x128xf32>
    %103 = arith.addf %102, %10 : vector<8x128xf32>
    %104 = arith.index_cast %c6_i32 : i32 to index
    %c0_63 = arith.constant 0 : index
    %c0_64 = arith.constant 0 : index
    %105 = vector.load %arg16[%104, %c0_63, %c0_64] : memref<8x8x128xf32, #tpu.memory_space<vmem>>, vector<1x8x128xf32>
    %106 = vector.shape_cast %105 : vector<1x8x128xf32> to vector<8x128xf32>
    %107 = vector.shape_cast %103 : vector<8x128xf32> to vector<1x8x128xf32>
    tpu.vector_store %arg16[%104, %c0_63, %c0_64], %107 {strides = array<i32>} : memref<8x8x128xf32, #tpu.memory_space<vmem>>, vector<1x8x128xf32>,
    %c7_i32 = arith.constant 7 : i32
    %108 = arith.index_cast %c7_i32 : i32 to index
    %c0_65 = arith.constant 0 : index
    %c0_66 = arith.constant 0 : index
    %109 = vector.load %arg1[%108, %c0_65, %c0_66] : memref<8x8x32xf32, #tpu.memory_space<vmem>>, vector<1x8x32xf32>
    %110 = vector.shape_cast %109 : vector<1x8x32xf32> to vector<8x32xf32>
    %cst_67 = arith.constant dense<0.000000e+00> : vector<8x32xf32>
    %111 = tpu.matmul %110, %0, %cst_67 {dimension_numbers = #tpu.dot_dimension_numbers<[1], [0], [0], [1], [0, 0, 1, 1], [], []>} : vector<8x32xf32>, vector<32x32xf32>, vector<8x32xf32> -> vector<8x32xf32>
    %112 = arith.addf %111, %7 : vector<8x32xf32>
    %cst_68 = arith.constant 0.000000e+00 : f32
    %113 = vector.broadcast %cst_68 : f32 to vector<8x32xf32>
    %114 = arith.maximumf %112, %113 : vector<8x32xf32>
    %cst_69 = arith.constant dense<0.000000e+00> : vector<8x128xf32>
    %115 = tpu.matmul %114, %1, %cst_69 {dimension_numbers = #tpu.dot_dimension_numbers<[1], [0], [0], [1], [0, 0, 1, 1], [], []>} : vector<8x32xf32>, vector<32x128xf32>, vector<8x128xf32> -> vector<8x128xf32>
    %116 = arith.addf %115, %10 : vector<8x128xf32>
    %117 = arith.index_cast %c7_i32 : i32 to index
    %c0_70 = arith.constant 0 : index
    %c0_71 = arith.constant 0 : index
    %118 = vector.load %arg16[%117, %c0_70, %c0_71] : memref<8x8x128xf32, #tpu.memory_space<vmem>>, vector<1x8x128xf32>
    %119 = vector.shape_cast %118 : vector<1x8x128xf32> to vector<8x128xf32>
    %120 = vector.shape_cast %116 : vector<8x128xf32> to vector<1x8x128xf32>
    tpu.vector_store %arg16[%117, %c0_70, %c0_71], %120 {strides = array<i32>} : memref<8x8x128xf32, #tpu.memory_space<vmem>>, vector<1x8x128xf32>,
    %c8_i32 = arith.constant 8 : i32
    %c0_72 = arith.constant 0 : index
    %c0_73 = arith.constant 0 : index
    %121 = vector.load %arg2[%c0_72, %c0_73] : memref<8x32xf32, #tpu.memory_space<vmem>>, vector<8x32xf32>
    %c0_74 = arith.constant 0 : index
    %c0_75 = arith.constant 0 : index
    %122 = vector.load %arg18[%c0_74, %c0_75] : memref<8x32xf32, #tpu.memory_space<vmem>>, vector<8x32xf32>
    tpu.vector_store %arg18[%c0_74, %c0_75], %121 {strides = array<i32>} : memref<8x32xf32, #tpu.memory_space<vmem>>, vector<8x32xf32>,
    %c0_76 = arith.constant 0 : index
    %c0_77 = arith.constant 0 : index
    %123 = vector.load %arg3[%c0_76, %c0_77] : memref<8x32xf32, #tpu.memory_space<vmem>>, vector<8x32xf32>
    %c0_78 = arith.constant 0 : index
    %c0_79 = arith.constant 0 : index
    %124 = vector.load %arg19[%c0_78, %c0_79] : memref<8x32xf32, #tpu.memory_space<vmem>>, vector<8x32xf32>
    tpu.vector_store %arg19[%c0_78, %c0_79], %123 {strides = array<i32>} : memref<8x32xf32, #tpu.memory_space<vmem>>, vector<8x32xf32>,
    %c0_i32_80 = arith.constant 0 : i32
    %c0_81 = arith.constant 0 : index
    %c0_82 = arith.constant 0 : index
    %125 = vector.load %arg18[%c0_81, %c0_82] : memref<8x32xf32, #tpu.memory_space<vmem>>, vector<8x32xf32>
    %c0_83 = arith.constant 0 : index
    %c0_84 = arith.constant 0 : index
    %126 = vector.load %arg19[%c0_83, %c0_84] : memref<8x32xf32, #tpu.memory_space<vmem>>, vector<8x32xf32>
    %127 = arith.index_cast %c0_i32_80 : i32 to index
    %c0_85 = arith.constant 0 : index
    %c0_86 = arith.constant 0 : index
    %128 = vector.load %arg16[%127, %c0_85, %c0_86] : memref<8x8x128xf32, #tpu.memory_space<vmem>>, vector<1x8x128xf32>
    %129 = vector.shape_cast %128 : vector<1x8x128xf32> to vector<8x128xf32>
    %cst_87 = arith.constant dense<0.000000e+00> : vector<8x128xf32>
    %130 = tpu.matmul %125, %2, %cst_87 {dimension_numbers = #tpu.dot_dimension_numbers<[1], [0], [0], [1], [0, 0, 1, 1], [], []>} : vector<8x32xf32>, vector<32x128xf32>, vector<8x128xf32> -> vector<8x128xf32>
    %131 = arith.addf %129, %130 : vector<8x128xf32>
    %132 = vector.extract_strided_slice %131 {offsets = [0, 0], sizes = [8, 32], strides = [1, 1]} : vector<8x128xf32> to vector<8x32xf32>
    %cst_88 = arith.constant 0.000000e+00 : f32
    %133 = vector.broadcast %cst_88 : f32 to vector<8x32xf32>
    %134 = arith.subf %133, %132 : vector<8x32xf32>
    %135 = math.exp %134 : vector<8x32xf32>
    %cst_89 = arith.constant 1.000000e+00 : f32
    %136 = vector.broadcast %cst_89 : f32 to vector<8x32xf32>
    %137 = arith.addf %136, %135 : vector<8x32xf32>
    %cst_90 = arith.constant 1.000000e+00 : f32
    %138 = vector.broadcast %cst_90 : f32 to vector<8x32xf32>
    %139 = arith.divf %138, %137 : vector<8x32xf32>
    %140 = vector.extract_strided_slice %131 {offsets = [0, 32], sizes = [8, 32], strides = [1, 1]} : vector<8x128xf32> to vector<8x32xf32>
    %cst_91 = arith.constant 0.000000e+00 : f32
    %141 = vector.broadcast %cst_91 : f32 to vector<8x32xf32>
    %142 = arith.subf %141, %140 : vector<8x32xf32>
    %143 = math.exp %142 : vector<8x32xf32>
    %cst_92 = arith.constant 1.000000e+00 : f32
    %144 = vector.broadcast %cst_92 : f32 to vector<8x32xf32>
    %145 = arith.addf %144, %143 : vector<8x32xf32>
    %cst_93 = arith.constant 1.000000e+00 : f32
    %146 = vector.broadcast %cst_93 : f32 to vector<8x32xf32>
    %147 = arith.divf %146, %145 : vector<8x32xf32>
    %148 = vector.extract_strided_slice %131 {offsets = [0, 64], sizes = [8, 32], strides = [1, 1]} : vector<8x128xf32> to vector<8x32xf32>
    %149 = math.tanh %148 : vector<8x32xf32>
    %150 = vector.extract_strided_slice %131 {offsets = [0, 96], sizes = [8, 32], strides = [1, 1]} : vector<8x128xf32> to vector<8x32xf32>
    %cst_94 = arith.constant 0.000000e+00 : f32
    %151 = vector.broadcast %cst_94 : f32 to vector<8x32xf32>
    %152 = arith.subf %151, %150 : vector<8x32xf32>
    %153 = math.exp %152 : vector<8x32xf32>
    %cst_95 = arith.constant 1.000000e+00 : f32
    %154 = vector.broadcast %cst_95 : f32 to vector<8x32xf32>
    %155 = arith.addf %154, %153 : vector<8x32xf32>
    %cst_96 = arith.constant 1.000000e+00 : f32
    %156 = vector.broadcast %cst_96 : f32 to vector<8x32xf32>
    %157 = arith.divf %156, %155 : vector<8x32xf32>
    %158 = arith.mulf %147, %126 : vector<8x32xf32>
    %159 = arith.mulf %139, %149 : vector<8x32xf32>
    %160 = arith.addf %158, %159 : vector<8x32xf32>
    %161 = math.tanh %160 : vector<8x32xf32>
    %162 = arith.mulf %157, %161 : vector<8x32xf32>
    %c0_97 = arith.constant 0 : index
    %c0_98 = arith.constant 0 : index
    %163 = vector.load %arg18[%c0_97, %c0_98] : memref<8x32xf32, #tpu.memory_space<vmem>>, vector<8x32xf32>
    tpu.vector_store %arg18[%c0_97, %c0_98], %162 {strides = array<i32>} : memref<8x32xf32, #tpu.memory_space<vmem>>, vector<8x32xf32>,
    %c0_99 = arith.constant 0 : index
    %c0_100 = arith.constant 0 : index
    %164 = vector.load %arg19[%c0_99, %c0_100] : memref<8x32xf32, #tpu.memory_space<vmem>>, vector<8x32xf32>
    tpu.vector_store %arg19[%c0_99, %c0_100], %160 {strides = array<i32>} : memref<8x32xf32, #tpu.memory_space<vmem>>, vector<8x32xf32>,
    %165 = arith.index_cast %c0_i32_80 : i32 to index
    %c0_101 = arith.constant 0 : index
    %c0_102 = arith.constant 0 : index
    %166 = vector.load %arg17[%165, %c0_101, %c0_102] : memref<8x8x32xf32, #tpu.memory_space<vmem>>, vector<1x8x32xf32>
    %167 = vector.shape_cast %166 : vector<1x8x32xf32> to vector<8x32xf32>
    %168 = vector.shape_cast %162 : vector<8x32xf32> to vector<1x8x32xf32>
    tpu.vector_store %arg17[%165, %c0_101, %c0_102], %168 {strides = array<i32>} : memref<8x8x32xf32, #tpu.memory_space<vmem>>, vector<1x8x32xf32>,
    %c1_i32_103 = arith.constant 1 : i32
    %c0_104 = arith.constant 0 : index
    %c0_105 = arith.constant 0 : index
    %169 = vector.load %arg18[%c0_104, %c0_105] : memref<8x32xf32, #tpu.memory_space<vmem>>, vector<8x32xf32>
    %c0_106 = arith.constant 0 : index
    %c0_107 = arith.constant 0 : index
    %170 = vector.load %arg19[%c0_106, %c0_107] : memref<8x32xf32, #tpu.memory_space<vmem>>, vector<8x32xf32>
    %171 = arith.index_cast %c1_i32_103 : i32 to index
    %c0_108 = arith.constant 0 : index
    %c0_109 = arith.constant 0 : index
    %172 = vector.load %arg16[%171, %c0_108, %c0_109] : memref<8x8x128xf32, #tpu.memory_space<vmem>>, vector<1x8x128xf32>
    %173 = vector.shape_cast %172 : vector<1x8x128xf32> to vector<8x128xf32>
    %cst_110 = arith.constant dense<0.000000e+00> : vector<8x128xf32>
    %174 = tpu.matmul %169, %2, %cst_110 {dimension_numbers = #tpu.dot_dimension_numbers<[1], [0], [0], [1], [0, 0, 1, 1], [], []>} : vector<8x32xf32>, vector<32x128xf32>, vector<8x128xf32> -> vector<8x128xf32>
    %175 = arith.addf %173, %174 : vector<8x128xf32>
    %176 = vector.extract_strided_slice %175 {offsets = [0, 0], sizes = [8, 32], strides = [1, 1]} : vector<8x128xf32> to vector<8x32xf32>
    %cst_111 = arith.constant 0.000000e+00 : f32
    %177 = vector.broadcast %cst_111 : f32 to vector<8x32xf32>
    %178 = arith.subf %177, %176 : vector<8x32xf32>
    %179 = math.exp %178 : vector<8x32xf32>
    %cst_112 = arith.constant 1.000000e+00 : f32
    %180 = vector.broadcast %cst_112 : f32 to vector<8x32xf32>
    %181 = arith.addf %180, %179 : vector<8x32xf32>
    %cst_113 = arith.constant 1.000000e+00 : f32
    %182 = vector.broadcast %cst_113 : f32 to vector<8x32xf32>
    %183 = arith.divf %182, %181 : vector<8x32xf32>
    %184 = vector.extract_strided_slice %175 {offsets = [0, 32], sizes = [8, 32], strides = [1, 1]} : vector<8x128xf32> to vector<8x32xf32>
    %cst_114 = arith.constant 0.000000e+00 : f32
    %185 = vector.broadcast %cst_114 : f32 to vector<8x32xf32>
    %186 = arith.subf %185, %184 : vector<8x32xf32>
    %187 = math.exp %186 : vector<8x32xf32>
    %cst_115 = arith.constant 1.000000e+00 : f32
    %188 = vector.broadcast %cst_115 : f32 to vector<8x32xf32>
    %189 = arith.addf %188, %187 : vector<8x32xf32>
    %cst_116 = arith.constant 1.000000e+00 : f32
    %190 = vector.broadcast %cst_116 : f32 to vector<8x32xf32>
    %191 = arith.divf %190, %189 : vector<8x32xf32>
    %192 = vector.extract_strided_slice %175 {offsets = [0, 64], sizes = [8, 32], strides = [1, 1]} : vector<8x128xf32> to vector<8x32xf32>
    %193 = math.tanh %192 : vector<8x32xf32>
    %194 = vector.extract_strided_slice %175 {offsets = [0, 96], sizes = [8, 32], strides = [1, 1]} : vector<8x128xf32> to vector<8x32xf32>
    %cst_117 = arith.constant 0.000000e+00 : f32
    %195 = vector.broadcast %cst_117 : f32 to vector<8x32xf32>
    %196 = arith.subf %195, %194 : vector<8x32xf32>
    %197 = math.exp %196 : vector<8x32xf32>
    %cst_118 = arith.constant 1.000000e+00 : f32
    %198 = vector.broadcast %cst_118 : f32 to vector<8x32xf32>
    %199 = arith.addf %198, %197 : vector<8x32xf32>
    %cst_119 = arith.constant 1.000000e+00 : f32
    %200 = vector.broadcast %cst_119 : f32 to vector<8x32xf32>
    %201 = arith.divf %200, %199 : vector<8x32xf32>
    %202 = arith.mulf %191, %170 : vector<8x32xf32>
    %203 = arith.mulf %183, %193 : vector<8x32xf32>
    %204 = arith.addf %202, %203 : vector<8x32xf32>
    %205 = math.tanh %204 : vector<8x32xf32>
    %206 = arith.mulf %201, %205 : vector<8x32xf32>
    %c0_120 = arith.constant 0 : index
    %c0_121 = arith.constant 0 : index
    %207 = vector.load %arg18[%c0_120, %c0_121] : memref<8x32xf32, #tpu.memory_space<vmem>>, vector<8x32xf32>
    tpu.vector_store %arg18[%c0_120, %c0_121], %206 {strides = array<i32>} : memref<8x32xf32, #tpu.memory_space<vmem>>, vector<8x32xf32>,
    %c0_122 = arith.constant 0 : index
    %c0_123 = arith.constant 0 : index
    %208 = vector.load %arg19[%c0_122, %c0_123] : memref<8x32xf32, #tpu.memory_space<vmem>>, vector<8x32xf32>
    tpu.vector_store %arg19[%c0_122, %c0_123], %204 {strides = array<i32>} : memref<8x32xf32, #tpu.memory_space<vmem>>, vector<8x32xf32>,
    %209 = arith.index_cast %c1_i32_103 : i32 to index
    %c0_124 = arith.constant 0 : index
    %c0_125 = arith.constant 0 : index
    %210 = vector.load %arg17[%209, %c0_124, %c0_125] : memref<8x8x32xf32, #tpu.memory_space<vmem>>, vector<1x8x32xf32>
    %211 = vector.shape_cast %210 : vector<1x8x32xf32> to vector<8x32xf32>
    %212 = vector.shape_cast %206 : vector<8x32xf32> to vector<1x8x32xf32>
    tpu.vector_store %arg17[%209, %c0_124, %c0_125], %212 {strides = array<i32>} : memref<8x8x32xf32, #tpu.memory_space<vmem>>, vector<1x8x32xf32>,
    %c2_i32_126 = arith.constant 2 : i32
    %c0_127 = arith.constant 0 : index
    %c0_128 = arith.constant 0 : index
    %213 = vector.load %arg18[%c0_127, %c0_128] : memref<8x32xf32, #tpu.memory_space<vmem>>, vector<8x32xf32>
    %c0_129 = arith.constant 0 : index
    %c0_130 = arith.constant 0 : index
    %214 = vector.load %arg19[%c0_129, %c0_130] : memref<8x32xf32, #tpu.memory_space<vmem>>, vector<8x32xf32>
    %215 = arith.index_cast %c2_i32_126 : i32 to index
    %c0_131 = arith.constant 0 : index
    %c0_132 = arith.constant 0 : index
    %216 = vector.load %arg16[%215, %c0_131, %c0_132] : memref<8x8x128xf32, #tpu.memory_space<vmem>>, vector<1x8x128xf32>
    %217 = vector.shape_cast %216 : vector<1x8x128xf32> to vector<8x128xf32>
    %cst_133 = arith.constant dense<0.000000e+00> : vector<8x128xf32>
    %218 = tpu.matmul %213, %2, %cst_133 {dimension_numbers = #tpu.dot_dimension_numbers<[1], [0], [0], [1], [0, 0, 1, 1], [], []>} : vector<8x32xf32>, vector<32x128xf32>, vector<8x128xf32> -> vector<8x128xf32>
    %219 = arith.addf %217, %218 : vector<8x128xf32>
    %220 = vector.extract_strided_slice %219 {offsets = [0, 0], sizes = [8, 32], strides = [1, 1]} : vector<8x128xf32> to vector<8x32xf32>
    %cst_134 = arith.constant 0.000000e+00 : f32
    %221 = vector.broadcast %cst_134 : f32 to vector<8x32xf32>
    %222 = arith.subf %221, %220 : vector<8x32xf32>
    %223 = math.exp %222 : vector<8x32xf32>
    %cst_135 = arith.constant 1.000000e+00 : f32
    %224 = vector.broadcast %cst_135 : f32 to vector<8x32xf32>
    %225 = arith.addf %224, %223 : vector<8x32xf32>
    %cst_136 = arith.constant 1.000000e+00 : f32
    %226 = vector.broadcast %cst_136 : f32 to vector<8x32xf32>
    %227 = arith.divf %226, %225 : vector<8x32xf32>
    %228 = vector.extract_strided_slice %219 {offsets = [0, 32], sizes = [8, 32], strides = [1, 1]} : vector<8x128xf32> to vector<8x32xf32>
    %cst_137 = arith.constant 0.000000e+00 : f32
    %229 = vector.broadcast %cst_137 : f32 to vector<8x32xf32>
    %230 = arith.subf %229, %228 : vector<8x32xf32>
    %231 = math.exp %230 : vector<8x32xf32>
    %cst_138 = arith.constant 1.000000e+00 : f32
    %232 = vector.broadcast %cst_138 : f32 to vector<8x32xf32>
    %233 = arith.addf %232, %231 : vector<8x32xf32>
    %cst_139 = arith.constant 1.000000e+00 : f32
    %234 = vector.broadcast %cst_139 : f32 to vector<8x32xf32>
    %235 = arith.divf %234, %233 : vector<8x32xf32>
    %236 = vector.extract_strided_slice %219 {offsets = [0, 64], sizes = [8, 32], strides = [1, 1]} : vector<8x128xf32> to vector<8x32xf32>
    %237 = math.tanh %236 : vector<8x32xf32>
    %238 = vector.extract_strided_slice %219 {offsets = [0, 96], sizes = [8, 32], strides = [1, 1]} : vector<8x128xf32> to vector<8x32xf32>
    %cst_140 = arith.constant 0.000000e+00 : f32
    %239 = vector.broadcast %cst_140 : f32 to vector<8x32xf32>
    %240 = arith.subf %239, %238 : vector<8x32xf32>
    %241 = math.exp %240 : vector<8x32xf32>
    %cst_141 = arith.constant 1.000000e+00 : f32
    %242 = vector.broadcast %cst_141 : f32 to vector<8x32xf32>
    %243 = arith.addf %242, %241 : vector<8x32xf32>
    %cst_142 = arith.constant 1.000000e+00 : f32
    %244 = vector.broadcast %cst_142 : f32 to vector<8x32xf32>
    %245 = arith.divf %244, %243 : vector<8x32xf32>
    %246 = arith.mulf %235, %214 : vector<8x32xf32>
    %247 = arith.mulf %227, %237 : vector<8x32xf32>
    %248 = arith.addf %246, %247 : vector<8x32xf32>
    %249 = math.tanh %248 : vector<8x32xf32>
    %250 = arith.mulf %245, %249 : vector<8x32xf32>
    %c0_143 = arith.constant 0 : index
    %c0_144 = arith.constant 0 : index
    %251 = vector.load %arg18[%c0_143, %c0_144] : memref<8x32xf32, #tpu.memory_space<vmem>>, vector<8x32xf32>
    tpu.vector_store %arg18[%c0_143, %c0_144], %250 {strides = array<i32>} : memref<8x32xf32, #tpu.memory_space<vmem>>, vector<8x32xf32>,
    %c0_145 = arith.constant 0 : index
    %c0_146 = arith.constant 0 : index
    %252 = vector.load %arg19[%c0_145, %c0_146] : memref<8x32xf32, #tpu.memory_space<vmem>>, vector<8x32xf32>
    tpu.vector_store %arg19[%c0_145, %c0_146], %248 {strides = array<i32>} : memref<8x32xf32, #tpu.memory_space<vmem>>, vector<8x32xf32>,
    %253 = arith.index_cast %c2_i32_126 : i32 to index
    %c0_147 = arith.constant 0 : index
    %c0_148 = arith.constant 0 : index
    %254 = vector.load %arg17[%253, %c0_147, %c0_148] : memref<8x8x32xf32, #tpu.memory_space<vmem>>, vector<1x8x32xf32>
    %255 = vector.shape_cast %254 : vector<1x8x32xf32> to vector<8x32xf32>
    %256 = vector.shape_cast %250 : vector<8x32xf32> to vector<1x8x32xf32>
    tpu.vector_store %arg17[%253, %c0_147, %c0_148], %256 {strides = array<i32>} : memref<8x8x32xf32, #tpu.memory_space<vmem>>, vector<1x8x32xf32>,
    %c3_i32_149 = arith.constant 3 : i32
    %c0_150 = arith.constant 0 : index
    %c0_151 = arith.constant 0 : index
    %257 = vector.load %arg18[%c0_150, %c0_151] : memref<8x32xf32, #tpu.memory_space<vmem>>, vector<8x32xf32>
    %c0_152 = arith.constant 0 : index
    %c0_153 = arith.constant 0 : index
    %258 = vector.load %arg19[%c0_152, %c0_153] : memref<8x32xf32, #tpu.memory_space<vmem>>, vector<8x32xf32>
    %259 = arith.index_cast %c3_i32_149 : i32 to index
    %c0_154 = arith.constant 0 : index
    %c0_155 = arith.constant 0 : index
    %260 = vector.load %arg16[%259, %c0_154, %c0_155] : memref<8x8x128xf32, #tpu.memory_space<vmem>>, vector<1x8x128xf32>
    %261 = vector.shape_cast %260 : vector<1x8x128xf32> to vector<8x128xf32>
    %cst_156 = arith.constant dense<0.000000e+00> : vector<8x128xf32>
    %262 = tpu.matmul %257, %2, %cst_156 {dimension_numbers = #tpu.dot_dimension_numbers<[1], [0], [0], [1], [0, 0, 1, 1], [], []>} : vector<8x32xf32>, vector<32x128xf32>, vector<8x128xf32> -> vector<8x128xf32>
    %263 = arith.addf %261, %262 : vector<8x128xf32>
    %264 = vector.extract_strided_slice %263 {offsets = [0, 0], sizes = [8, 32], strides = [1, 1]} : vector<8x128xf32> to vector<8x32xf32>
    %cst_157 = arith.constant 0.000000e+00 : f32
    %265 = vector.broadcast %cst_157 : f32 to vector<8x32xf32>
    %266 = arith.subf %265, %264 : vector<8x32xf32>
    %267 = math.exp %266 : vector<8x32xf32>
    %cst_158 = arith.constant 1.000000e+00 : f32
    %268 = vector.broadcast %cst_158 : f32 to vector<8x32xf32>
    %269 = arith.addf %268, %267 : vector<8x32xf32>
    %cst_159 = arith.constant 1.000000e+00 : f32
    %270 = vector.broadcast %cst_159 : f32 to vector<8x32xf32>
    %271 = arith.divf %270, %269 : vector<8x32xf32>
    %272 = vector.extract_strided_slice %263 {offsets = [0, 32], sizes = [8, 32], strides = [1, 1]} : vector<8x128xf32> to vector<8x32xf32>
    %cst_160 = arith.constant 0.000000e+00 : f32
    %273 = vector.broadcast %cst_160 : f32 to vector<8x32xf32>
    %274 = arith.subf %273, %272 : vector<8x32xf32>
    %275 = math.exp %274 : vector<8x32xf32>
    %cst_161 = arith.constant 1.000000e+00 : f32
    %276 = vector.broadcast %cst_161 : f32 to vector<8x32xf32>
    %277 = arith.addf %276, %275 : vector<8x32xf32>
    %cst_162 = arith.constant 1.000000e+00 : f32
    %278 = vector.broadcast %cst_162 : f32 to vector<8x32xf32>
    %279 = arith.divf %278, %277 : vector<8x32xf32>
    %280 = vector.extract_strided_slice %263 {offsets = [0, 64], sizes = [8, 32], strides = [1, 1]} : vector<8x128xf32> to vector<8x32xf32>
    %281 = math.tanh %280 : vector<8x32xf32>
    %282 = vector.extract_strided_slice %263 {offsets = [0, 96], sizes = [8, 32], strides = [1, 1]} : vector<8x128xf32> to vector<8x32xf32>
    %cst_163 = arith.constant 0.000000e+00 : f32
    %283 = vector.broadcast %cst_163 : f32 to vector<8x32xf32>
    %284 = arith.subf %283, %282 : vector<8x32xf32>
    %285 = math.exp %284 : vector<8x32xf32>
    %cst_164 = arith.constant 1.000000e+00 : f32
    %286 = vector.broadcast %cst_164 : f32 to vector<8x32xf32>
    %287 = arith.addf %286, %285 : vector<8x32xf32>
    %cst_165 = arith.constant 1.000000e+00 : f32
    %288 = vector.broadcast %cst_165 : f32 to vector<8x32xf32>
    %289 = arith.divf %288, %287 : vector<8x32xf32>
    %290 = arith.mulf %279, %258 : vector<8x32xf32>
    %291 = arith.mulf %271, %281 : vector<8x32xf32>
    %292 = arith.addf %290, %291 : vector<8x32xf32>
    %293 = math.tanh %292 : vector<8x32xf32>
    %294 = arith.mulf %289, %293 : vector<8x32xf32>
    %c0_166 = arith.constant 0 : index
    %c0_167 = arith.constant 0 : index
    %295 = vector.load %arg18[%c0_166, %c0_167] : memref<8x32xf32, #tpu.memory_space<vmem>>, vector<8x32xf32>
    tpu.vector_store %arg18[%c0_166, %c0_167], %294 {strides = array<i32>} : memref<8x32xf32, #tpu.memory_space<vmem>>, vector<8x32xf32>,
    %c0_168 = arith.constant 0 : index
    %c0_169 = arith.constant 0 : index
    %296 = vector.load %arg19[%c0_168, %c0_169] : memref<8x32xf32, #tpu.memory_space<vmem>>, vector<8x32xf32>
    tpu.vector_store %arg19[%c0_168, %c0_169], %292 {strides = array<i32>} : memref<8x32xf32, #tpu.memory_space<vmem>>, vector<8x32xf32>,
    %297 = arith.index_cast %c3_i32_149 : i32 to index
    %c0_170 = arith.constant 0 : index
    %c0_171 = arith.constant 0 : index
    %298 = vector.load %arg17[%297, %c0_170, %c0_171] : memref<8x8x32xf32, #tpu.memory_space<vmem>>, vector<1x8x32xf32>
    %299 = vector.shape_cast %298 : vector<1x8x32xf32> to vector<8x32xf32>
    %300 = vector.shape_cast %294 : vector<8x32xf32> to vector<1x8x32xf32>
    tpu.vector_store %arg17[%297, %c0_170, %c0_171], %300 {strides = array<i32>} : memref<8x8x32xf32, #tpu.memory_space<vmem>>, vector<1x8x32xf32>,
    %c4_i32_172 = arith.constant 4 : i32
    %c0_173 = arith.constant 0 : index
    %c0_174 = arith.constant 0 : index
    %301 = vector.load %arg18[%c0_173, %c0_174] : memref<8x32xf32, #tpu.memory_space<vmem>>, vector<8x32xf32>
    %c0_175 = arith.constant 0 : index
    %c0_176 = arith.constant 0 : index
    %302 = vector.load %arg19[%c0_175, %c0_176] : memref<8x32xf32, #tpu.memory_space<vmem>>, vector<8x32xf32>
    %303 = arith.index_cast %c4_i32_172 : i32 to index
    %c0_177 = arith.constant 0 : index
    %c0_178 = arith.constant 0 : index
    %304 = vector.load %arg16[%303, %c0_177, %c0_178] : memref<8x8x128xf32, #tpu.memory_space<vmem>>, vector<1x8x128xf32>
    %305 = vector.shape_cast %304 : vector<1x8x128xf32> to vector<8x128xf32>
    %cst_179 = arith.constant dense<0.000000e+00> : vector<8x128xf32>
    %306 = tpu.matmul %301, %2, %cst_179 {dimension_numbers = #tpu.dot_dimension_numbers<[1], [0], [0], [1], [0, 0, 1, 1], [], []>} : vector<8x32xf32>, vector<32x128xf32>, vector<8x128xf32> -> vector<8x128xf32>
    %307 = arith.addf %305, %306 : vector<8x128xf32>
    %308 = vector.extract_strided_slice %307 {offsets = [0, 0], sizes = [8, 32], strides = [1, 1]} : vector<8x128xf32> to vector<8x32xf32>
    %cst_180 = arith.constant 0.000000e+00 : f32
    %309 = vector.broadcast %cst_180 : f32 to vector<8x32xf32>
    %310 = arith.subf %309, %308 : vector<8x32xf32>
    %311 = math.exp %310 : vector<8x32xf32>
    %cst_181 = arith.constant 1.000000e+00 : f32
    %312 = vector.broadcast %cst_181 : f32 to vector<8x32xf32>
    %313 = arith.addf %312, %311 : vector<8x32xf32>
    %cst_182 = arith.constant 1.000000e+00 : f32
    %314 = vector.broadcast %cst_182 : f32 to vector<8x32xf32>
    %315 = arith.divf %314, %313 : vector<8x32xf32>
    %316 = vector.extract_strided_slice %307 {offsets = [0, 32], sizes = [8, 32], strides = [1, 1]} : vector<8x128xf32> to vector<8x32xf32>
    %cst_183 = arith.constant 0.000000e+00 : f32
    %317 = vector.broadcast %cst_183 : f32 to vector<8x32xf32>
    %318 = arith.subf %317, %316 : vector<8x32xf32>
    %319 = math.exp %318 : vector<8x32xf32>
    %cst_184 = arith.constant 1.000000e+00 : f32
    %320 = vector.broadcast %cst_184 : f32 to vector<8x32xf32>
    %321 = arith.addf %320, %319 : vector<8x32xf32>
    %cst_185 = arith.constant 1.000000e+00 : f32
    %322 = vector.broadcast %cst_185 : f32 to vector<8x32xf32>
    %323 = arith.divf %322, %321 : vector<8x32xf32>
    %324 = vector.extract_strided_slice %307 {offsets = [0, 64], sizes = [8, 32], strides = [1, 1]} : vector<8x128xf32> to vector<8x32xf32>
    %325 = math.tanh %324 : vector<8x32xf32>
    %326 = vector.extract_strided_slice %307 {offsets = [0, 96], sizes = [8, 32], strides = [1, 1]} : vector<8x128xf32> to vector<8x32xf32>
    %cst_186 = arith.constant 0.000000e+00 : f32
    %327 = vector.broadcast %cst_186 : f32 to vector<8x32xf32>
    %328 = arith.subf %327, %326 : vector<8x32xf32>
    %329 = math.exp %328 : vector<8x32xf32>
    %cst_187 = arith.constant 1.000000e+00 : f32
    %330 = vector.broadcast %cst_187 : f32 to vector<8x32xf32>
    %331 = arith.addf %330, %329 : vector<8x32xf32>
    %cst_188 = arith.constant 1.000000e+00 : f32
    %332 = vector.broadcast %cst_188 : f32 to vector<8x32xf32>
    %333 = arith.divf %332, %331 : vector<8x32xf32>
    %334 = arith.mulf %323, %302 : vector<8x32xf32>
    %335 = arith.mulf %315, %325 : vector<8x32xf32>
    %336 = arith.addf %334, %335 : vector<8x32xf32>
    %337 = math.tanh %336 : vector<8x32xf32>
    %338 = arith.mulf %333, %337 : vector<8x32xf32>
    %c0_189 = arith.constant 0 : index
    %c0_190 = arith.constant 0 : index
    %339 = vector.load %arg18[%c0_189, %c0_190] : memref<8x32xf32, #tpu.memory_space<vmem>>, vector<8x32xf32>
    tpu.vector_store %arg18[%c0_189, %c0_190], %338 {strides = array<i32>} : memref<8x32xf32, #tpu.memory_space<vmem>>, vector<8x32xf32>,
    %c0_191 = arith.constant 0 : index
    %c0_192 = arith.constant 0 : index
    %340 = vector.load %arg19[%c0_191, %c0_192] : memref<8x32xf32, #tpu.memory_space<vmem>>, vector<8x32xf32>
    tpu.vector_store %arg19[%c0_191, %c0_192], %336 {strides = array<i32>} : memref<8x32xf32, #tpu.memory_space<vmem>>, vector<8x32xf32>,
    %341 = arith.index_cast %c4_i32_172 : i32 to index
    %c0_193 = arith.constant 0 : index
    %c0_194 = arith.constant 0 : index
    %342 = vector.load %arg17[%341, %c0_193, %c0_194] : memref<8x8x32xf32, #tpu.memory_space<vmem>>, vector<1x8x32xf32>
    %343 = vector.shape_cast %342 : vector<1x8x32xf32> to vector<8x32xf32>
    %344 = vector.shape_cast %338 : vector<8x32xf32> to vector<1x8x32xf32>
    tpu.vector_store %arg17[%341, %c0_193, %c0_194], %344 {strides = array<i32>} : memref<8x8x32xf32, #tpu.memory_space<vmem>>, vector<1x8x32xf32>,
    %c5_i32_195 = arith.constant 5 : i32
    %c0_196 = arith.constant 0 : index
    %c0_197 = arith.constant 0 : index
    %345 = vector.load %arg18[%c0_196, %c0_197] : memref<8x32xf32, #tpu.memory_space<vmem>>, vector<8x32xf32>
    %c0_198 = arith.constant 0 : index
    %c0_199 = arith.constant 0 : index
    %346 = vector.load %arg19[%c0_198, %c0_199] : memref<8x32xf32, #tpu.memory_space<vmem>>, vector<8x32xf32>
    %347 = arith.index_cast %c5_i32_195 : i32 to index
    %c0_200 = arith.constant 0 : index
    %c0_201 = arith.constant 0 : index
    %348 = vector.load %arg16[%347, %c0_200, %c0_201] : memref<8x8x128xf32, #tpu.memory_space<vmem>>, vector<1x8x128xf32>
    %349 = vector.shape_cast %348 : vector<1x8x128xf32> to vector<8x128xf32>
    %cst_202 = arith.constant dense<0.000000e+00> : vector<8x128xf32>
    %350 = tpu.matmul %345, %2, %cst_202 {dimension_numbers = #tpu.dot_dimension_numbers<[1], [0], [0], [1], [0, 0, 1, 1], [], []>} : vector<8x32xf32>, vector<32x128xf32>, vector<8x128xf32> -> vector<8x128xf32>
    %351 = arith.addf %349, %350 : vector<8x128xf32>
    %352 = vector.extract_strided_slice %351 {offsets = [0, 0], sizes = [8, 32], strides = [1, 1]} : vector<8x128xf32> to vector<8x32xf32>
    %cst_203 = arith.constant 0.000000e+00 : f32
    %353 = vector.broadcast %cst_203 : f32 to vector<8x32xf32>
    %354 = arith.subf %353, %352 : vector<8x32xf32>
    %355 = math.exp %354 : vector<8x32xf32>
    %cst_204 = arith.constant 1.000000e+00 : f32
    %356 = vector.broadcast %cst_204 : f32 to vector<8x32xf32>
    %357 = arith.addf %356, %355 : vector<8x32xf32>
    %cst_205 = arith.constant 1.000000e+00 : f32
    %358 = vector.broadcast %cst_205 : f32 to vector<8x32xf32>
    %359 = arith.divf %358, %357 : vector<8x32xf32>
    %360 = vector.extract_strided_slice %351 {offsets = [0, 32], sizes = [8, 32], strides = [1, 1]} : vector<8x128xf32> to vector<8x32xf32>
    %cst_206 = arith.constant 0.000000e+00 : f32
    %361 = vector.broadcast %cst_206 : f32 to vector<8x32xf32>
    %362 = arith.subf %361, %360 : vector<8x32xf32>
    %363 = math.exp %362 : vector<8x32xf32>
    %cst_207 = arith.constant 1.000000e+00 : f32
    %364 = vector.broadcast %cst_207 : f32 to vector<8x32xf32>
    %365 = arith.addf %364, %363 : vector<8x32xf32>
    %cst_208 = arith.constant 1.000000e+00 : f32
    %366 = vector.broadcast %cst_208 : f32 to vector<8x32xf32>
    %367 = arith.divf %366, %365 : vector<8x32xf32>
    %368 = vector.extract_strided_slice %351 {offsets = [0, 64], sizes = [8, 32], strides = [1, 1]} : vector<8x128xf32> to vector<8x32xf32>
    %369 = math.tanh %368 : vector<8x32xf32>
    %370 = vector.extract_strided_slice %351 {offsets = [0, 96], sizes = [8, 32], strides = [1, 1]} : vector<8x128xf32> to vector<8x32xf32>
    %cst_209 = arith.constant 0.000000e+00 : f32
    %371 = vector.broadcast %cst_209 : f32 to vector<8x32xf32>
    %372 = arith.subf %371, %370 : vector<8x32xf32>
    %373 = math.exp %372 : vector<8x32xf32>
    %cst_210 = arith.constant 1.000000e+00 : f32
    %374 = vector.broadcast %cst_210 : f32 to vector<8x32xf32>
    %375 = arith.addf %374, %373 : vector<8x32xf32>
    %cst_211 = arith.constant 1.000000e+00 : f32
    %376 = vector.broadcast %cst_211 : f32 to vector<8x32xf32>
    %377 = arith.divf %376, %375 : vector<8x32xf32>
    %378 = arith.mulf %367, %346 : vector<8x32xf32>
    %379 = arith.mulf %359, %369 : vector<8x32xf32>
    %380 = arith.addf %378, %379 : vector<8x32xf32>
    %381 = math.tanh %380 : vector<8x32xf32>
    %382 = arith.mulf %377, %381 : vector<8x32xf32>
    %c0_212 = arith.constant 0 : index
    %c0_213 = arith.constant 0 : index
    %383 = vector.load %arg18[%c0_212, %c0_213] : memref<8x32xf32, #tpu.memory_space<vmem>>, vector<8x32xf32>
    tpu.vector_store %arg18[%c0_212, %c0_213], %382 {strides = array<i32>} : memref<8x32xf32, #tpu.memory_space<vmem>>, vector<8x32xf32>,
    %c0_214 = arith.constant 0 : index
    %c0_215 = arith.constant 0 : index
    %384 = vector.load %arg19[%c0_214, %c0_215] : memref<8x32xf32, #tpu.memory_space<vmem>>, vector<8x32xf32>
    tpu.vector_store %arg19[%c0_214, %c0_215], %380 {strides = array<i32>} : memref<8x32xf32, #tpu.memory_space<vmem>>, vector<8x32xf32>,
    %385 = arith.index_cast %c5_i32_195 : i32 to index
    %c0_216 = arith.constant 0 : index
    %c0_217 = arith.constant 0 : index
    %386 = vector.load %arg17[%385, %c0_216, %c0_217] : memref<8x8x32xf32, #tpu.memory_space<vmem>>, vector<1x8x32xf32>
    %387 = vector.shape_cast %386 : vector<1x8x32xf32> to vector<8x32xf32>
    %388 = vector.shape_cast %382 : vector<8x32xf32> to vector<1x8x32xf32>
    tpu.vector_store %arg17[%385, %c0_216, %c0_217], %388 {strides = array<i32>} : memref<8x8x32xf32, #tpu.memory_space<vmem>>, vector<1x8x32xf32>,
    %c6_i32_218 = arith.constant 6 : i32
    %c0_219 = arith.constant 0 : index
    %c0_220 = arith.constant 0 : index
    %389 = vector.load %arg18[%c0_219, %c0_220] : memref<8x32xf32, #tpu.memory_space<vmem>>, vector<8x32xf32>
    %c0_221 = arith.constant 0 : index
    %c0_222 = arith.constant 0 : index
    %390 = vector.load %arg19[%c0_221, %c0_222] : memref<8x32xf32, #tpu.memory_space<vmem>>, vector<8x32xf32>
    %391 = arith.index_cast %c6_i32_218 : i32 to index
    %c0_223 = arith.constant 0 : index
    %c0_224 = arith.constant 0 : index
    %392 = vector.load %arg16[%391, %c0_223, %c0_224] : memref<8x8x128xf32, #tpu.memory_space<vmem>>, vector<1x8x128xf32>
    %393 = vector.shape_cast %392 : vector<1x8x128xf32> to vector<8x128xf32>
    %cst_225 = arith.constant dense<0.000000e+00> : vector<8x128xf32>
    %394 = tpu.matmul %389, %2, %cst_225 {dimension_numbers = #tpu.dot_dimension_numbers<[1], [0], [0], [1], [0, 0, 1, 1], [], []>} : vector<8x32xf32>, vector<32x128xf32>, vector<8x128xf32> -> vector<8x128xf32>
    %395 = arith.addf %393, %394 : vector<8x128xf32>
    %396 = vector.extract_strided_slice %395 {offsets = [0, 0], sizes = [8, 32], strides = [1, 1]} : vector<8x128xf32> to vector<8x32xf32>
    %cst_226 = arith.constant 0.000000e+00 : f32
    %397 = vector.broadcast %cst_226 : f32 to vector<8x32xf32>
    %398 = arith.subf %397, %396 : vector<8x32xf32>
    %399 = math.exp %398 : vector<8x32xf32>
    %cst_227 = arith.constant 1.000000e+00 : f32
    %400 = vector.broadcast %cst_227 : f32 to vector<8x32xf32>
    %401 = arith.addf %400, %399 : vector<8x32xf32>
    %cst_228 = arith.constant 1.000000e+00 : f32
    %402 = vector.broadcast %cst_228 : f32 to vector<8x32xf32>
    %403 = arith.divf %402, %401 : vector<8x32xf32>
    %404 = vector.extract_strided_slice %395 {offsets = [0, 32], sizes = [8, 32], strides = [1, 1]} : vector<8x128xf32> to vector<8x32xf32>
    %cst_229 = arith.constant 0.000000e+00 : f32
    %405 = vector.broadcast %cst_229 : f32 to vector<8x32xf32>
    %406 = arith.subf %405, %404 : vector<8x32xf32>
    %407 = math.exp %406 : vector<8x32xf32>
    %cst_230 = arith.constant 1.000000e+00 : f32
    %408 = vector.broadcast %cst_230 : f32 to vector<8x32xf32>
    %409 = arith.addf %408, %407 : vector<8x32xf32>
    %cst_231 = arith.constant 1.000000e+00 : f32
    %410 = vector.broadcast %cst_231 : f32 to vector<8x32xf32>
    %411 = arith.divf %410, %409 : vector<8x32xf32>
    %412 = vector.extract_strided_slice %395 {offsets = [0, 64], sizes = [8, 32], strides = [1, 1]} : vector<8x128xf32> to vector<8x32xf32>
    %413 = math.tanh %412 : vector<8x32xf32>
    %414 = vector.extract_strided_slice %395 {offsets = [0, 96], sizes = [8, 32], strides = [1, 1]} : vector<8x128xf32> to vector<8x32xf32>
    %cst_232 = arith.constant 0.000000e+00 : f32
    %415 = vector.broadcast %cst_232 : f32 to vector<8x32xf32>
    %416 = arith.subf %415, %414 : vector<8x32xf32>
    %417 = math.exp %416 : vector<8x32xf32>
    %cst_233 = arith.constant 1.000000e+00 : f32
    %418 = vector.broadcast %cst_233 : f32 to vector<8x32xf32>
    %419 = arith.addf %418, %417 : vector<8x32xf32>
    %cst_234 = arith.constant 1.000000e+00 : f32
    %420 = vector.broadcast %cst_234 : f32 to vector<8x32xf32>
    %421 = arith.divf %420, %419 : vector<8x32xf32>
    %422 = arith.mulf %411, %390 : vector<8x32xf32>
    %423 = arith.mulf %403, %413 : vector<8x32xf32>
    %424 = arith.addf %422, %423 : vector<8x32xf32>
    %425 = math.tanh %424 : vector<8x32xf32>
    %426 = arith.mulf %421, %425 : vector<8x32xf32>
    %c0_235 = arith.constant 0 : index
    %c0_236 = arith.constant 0 : index
    %427 = vector.load %arg18[%c0_235, %c0_236] : memref<8x32xf32, #tpu.memory_space<vmem>>, vector<8x32xf32>
    tpu.vector_store %arg18[%c0_235, %c0_236], %426 {strides = array<i32>} : memref<8x32xf32, #tpu.memory_space<vmem>>, vector<8x32xf32>,
    %c0_237 = arith.constant 0 : index
    %c0_238 = arith.constant 0 : index
    %428 = vector.load %arg19[%c0_237, %c0_238] : memref<8x32xf32, #tpu.memory_space<vmem>>, vector<8x32xf32>
    tpu.vector_store %arg19[%c0_237, %c0_238], %424 {strides = array<i32>} : memref<8x32xf32, #tpu.memory_space<vmem>>, vector<8x32xf32>,
    %429 = arith.index_cast %c6_i32_218 : i32 to index
    %c0_239 = arith.constant 0 : index
    %c0_240 = arith.constant 0 : index
    %430 = vector.load %arg17[%429, %c0_239, %c0_240] : memref<8x8x32xf32, #tpu.memory_space<vmem>>, vector<1x8x32xf32>
    %431 = vector.shape_cast %430 : vector<1x8x32xf32> to vector<8x32xf32>
    %432 = vector.shape_cast %426 : vector<8x32xf32> to vector<1x8x32xf32>
    tpu.vector_store %arg17[%429, %c0_239, %c0_240], %432 {strides = array<i32>} : memref<8x8x32xf32, #tpu.memory_space<vmem>>, vector<1x8x32xf32>,
    %c7_i32_241 = arith.constant 7 : i32
    %c0_242 = arith.constant 0 : index
    %c0_243 = arith.constant 0 : index
    %433 = vector.load %arg18[%c0_242, %c0_243] : memref<8x32xf32, #tpu.memory_space<vmem>>, vector<8x32xf32>
    %c0_244 = arith.constant 0 : index
    %c0_245 = arith.constant 0 : index
    %434 = vector.load %arg19[%c0_244, %c0_245] : memref<8x32xf32, #tpu.memory_space<vmem>>, vector<8x32xf32>
    %435 = arith.index_cast %c7_i32_241 : i32 to index
    %c0_246 = arith.constant 0 : index
    %c0_247 = arith.constant 0 : index
    %436 = vector.load %arg16[%435, %c0_246, %c0_247] : memref<8x8x128xf32, #tpu.memory_space<vmem>>, vector<1x8x128xf32>
    %437 = vector.shape_cast %436 : vector<1x8x128xf32> to vector<8x128xf32>
    %cst_248 = arith.constant dense<0.000000e+00> : vector<8x128xf32>
    %438 = tpu.matmul %433, %2, %cst_248 {dimension_numbers = #tpu.dot_dimension_numbers<[1], [0], [0], [1], [0, 0, 1, 1], [], []>} : vector<8x32xf32>, vector<32x128xf32>, vector<8x128xf32> -> vector<8x128xf32>
    %439 = arith.addf %437, %438 : vector<8x128xf32>
    %440 = vector.extract_strided_slice %439 {offsets = [0, 0], sizes = [8, 32], strides = [1, 1]} : vector<8x128xf32> to vector<8x32xf32>
    %cst_249 = arith.constant 0.000000e+00 : f32
    %441 = vector.broadcast %cst_249 : f32 to vector<8x32xf32>
    %442 = arith.subf %441, %440 : vector<8x32xf32>
    %443 = math.exp %442 : vector<8x32xf32>
    %cst_250 = arith.constant 1.000000e+00 : f32
    %444 = vector.broadcast %cst_250 : f32 to vector<8x32xf32>
    %445 = arith.addf %444, %443 : vector<8x32xf32>
    %cst_251 = arith.constant 1.000000e+00 : f32
    %446 = vector.broadcast %cst_251 : f32 to vector<8x32xf32>
    %447 = arith.divf %446, %445 : vector<8x32xf32>
    %448 = vector.extract_strided_slice %439 {offsets = [0, 32], sizes = [8, 32], strides = [1, 1]} : vector<8x128xf32> to vector<8x32xf32>
    %cst_252 = arith.constant 0.000000e+00 : f32
    %449 = vector.broadcast %cst_252 : f32 to vector<8x32xf32>
    %450 = arith.subf %449, %448 : vector<8x32xf32>
    %451 = math.exp %450 : vector<8x32xf32>
    %cst_253 = arith.constant 1.000000e+00 : f32
    %452 = vector.broadcast %cst_253 : f32 to vector<8x32xf32>
    %453 = arith.addf %452, %451 : vector<8x32xf32>
    %cst_254 = arith.constant 1.000000e+00 : f32
    %454 = vector.broadcast %cst_254 : f32 to vector<8x32xf32>
    %455 = arith.divf %454, %453 : vector<8x32xf32>
    %456 = vector.extract_strided_slice %439 {offsets = [0, 64], sizes = [8, 32], strides = [1, 1]} : vector<8x128xf32> to vector<8x32xf32>
    %457 = math.tanh %456 : vector<8x32xf32>
    %458 = vector.extract_strided_slice %439 {offsets = [0, 96], sizes = [8, 32], strides = [1, 1]} : vector<8x128xf32> to vector<8x32xf32>
    %cst_255 = arith.constant 0.000000e+00 : f32
    %459 = vector.broadcast %cst_255 : f32 to vector<8x32xf32>
    %460 = arith.subf %459, %458 : vector<8x32xf32>
    %461 = math.exp %460 : vector<8x32xf32>
    %cst_256 = arith.constant 1.000000e+00 : f32
    %462 = vector.broadcast %cst_256 : f32 to vector<8x32xf32>
    %463 = arith.addf %462, %461 : vector<8x32xf32>
    %cst_257 = arith.constant 1.000000e+00 : f32
    %464 = vector.broadcast %cst_257 : f32 to vector<8x32xf32>
    %465 = arith.divf %464, %463 : vector<8x32xf32>
    %466 = arith.mulf %455, %434 : vector<8x32xf32>
    %467 = arith.mulf %447, %457 : vector<8x32xf32>
    %468 = arith.addf %466, %467 : vector<8x32xf32>
    %469 = math.tanh %468 : vector<8x32xf32>
    %470 = arith.mulf %465, %469 : vector<8x32xf32>
    %c0_258 = arith.constant 0 : index
    %c0_259 = arith.constant 0 : index
    %471 = vector.load %arg18[%c0_258, %c0_259] : memref<8x32xf32, #tpu.memory_space<vmem>>, vector<8x32xf32>
    tpu.vector_store %arg18[%c0_258, %c0_259], %470 {strides = array<i32>} : memref<8x32xf32, #tpu.memory_space<vmem>>, vector<8x32xf32>,
    %c0_260 = arith.constant 0 : index
    %c0_261 = arith.constant 0 : index
    %472 = vector.load %arg19[%c0_260, %c0_261] : memref<8x32xf32, #tpu.memory_space<vmem>>, vector<8x32xf32>
    tpu.vector_store %arg19[%c0_260, %c0_261], %468 {strides = array<i32>} : memref<8x32xf32, #tpu.memory_space<vmem>>, vector<8x32xf32>,
    %473 = arith.index_cast %c7_i32_241 : i32 to index
    %c0_262 = arith.constant 0 : index
    %c0_263 = arith.constant 0 : index
    %474 = vector.load %arg17[%473, %c0_262, %c0_263] : memref<8x8x32xf32, #tpu.memory_space<vmem>>, vector<1x8x32xf32>
    %475 = vector.shape_cast %474 : vector<1x8x32xf32> to vector<8x32xf32>
    %476 = vector.shape_cast %470 : vector<8x32xf32> to vector<1x8x32xf32>
    tpu.vector_store %arg17[%473, %c0_262, %c0_263], %476 {strides = array<i32>} : memref<8x8x32xf32, #tpu.memory_space<vmem>>, vector<1x8x32xf32>,
    %c8_i32_264 = arith.constant 8 : i32
    %c0_265 = arith.constant 0 : index
    %c0_266 = arith.constant 0 : index
    %477 = vector.load %arg18[%c0_265, %c0_266] : memref<8x32xf32, #tpu.memory_space<vmem>>, vector<8x32xf32>
    %c0_267 = arith.constant 0 : index
    %c0_268 = arith.constant 0 : index
    %478 = vector.load %arg14[%c0_267, %c0_268] : memref<8x32xf32, #tpu.memory_space<vmem>>, vector<8x32xf32>
    tpu.vector_store %arg14[%c0_267, %c0_268], %477 {strides = array<i32>} : memref<8x32xf32, #tpu.memory_space<vmem>>, vector<8x32xf32>,
    %c0_269 = arith.constant 0 : index
    %c0_270 = arith.constant 0 : index
    %479 = vector.load %arg19[%c0_269, %c0_270] : memref<8x32xf32, #tpu.memory_space<vmem>>, vector<8x32xf32>
    %c0_271 = arith.constant 0 : index
    %c0_272 = arith.constant 0 : index
    %480 = vector.load %arg15[%c0_271, %c0_272] : memref<8x32xf32, #tpu.memory_space<vmem>>, vector<8x32xf32>
    tpu.vector_store %arg15[%c0_271, %c0_272], %479 {strides = array<i32>} : memref<8x32xf32, #tpu.memory_space<vmem>>, vector<8x32xf32>,
    %c0_i32_273 = arith.constant 0 : i32
    %481 = arith.index_cast %c0_i32_273 : i32 to index
    %c0_274 = arith.constant 0 : index
    %c0_275 = arith.constant 0 : index
    %482 = vector.load %arg17[%481, %c0_274, %c0_275] : memref<8x8x32xf32, #tpu.memory_space<vmem>>, vector<1x8x32xf32>
    %483 = vector.shape_cast %482 : vector<1x8x32xf32> to vector<8x32xf32>
    %cst_276 = arith.constant dense<0.000000e+00> : vector<8x256xf32>
    %484 = tpu.matmul %483, %3, %cst_276 {dimension_numbers = #tpu.dot_dimension_numbers<[1], [0], [0], [1], [0, 0, 1, 1], [], []>} : vector<8x32xf32>, vector<32x256xf32>, vector<8x256xf32> -> vector<8x256xf32>
    %485 = arith.addf %484, %13 : vector<8x256xf32>
    %cst_277 = arith.constant 0.000000e+00 : f32
    %486 = vector.broadcast %cst_277 : f32 to vector<8x256xf32>
    %487 = arith.maximumf %485, %486 : vector<8x256xf32>
    %cst_278 = arith.constant dense<0.000000e+00> : vector<8x128xf32>
    %488 = tpu.matmul %487, %4, %cst_278 {dimension_numbers = #tpu.dot_dimension_numbers<[1], [0], [0], [1], [0, 0, 1, 1], [], []>} : vector<8x256xf32>, vector<256x128xf32>, vector<8x128xf32> -> vector<8x128xf32>
    %489 = arith.addf %488, %16 : vector<8x128xf32>
    %cst_279 = arith.constant 0.000000e+00 : f32
    %490 = vector.broadcast %cst_279 : f32 to vector<8x128xf32>
    %491 = arith.maximumf %489, %490 : vector<8x128xf32>
    %492 = arith.index_cast %c0_i32_273 : i32 to index
    %c0_280 = arith.constant 0 : index
    %c0_281 = arith.constant 0 : index
    %493 = vector.load %arg13[%492, %c0_280, %c0_281] : memref<8x8x128xf32, #tpu.memory_space<vmem>>, vector<1x8x128xf32>
    %494 = vector.shape_cast %493 : vector<1x8x128xf32> to vector<8x128xf32>
    %495 = vector.shape_cast %491 : vector<8x128xf32> to vector<1x8x128xf32>
    tpu.vector_store %arg13[%492, %c0_280, %c0_281], %495 {strides = array<i32>} : memref<8x8x128xf32, #tpu.memory_space<vmem>>, vector<1x8x128xf32>,
    %c1_i32_282 = arith.constant 1 : i32
    %496 = arith.index_cast %c1_i32_282 : i32 to index
    %c0_283 = arith.constant 0 : index
    %c0_284 = arith.constant 0 : index
    %497 = vector.load %arg17[%496, %c0_283, %c0_284] : memref<8x8x32xf32, #tpu.memory_space<vmem>>, vector<1x8x32xf32>
    %498 = vector.shape_cast %497 : vector<1x8x32xf32> to vector<8x32xf32>
    %cst_285 = arith.constant dense<0.000000e+00> : vector<8x256xf32>
    %499 = tpu.matmul %498, %3, %cst_285 {dimension_numbers = #tpu.dot_dimension_numbers<[1], [0], [0], [1], [0, 0, 1, 1], [], []>} : vector<8x32xf32>, vector<32x256xf32>, vector<8x256xf32> -> vector<8x256xf32>
    %500 = arith.addf %499, %13 : vector<8x256xf32>
    %cst_286 = arith.constant 0.000000e+00 : f32
    %501 = vector.broadcast %cst_286 : f32 to vector<8x256xf32>
    %502 = arith.maximumf %500, %501 : vector<8x256xf32>
    %cst_287 = arith.constant dense<0.000000e+00> : vector<8x128xf32>
    %503 = tpu.matmul %502, %4, %cst_287 {dimension_numbers = #tpu.dot_dimension_numbers<[1], [0], [0], [1], [0, 0, 1, 1], [], []>} : vector<8x256xf32>, vector<256x128xf32>, vector<8x128xf32> -> vector<8x128xf32>
    %504 = arith.addf %503, %16 : vector<8x128xf32>
    %cst_288 = arith.constant 0.000000e+00 : f32
    %505 = vector.broadcast %cst_288 : f32 to vector<8x128xf32>
    %506 = arith.maximumf %504, %505 : vector<8x128xf32>
    %507 = arith.index_cast %c1_i32_282 : i32 to index
    %c0_289 = arith.constant 0 : index
    %c0_290 = arith.constant 0 : index
    %508 = vector.load %arg13[%507, %c0_289, %c0_290] : memref<8x8x128xf32, #tpu.memory_space<vmem>>, vector<1x8x128xf32>
    %509 = vector.shape_cast %508 : vector<1x8x128xf32> to vector<8x128xf32>
    %510 = vector.shape_cast %506 : vector<8x128xf32> to vector<1x8x128xf32>
    tpu.vector_store %arg13[%507, %c0_289, %c0_290], %510 {strides = array<i32>} : memref<8x8x128xf32, #tpu.memory_space<vmem>>, vector<1x8x128xf32>,
    %c2_i32_291 = arith.constant 2 : i32
    %511 = arith.index_cast %c2_i32_291 : i32 to index
    %c0_292 = arith.constant 0 : index
    %c0_293 = arith.constant 0 : index
    %512 = vector.load %arg17[%511, %c0_292, %c0_293] : memref<8x8x32xf32, #tpu.memory_space<vmem>>, vector<1x8x32xf32>
    %513 = vector.shape_cast %512 : vector<1x8x32xf32> to vector<8x32xf32>
    %cst_294 = arith.constant dense<0.000000e+00> : vector<8x256xf32>
    %514 = tpu.matmul %513, %3, %cst_294 {dimension_numbers = #tpu.dot_dimension_numbers<[1], [0], [0], [1], [0, 0, 1, 1], [], []>} : vector<8x32xf32>, vector<32x256xf32>, vector<8x256xf32> -> vector<8x256xf32>
    %515 = arith.addf %514, %13 : vector<8x256xf32>
    %cst_295 = arith.constant 0.000000e+00 : f32
    %516 = vector.broadcast %cst_295 : f32 to vector<8x256xf32>
    %517 = arith.maximumf %515, %516 : vector<8x256xf32>
    %cst_296 = arith.constant dense<0.000000e+00> : vector<8x128xf32>
    %518 = tpu.matmul %517, %4, %cst_296 {dimension_numbers = #tpu.dot_dimension_numbers<[1], [0], [0], [1], [0, 0, 1, 1], [], []>} : vector<8x256xf32>, vector<256x128xf32>, vector<8x128xf32> -> vector<8x128xf32>
    %519 = arith.addf %518, %16 : vector<8x128xf32>
    %cst_297 = arith.constant 0.000000e+00 : f32
    %520 = vector.broadcast %cst_297 : f32 to vector<8x128xf32>
    %521 = arith.maximumf %519, %520 : vector<8x128xf32>
    %522 = arith.index_cast %c2_i32_291 : i32 to index
    %c0_298 = arith.constant 0 : index
    %c0_299 = arith.constant 0 : index
    %523 = vector.load %arg13[%522, %c0_298, %c0_299] : memref<8x8x128xf32, #tpu.memory_space<vmem>>, vector<1x8x128xf32>
    %524 = vector.shape_cast %523 : vector<1x8x128xf32> to vector<8x128xf32>
    %525 = vector.shape_cast %521 : vector<8x128xf32> to vector<1x8x128xf32>
    tpu.vector_store %arg13[%522, %c0_298, %c0_299], %525 {strides = array<i32>} : memref<8x8x128xf32, #tpu.memory_space<vmem>>, vector<1x8x128xf32>,
    %c3_i32_300 = arith.constant 3 : i32
    %526 = arith.index_cast %c3_i32_300 : i32 to index
    %c0_301 = arith.constant 0 : index
    %c0_302 = arith.constant 0 : index
    %527 = vector.load %arg17[%526, %c0_301, %c0_302] : memref<8x8x32xf32, #tpu.memory_space<vmem>>, vector<1x8x32xf32>
    %528 = vector.shape_cast %527 : vector<1x8x32xf32> to vector<8x32xf32>
    %cst_303 = arith.constant dense<0.000000e+00> : vector<8x256xf32>
    %529 = tpu.matmul %528, %3, %cst_303 {dimension_numbers = #tpu.dot_dimension_numbers<[1], [0], [0], [1], [0, 0, 1, 1], [], []>} : vector<8x32xf32>, vector<32x256xf32>, vector<8x256xf32> -> vector<8x256xf32>
    %530 = arith.addf %529, %13 : vector<8x256xf32>
    %cst_304 = arith.constant 0.000000e+00 : f32
    %531 = vector.broadcast %cst_304 : f32 to vector<8x256xf32>
    %532 = arith.maximumf %530, %531 : vector<8x256xf32>
    %cst_305 = arith.constant dense<0.000000e+00> : vector<8x128xf32>
    %533 = tpu.matmul %532, %4, %cst_305 {dimension_numbers = #tpu.dot_dimension_numbers<[1], [0], [0], [1], [0, 0, 1, 1], [], []>} : vector<8x256xf32>, vector<256x128xf32>, vector<8x128xf32> -> vector<8x128xf32>
    %534 = arith.addf %533, %16 : vector<8x128xf32>
    %cst_306 = arith.constant 0.000000e+00 : f32
    %535 = vector.broadcast %cst_306 : f32 to vector<8x128xf32>
    %536 = arith.maximumf %534, %535 : vector<8x128xf32>
    %537 = arith.index_cast %c3_i32_300 : i32 to index
    %c0_307 = arith.constant 0 : index
    %c0_308 = arith.constant 0 : index
    %538 = vector.load %arg13[%537, %c0_307, %c0_308] : memref<8x8x128xf32, #tpu.memory_space<vmem>>, vector<1x8x128xf32>
    %539 = vector.shape_cast %538 : vector<1x8x128xf32> to vector<8x128xf32>
    %540 = vector.shape_cast %536 : vector<8x128xf32> to vector<1x8x128xf32>
    tpu.vector_store %arg13[%537, %c0_307, %c0_308], %540 {strides = array<i32>} : memref<8x8x128xf32, #tpu.memory_space<vmem>>, vector<1x8x128xf32>,
    %c4_i32_309 = arith.constant 4 : i32
    %541 = arith.index_cast %c4_i32_309 : i32 to index
    %c0_310 = arith.constant 0 : index
    %c0_311 = arith.constant 0 : index
    %542 = vector.load %arg17[%541, %c0_310, %c0_311] : memref<8x8x32xf32, #tpu.memory_space<vmem>>, vector<1x8x32xf32>
    %543 = vector.shape_cast %542 : vector<1x8x32xf32> to vector<8x32xf32>
    %cst_312 = arith.constant dense<0.000000e+00> : vector<8x256xf32>
    %544 = tpu.matmul %543, %3, %cst_312 {dimension_numbers = #tpu.dot_dimension_numbers<[1], [0], [0], [1], [0, 0, 1, 1], [], []>} : vector<8x32xf32>, vector<32x256xf32>, vector<8x256xf32> -> vector<8x256xf32>
    %545 = arith.addf %544, %13 : vector<8x256xf32>
    %cst_313 = arith.constant 0.000000e+00 : f32
    %546 = vector.broadcast %cst_313 : f32 to vector<8x256xf32>
    %547 = arith.maximumf %545, %546 : vector<8x256xf32>
    %cst_314 = arith.constant dense<0.000000e+00> : vector<8x128xf32>
    %548 = tpu.matmul %547, %4, %cst_314 {dimension_numbers = #tpu.dot_dimension_numbers<[1], [0], [0], [1], [0, 0, 1, 1], [], []>} : vector<8x256xf32>, vector<256x128xf32>, vector<8x128xf32> -> vector<8x128xf32>
    %549 = arith.addf %548, %16 : vector<8x128xf32>
    %cst_315 = arith.constant 0.000000e+00 : f32
    %550 = vector.broadcast %cst_315 : f32 to vector<8x128xf32>
    %551 = arith.maximumf %549, %550 : vector<8x128xf32>
    %552 = arith.index_cast %c4_i32_309 : i32 to index
    %c0_316 = arith.constant 0 : index
    %c0_317 = arith.constant 0 : index
    %553 = vector.load %arg13[%552, %c0_316, %c0_317] : memref<8x8x128xf32, #tpu.memory_space<vmem>>, vector<1x8x128xf32>
    %554 = vector.shape_cast %553 : vector<1x8x128xf32> to vector<8x128xf32>
    %555 = vector.shape_cast %551 : vector<8x128xf32> to vector<1x8x128xf32>
    tpu.vector_store %arg13[%552, %c0_316, %c0_317], %555 {strides = array<i32>} : memref<8x8x128xf32, #tpu.memory_space<vmem>>, vector<1x8x128xf32>,
    %c5_i32_318 = arith.constant 5 : i32
    %556 = arith.index_cast %c5_i32_318 : i32 to index
    %c0_319 = arith.constant 0 : index
    %c0_320 = arith.constant 0 : index
    %557 = vector.load %arg17[%556, %c0_319, %c0_320] : memref<8x8x32xf32, #tpu.memory_space<vmem>>, vector<1x8x32xf32>
    %558 = vector.shape_cast %557 : vector<1x8x32xf32> to vector<8x32xf32>
    %cst_321 = arith.constant dense<0.000000e+00> : vector<8x256xf32>
    %559 = tpu.matmul %558, %3, %cst_321 {dimension_numbers = #tpu.dot_dimension_numbers<[1], [0], [0], [1], [0, 0, 1, 1], [], []>} : vector<8x32xf32>, vector<32x256xf32>, vector<8x256xf32> -> vector<8x256xf32>
    %560 = arith.addf %559, %13 : vector<8x256xf32>
    %cst_322 = arith.constant 0.000000e+00 : f32
    %561 = vector.broadcast %cst_322 : f32 to vector<8x256xf32>
    %562 = arith.maximumf %560, %561 : vector<8x256xf32>
    %cst_323 = arith.constant dense<0.000000e+00> : vector<8x128xf32>
    %563 = tpu.matmul %562, %4, %cst_323 {dimension_numbers = #tpu.dot_dimension_numbers<[1], [0], [0], [1], [0, 0, 1, 1], [], []>} : vector<8x256xf32>, vector<256x128xf32>, vector<8x128xf32> -> vector<8x128xf32>
    %564 = arith.addf %563, %16 : vector<8x128xf32>
    %cst_324 = arith.constant 0.000000e+00 : f32
    %565 = vector.broadcast %cst_324 : f32 to vector<8x128xf32>
    %566 = arith.maximumf %564, %565 : vector<8x128xf32>
    %567 = arith.index_cast %c5_i32_318 : i32 to index
    %c0_325 = arith.constant 0 : index
    %c0_326 = arith.constant 0 : index
    %568 = vector.load %arg13[%567, %c0_325, %c0_326] : memref<8x8x128xf32, #tpu.memory_space<vmem>>, vector<1x8x128xf32>
    %569 = vector.shape_cast %568 : vector<1x8x128xf32> to vector<8x128xf32>
    %570 = vector.shape_cast %566 : vector<8x128xf32> to vector<1x8x128xf32>
    tpu.vector_store %arg13[%567, %c0_325, %c0_326], %570 {strides = array<i32>} : memref<8x8x128xf32, #tpu.memory_space<vmem>>, vector<1x8x128xf32>,
    %c6_i32_327 = arith.constant 6 : i32
    %571 = arith.index_cast %c6_i32_327 : i32 to index
    %c0_328 = arith.constant 0 : index
    %c0_329 = arith.constant 0 : index
    %572 = vector.load %arg17[%571, %c0_328, %c0_329] : memref<8x8x32xf32, #tpu.memory_space<vmem>>, vector<1x8x32xf32>
    %573 = vector.shape_cast %572 : vector<1x8x32xf32> to vector<8x32xf32>
    %cst_330 = arith.constant dense<0.000000e+00> : vector<8x256xf32>
    %574 = tpu.matmul %573, %3, %cst_330 {dimension_numbers = #tpu.dot_dimension_numbers<[1], [0], [0], [1], [0, 0, 1, 1], [], []>} : vector<8x32xf32>, vector<32x256xf32>, vector<8x256xf32> -> vector<8x256xf32>
    %575 = arith.addf %574, %13 : vector<8x256xf32>
    %cst_331 = arith.constant 0.000000e+00 : f32
    %576 = vector.broadcast %cst_331 : f32 to vector<8x256xf32>
    %577 = arith.maximumf %575, %576 : vector<8x256xf32>
    %cst_332 = arith.constant dense<0.000000e+00> : vector<8x128xf32>
    %578 = tpu.matmul %577, %4, %cst_332 {dimension_numbers = #tpu.dot_dimension_numbers<[1], [0], [0], [1], [0, 0, 1, 1], [], []>} : vector<8x256xf32>, vector<256x128xf32>, vector<8x128xf32> -> vector<8x128xf32>
    %579 = arith.addf %578, %16 : vector<8x128xf32>
    %cst_333 = arith.constant 0.000000e+00 : f32
    %580 = vector.broadcast %cst_333 : f32 to vector<8x128xf32>
    %581 = arith.maximumf %579, %580 : vector<8x128xf32>
    %582 = arith.index_cast %c6_i32_327 : i32 to index
    %c0_334 = arith.constant 0 : index
    %c0_335 = arith.constant 0 : index
    %583 = vector.load %arg13[%582, %c0_334, %c0_335] : memref<8x8x128xf32, #tpu.memory_space<vmem>>, vector<1x8x128xf32>
    %584 = vector.shape_cast %583 : vector<1x8x128xf32> to vector<8x128xf32>
    %585 = vector.shape_cast %581 : vector<8x128xf32> to vector<1x8x128xf32>
    tpu.vector_store %arg13[%582, %c0_334, %c0_335], %585 {strides = array<i32>} : memref<8x8x128xf32, #tpu.memory_space<vmem>>, vector<1x8x128xf32>,
    %c7_i32_336 = arith.constant 7 : i32
    %586 = arith.index_cast %c7_i32_336 : i32 to index
    %c0_337 = arith.constant 0 : index
    %c0_338 = arith.constant 0 : index
    %587 = vector.load %arg17[%586, %c0_337, %c0_338] : memref<8x8x32xf32, #tpu.memory_space<vmem>>, vector<1x8x32xf32>
    %588 = vector.shape_cast %587 : vector<1x8x32xf32> to vector<8x32xf32>
    %cst_339 = arith.constant dense<0.000000e+00> : vector<8x256xf32>
    %589 = tpu.matmul %588, %3, %cst_339 {dimension_numbers = #tpu.dot_dimension_numbers<[1], [0], [0], [1], [0, 0, 1, 1], [], []>} : vector<8x32xf32>, vector<32x256xf32>, vector<8x256xf32> -> vector<8x256xf32>
    %590 = arith.addf %589, %13 : vector<8x256xf32>
    %cst_340 = arith.constant 0.000000e+00 : f32
    %591 = vector.broadcast %cst_340 : f32 to vector<8x256xf32>
    %592 = arith.maximumf %590, %591 : vector<8x256xf32>
    %cst_341 = arith.constant dense<0.000000e+00> : vector<8x128xf32>
    %593 = tpu.matmul %592, %4, %cst_341 {dimension_numbers = #tpu.dot_dimension_numbers<[1], [0], [0], [1], [0, 0, 1, 1], [], []>} : vector<8x256xf32>, vector<256x128xf32>, vector<8x128xf32> -> vector<8x128xf32>
    %594 = arith.addf %593, %16 : vector<8x128xf32>
    %cst_342 = arith.constant 0.000000e+00 : f32
    %595 = vector.broadcast %cst_342 : f32 to vector<8x128xf32>
    %596 = arith.maximumf %594, %595 : vector<8x128xf32>
    %597 = arith.index_cast %c7_i32_336 : i32 to index
    %c0_343 = arith.constant 0 : index
    %c0_344 = arith.constant 0 : index
    %598 = vector.load %arg13[%597, %c0_343, %c0_344] : memref<8x8x128xf32, #tpu.memory_space<vmem>>, vector<1x8x128xf32>
    %599 = vector.shape_cast %598 : vector<1x8x128xf32> to vector<8x128xf32>
    %600 = vector.shape_cast %596 : vector<8x128xf32> to vector<1x8x128xf32>
    tpu.vector_store %arg13[%597, %c0_343, %c0_344], %600 {strides = array<i32>} : memref<8x8x128xf32, #tpu.memory_space<vmem>>, vector<1x8x128xf32>,
    %c8_i32_345 = arith.constant 8 : i32
    return
  }
  func.func @transform_0(%arg0: i32) -> (i32, i32, i32) {
    %c0_i32 = arith.constant 0 : i32
    %c0_i32_0 = arith.constant 0 : i32
    %c0_i32_1 = arith.constant 0 : i32
    return %c0_i32, %arg0, %c0_i32_0 : i32, i32, i32
  }
  func.func @transform_1(%arg0: i32) -> (i32, i32) {
    %c0_i32 = arith.constant 0 : i32
    %c0_i32_0 = arith.constant 0 : i32
    return %arg0, %c0_i32 : i32, i32
  }
  func.func @transform_2(%arg0: i32) -> (i32, i32) {
    %c0_i32 = arith.constant 0 : i32
    %c0_i32_0 = arith.constant 0 : i32
    return %arg0, %c0_i32 : i32, i32
  }
  func.func @transform_3(%arg0: i32) -> (i32, i32) {
    %c0_i32 = arith.constant 0 : i32
    %c0_i32_0 = arith.constant 0 : i32
    %c0_i32_1 = arith.constant 0 : i32
    return %c0_i32, %c0_i32_0 : i32, i32
  }
  func.func @transform_4(%arg0: i32) -> (i32, i32) {
    %c0_i32 = arith.constant 0 : i32
    %c0_i32_0 = arith.constant 0 : i32
    %c0_i32_1 = arith.constant 0 : i32
    return %c0_i32, %c0_i32_0 : i32, i32
  }
  func.func @transform_5(%arg0: i32) -> (i32, i32) {
    %c0_i32 = arith.constant 0 : i32
    %c0_i32_0 = arith.constant 0 : i32
    %c0_i32_1 = arith.constant 0 : i32
    return %c0_i32, %c0_i32_0 : i32, i32
  }
  func.func @transform_6(%arg0: i32) -> (i32, i32) {
    %c0_i32 = arith.constant 0 : i32
    %c0_i32_0 = arith.constant 0 : i32
    %c0_i32_1 = arith.constant 0 : i32
    return %c0_i32, %c0_i32_0 : i32, i32
  }
  func.func @transform_7(%arg0: i32) -> (i32, i32) {
    %c0_i32 = arith.constant 0 : i32
    %c0_i32_0 = arith.constant 0 : i32
    %c0_i32_1 = arith.constant 0 : i32
    return %c0_i32, %c0_i32_0 : i32, i32
  }
  func.func @transform_8(%arg0: i32) -> (i32, i32) {
    %c0_i32 = arith.constant 0 : i32
    %c0_i32_0 = arith.constant 0 : i32
    %c0_i32_1 = arith.constant 0 : i32
    return %c0_i32, %c0_i32_0 : i32, i32
  }
  func.func @transform_9(%arg0: i32) -> (i32, i32) {
    %c0_i32 = arith.constant 0 : i32
    %c0_i32_0 = arith.constant 0 : i32
    %c0_i32_1 = arith.constant 0 : i32
    return %c0_i32, %c0_i32_0 : i32, i32
  }
  func.func @transform_10(%arg0: i32) -> (i32, i32) {
    %c0_i32 = arith.constant 0 : i32
    %c0_i32_0 = arith.constant 0 : i32
    %c0_i32_1 = arith.constant 0 : i32
    return %c0_i32, %c0_i32_0 : i32, i32
  }
  func.func @transform_11(%arg0: i32) -> (i32, i32) {
    %c0_i32 = arith.constant 0 : i32
    %c0_i32_0 = arith.constant 0 : i32
    %c0_i32_1 = arith.constant 0 : i32
    return %c0_i32, %c0_i32_0 : i32, i32
  }
  func.func @transform_12(%arg0: i32) -> (i32, i32, i32) {
    %c0_i32 = arith.constant 0 : i32
    %c0_i32_0 = arith.constant 0 : i32
    %c0_i32_1 = arith.constant 0 : i32
    return %c0_i32, %arg0, %c0_i32_0 : i32, i32, i32
  }
  func.func @transform_13(%arg0: i32) -> (i32, i32) {
    %c0_i32 = arith.constant 0 : i32
    %c0_i32_0 = arith.constant 0 : i32
    return %arg0, %c0_i32 : i32, i32
  }
  func.func @transform_14(%arg0: i32) -> (i32, i32) {
    %c0_i32 = arith.constant 0 : i32
    %c0_i32_0 = arith.constant 0 : i32
    return %arg0, %c0_i32 : i32, i32
  }
}

</mosaic_0001>

<llo_original>
// kernel: tpu_custom_call.1
$region0: #{tpu_custom_call.1}
  #allocation0 [shape = 'u32[]', space=smem, size = 0x4, offset = 0x4, fixed_abs, tag = 'smem constant byte address 0x4 - core index']
  #allocation1 [shape = 'u32[144,128]{1,0:T(1,128)}', space=vmem, size = 0x12000, scoped, tag = 'internal scratch']
  #allocation2 [shape = 'f32[8,8,128]{2,1,0:T(8,128)}', space=vmem, size = 0x8000, scoped, tag = 'scratch operand']
  #allocation3 [shape = 'f32[8,8,32]{2,1,0:T(8,128)}', space=vmem, size = 0x8000, scoped, tag = 'scratch operand']
  #allocation4 [shape = 'f32[8,32]{1,0:T(8,128)}', space=vmem, size = 0x1000, scoped, tag = 'scratch operand']
  #allocation5 [shape = 'f32[8,32]{1,0:T(8,128)}', space=vmem, size = 0x1000, scoped, tag = 'scratch operand']
  %s0 = inlined_call_operand.hbm [shape: f32[8,8,32], index: 0, kind: input, shape index: {}]
  %s1 = inlined_call_operand.hbm [shape: f32[8,32], index: 1, kind: input, shape index: {}]
  %s2 = inlined_call_operand.hbm [shape: f32[8,32], index: 2, kind: input, shape index: {}]
  %s3 = inlined_call_operand.hbm [shape: f32[32,32], index: 3, kind: input, shape index: {}]
  %s4 = inlined_call_operand.vmem [shape: f32[1,32], index: 4, kind: input, shape index: {}]
  %s5 = inlined_call_operand.hbm [shape: f32[32,128], index: 5, kind: input, shape index: {}]
  %s6 = inlined_call_operand.hbm [shape: f32[32,128], index: 6, kind: input, shape index: {}]
  %s7 = inlined_call_operand.vmem [shape: f32[1,128], index: 7, kind: input, shape index: {}]
  %s8 = inlined_call_operand.hbm [shape: f32[32,256], index: 8, kind: input, shape index: {}]
  %s9 = inlined_call_operand.vmem [shape: f32[1,256], index: 9, kind: input, shape index: {}]
  %s10 = inlined_call_operand.hbm [shape: f32[256,128], index: 10, kind: input, shape index: {}]
  %s11 = inlined_call_operand.vmem [shape: f32[1,128], index: 11, kind: input, shape index: {}]
  %s12 = inlined_call_operand.hbm [shape: f32[8,8,128], index: 12, kind: output, shape index: {0}]
  %s13 = inlined_call_operand.hbm [shape: f32[8,32], index: 13, kind: output, shape index: {1}]
  %s14 = inlined_call_operand.hbm [shape: f32[8,32], index: 14, kind: output, shape index: {2}]
  %15 = xla_tuple %s12, %s13, %s14
  %s16 = sld [smem:[#allocation0]]
  $region106: #{tpu_custom_call.1} parent=0
    _
  %s18 = ssub.s32 1, %s16
  %s19 = scalar_select 0, %s18, %s16
  $region1: #{tpu_custom_call.1} parent=0
    #allocation6 [shape = 'u8[32768]{0}', space=vmem, size = 0x8000, scoped, tag = 'input window, operand 0, single buffered']
    #allocation7 [shape = 's32[1]{0}', space=sflag, size = 0x4, scoped, tag = 'scoped memory for tpu_custom_call.1']
    #allocation8 [shape = 's32[1]{0}', space=sflag, size = 0x4, scoped, tag = 'scoped memory for tpu_custom_call.1']
    #allocation9 [shape = 'u8[4096]{0}', space=vmem, size = 0x1000, scoped, tag = 'input window, operand 1, single buffered']
    #allocation10 [shape = 's32[1]{0}', space=sflag, size = 0x4, scoped, tag = 'scoped memory for tpu_custom_call.1']
    #allocation11 [shape = 'u8[4096]{0}', space=vmem, size = 0x1000, scoped, tag = 'input window, operand 2, single buffered']
    #allocation12 [shape = 'u8[16384]{0}', space=vmem, size = 0x4000, scoped, tag = 'input window, operand 3, single buffered']
    #allocation13 [shape = 's32[1]{0}', space=sflag, size = 0x4, scoped, tag = 'scoped memory for tpu_custom_call.1']
    #allocation14 [shape = 'u8[16384]{0}', space=vmem, size = 0x4000, scoped, tag = 'input window, operand 5, single buffered']
    #allocation15 [shape = 'u8[16384]{0}', space=vmem, size = 0x4000, scoped, tag = 'input window, operand 6, single buffered']
    #allocation16 [shape = 's32[1]{0}', space=sflag, size = 0x4, scoped, tag = 'scoped memory for tpu_custom_call.1']
    #allocation17 [shape = 'u8[32768]{0}', space=vmem, size = 0x8000, scoped, tag = 'input window, operand 8, single buffered']
    #allocation18 [shape = 'u8[131072]{0}', space=vmem, size = 0x20000, scoped, tag = 'input window, operand 10, single buffered']
    #allocation19 [shape = 's32[1]{0}', space=sflag, size = 0x4, scoped, tag = 'scoped memory for tpu_custom_call.1']
    #allocation20 [shape = 'u8[32768]{0}', space=vmem, size = 0x8000, scoped, tag = 'output window, operand 0, single buffered']
    #allocation21 [shape = 'u8[4096]{0}', space=vmem, size = 0x1000, scoped, tag = 'output window, operand 1, single buffered']
    #allocation22 [shape = 's32[1]{0}', space=sflag, size = 0x4, scoped, tag = 'scoped memory for tpu_custom_call.1']
    #allocation23 [shape = 'u8[4096]{0}', space=vmem, size = 0x1000, scoped, tag = 'output window, operand 2, single buffered']
    %20 = vsyncpa [#allocation7], 0
    %21 = vsyncpa [#allocation10], 0
    %22 = vsyncpa [#allocation13], 0
    %23 = vsyncpa [#allocation16], 0
    %24 = vsyncpa [#allocation19], 0
    %25 = vsyncpa [#allocation8], 0
    %26 = vsyncpa [#allocation22], 0
    // Predicated region
    $region2: #{tpu_custom_call.1} parent=1 // pred_check
      _
    $region3: #{tpu_custom_call.1} parent=1 // pred_check_branch
      %28 = sbr.rel (0) target = $region5
    $region4: #{tpu_custom_call.1} parent=1 // pred_region
      %s30 = ssub.s32 1024, 1024
      %31 = vsyncadd [#allocation7], %s30
      %s32 = sshll.u32 [#allocation6], 4
      %s33 = int_to_ptr.vmem [resolvable:$true] %s32
      %38 = dma.hbm_to_vmem [thread:$0]  %s0, 1024, %s33, [#allocation7], 128, 128, 8
    $region5: #{tpu_custom_call.1} parent=1 // pred_fallthru
      _
    // Predicated region
    $region6: #{tpu_custom_call.1} parent=1 // pred_check
      _
    $region7: #{tpu_custom_call.1} parent=1 // pred_check_branch
      %40 = sbr.rel (0) target = $region9
    $region8: #{tpu_custom_call.1} parent=1 // pred_region
      %s42 = ssub.s32 128, 128
      %43 = vsyncadd [#allocation10], %s42
      %s45 = sshll.u32 [#allocation9], 4
      %s46 = int_to_ptr.vmem [resolvable:$true] %s45
      %48 = dma.hbm_to_vmem [thread:$0]  %s1, 128, %s46, [#allocation10]
    $region9: #{tpu_custom_call.1} parent=1 // pred_fallthru
      _
    // Predicated region
    $region10: #{tpu_custom_call.1} parent=1 // pred_check
      _
    $region11: #{tpu_custom_call.1} parent=1 // pred_check_branch
      %50 = sbr.rel (0) target = $region13
    $region12: #{tpu_custom_call.1} parent=1 // pred_region
      %s52 = ssub.s32 128, 128
      %53 = vsyncadd [#allocation10], %s52
      %s55 = sshll.u32 [#allocation11], 4
      %s56 = int_to_ptr.vmem [resolvable:$true] %s55
      %58 = dma.hbm_to_vmem [thread:$0]  %s2, 128, %s56, [#allocation10]
    $region13: #{tpu_custom_call.1} parent=1 // pred_fallthru
      _
    // Predicated region
    $region14: #{tpu_custom_call.1} parent=1 // pred_check
      _
    $region15: #{tpu_custom_call.1} parent=1 // pred_check_branch
      %60 = sbr.rel (0) target = $region17
    $region16: #{tpu_custom_call.1} parent=1 // pred_region
      %s62 = ssub.s32 512, 512
      %63 = vsyncadd [#allocation13], %s62
      %s64 = sshll.u32 [#allocation12], 4
      %s65 = int_to_ptr.vmem [resolvable:$true] %s64
      %70 = dma.hbm_to_vmem [thread:$0]  %s3, 512, %s65, [#allocation13], 128, 128, 8
    $region17: #{tpu_custom_call.1} parent=1 // pred_fallthru
      _
    // Predicated region
    $region18: #{tpu_custom_call.1} parent=1 // pred_check
      _
    $region19: #{tpu_custom_call.1} parent=1 // pred_check_branch
      %72 = sbr.rel (0) target = $region21
    $region20: #{tpu_custom_call.1} parent=1 // pred_region
      _
    $region21: #{tpu_custom_call.1} parent=1 // pred_fallthru
      _
    // Predicated region
    $region22: #{tpu_custom_call.1} parent=1 // pred_check
      _
    $region23: #{tpu_custom_call.1} parent=1 // pred_check_branch
      %74 = sbr.rel (0) target = $region25
    $region24: #{tpu_custom_call.1} parent=1 // pred_region
      %s76 = ssub.s32 512, 512
      %77 = vsyncadd [#allocation13], %s76
      %s78 = sshll.u32 [#allocation14], 4
      %s79 = int_to_ptr.vmem [resolvable:$true] %s78
      %84 = dma.hbm_to_vmem [thread:$0]  %s5, 512, %s79, [#allocation13], 128, 128, 8
    $region25: #{tpu_custom_call.1} parent=1 // pred_fallthru
      _
    // Predicated region
    $region26: #{tpu_custom_call.1} parent=1 // pred_check
      _
    $region27: #{tpu_custom_call.1} parent=1 // pred_check_branch
      %86 = sbr.rel (0) target = $region29
    $region28: #{tpu_custom_call.1} parent=1 // pred_region
      %s88 = ssub.s32 512, 512
      %89 = vsyncadd [#allocation16], %s88
      %s90 = sshll.u32 [#allocation15], 4
      %s91 = int_to_ptr.vmem [resolvable:$true] %s90
      %96 = dma.hbm_to_vmem [thread:$0]  %s6, 512, %s91, [#allocation16], 128, 128, 8
    $region29: #{tpu_custom_call.1} parent=1 // pred_fallthru
      _
    // Predicated region
    $region30: #{tpu_custom_call.1} parent=1 // pred_check
      _
    $region31: #{tpu_custom_call.1} parent=1 // pred_check_branch
      %98 = sbr.rel (0) target = $region33
    $region32: #{tpu_custom_call.1} parent=1 // pred_region
      _
    $region33: #{tpu_custom_call.1} parent=1 // pred_fallthru
      _
    // Predicated region
    $region34: #{tpu_custom_call.1} parent=1 // pred_check
      _
    $region35: #{tpu_custom_call.1} parent=1 // pred_check_branch
      %100 = sbr.rel (0) target = $region37
    $region36: #{tpu_custom_call.1} parent=1 // pred_region
      %s102 = ssub.s32 1024, 1024
      %103 = vsyncadd [#allocation16], %s102
      %s104 = sshll.u32 [#allocation17], 4
      %s105 = int_to_ptr.vmem [resolvable:$true] %s104
      %110 = dma.hbm_to_vmem [thread:$0]  %s8, 1024, %s105, [#allocation16], 256, 256, 16
    $region37: #{tpu_custom_call.1} parent=1 // pred_fallthru
      _
    // Predicated region
    $region38: #{tpu_custom_call.1} parent=1 // pred_check
      _
    $region39: #{tpu_custom_call.1} parent=1 // pred_check_branch
      %112 = sbr.rel (0) target = $region41
    $region40: #{tpu_custom_call.1} parent=1 // pred_region
      _
    $region41: #{tpu_custom_call.1} parent=1 // pred_fallthru
      _
    // Predicated region
    $region42: #{tpu_custom_call.1} parent=1 // pred_check
      _
    $region43: #{tpu_custom_call.1} parent=1 // pred_check_branch
      %114 = sbr.rel (0) target = $region45
    $region44: #{tpu_custom_call.1} parent=1 // pred_region
      %s116 = ssub.s32 4096, 4096
      %117 = vsyncadd [#allocation19], %s116
      %s118 = sshll.u32 [#allocation18], 4
      %s119 = int_to_ptr.vmem [resolvable:$true] %s118
      %124 = dma.hbm_to_vmem [thread:$0]  %s10, 4096, %s119, [#allocation19], 128, 128, 8
    $region45: #{tpu_custom_call.1} parent=1 // pred_fallthru
      _
    // Predicated region
    $region46: #{tpu_custom_call.1} parent=1 // pred_check
      _
    $region47: #{tpu_custom_call.1} parent=1 // pred_check_branch
      %126 = sbr.rel (0) target = $region49
    $region48: #{tpu_custom_call.1} parent=1 // pred_region
      _
    $region49: #{tpu_custom_call.1} parent=1 // pred_fallthru
      _
    // Predicated region
    $region50: #{tpu_custom_call.1} parent=1 // pred_check
      _
    $region51: #{tpu_custom_call.1} parent=1 // pred_check_branch
      %128 = sbr.rel (0) target = $region53
    $region52: #{tpu_custom_call.1} parent=1 // pred_region
      %129 = dma.done [#allocation7], 1024
    $region53: #{tpu_custom_call.1} parent=1 // pred_fallthru
      _
    // Predicated region
    $region54: #{tpu_custom_call.1} parent=1 // pred_check
      _
    $region55: #{tpu_custom_call.1} parent=1 // pred_check_branch
      %131 = sbr.rel (0) target = $region57
    $region56: #{tpu_custom_call.1} parent=1 // pred_region
      %132 = dma.done [#allocation10], 128
    $region57: #{tpu_custom_call.1} parent=1 // pred_fallthru
      _
    // Predicated region
    $region58: #{tpu_custom_call.1} parent=1 // pred_check
      _
    $region59: #{tpu_custom_call.1} parent=1 // pred_check_branch
      %134 = sbr.rel (0) target = $region61
    $region60: #{tpu_custom_call.1} parent=1 // pred_region
      %135 = dma.done [#allocation10], 128
    $region61: #{tpu_custom_call.1} parent=1 // pred_fallthru
      _
    // Predicated region
    $region62: #{tpu_custom_call.1} parent=1 // pred_check
      _
    $region63: #{tpu_custom_call.1} parent=1 // pred_check_branch
      %137 = sbr.rel (0) target = $region65
    $region64: #{tpu_custom_call.1} parent=1 // pred_region
      %138 = dma.done [#allocation13], 512
    $region65: #{tpu_custom_call.1} parent=1 // pred_fallthru
      _
    // Predicated region
    $region66: #{tpu_custom_call.1} parent=1 // pred_check
      _
    $region67: #{tpu_custom_call.1} parent=1 // pred_check_branch
      %140 = sbr.rel (0) target = $region69
    $region68: #{tpu_custom_call.1} parent=1 // pred_region
      %141 = dma.done [#allocation13], 512
    $region69: #{tpu_custom_call.1} parent=1 // pred_fallthru
      _
    // Predicated region
    $region70: #{tpu_custom_call.1} parent=1 // pred_check
      _
    $region71: #{tpu_custom_call.1} parent=1 // pred_check_branch
      %143 = sbr.rel (0) target = $region73
    $region72: #{tpu_custom_call.1} parent=1 // pred_region
      %144 = dma.done [#allocation16], 512
    $region73: #{tpu_custom_call.1} parent=1 // pred_fallthru
      _
    // Predicated region
    $region74: #{tpu_custom_call.1} parent=1 // pred_check
      _
    $region75: #{tpu_custom_call.1} parent=1 // pred_check_branch
      %146 = sbr.rel (0) target = $region77
    $region76: #{tpu_custom_call.1} parent=1 // pred_region
      %147 = dma.done [#allocation16], 1024
    $region77: #{tpu_custom_call.1} parent=1 // pred_fallthru
      _
    // Predicated region
    $region78: #{tpu_custom_call.1} parent=1 // pred_check
      _
    $region79: #{tpu_custom_call.1} parent=1 // pred_check_branch
      %149 = sbr.rel (0) target = $region81
    $region80: #{tpu_custom_call.1} parent=1 // pred_region
      %150 = dma.done [#allocation19], 4096
    $region81: #{tpu_custom_call.1} parent=1 // pred_fallthru
      _
    %v151 = vld [vmem:[#allocation12] sm:$0xff]
    %v152 = vld [vmem:[#allocation12 + $0x8] sm:$0xff]
    %v153 = vld [vmem:[#allocation12 + $0x10] sm:$0xff]
    %v154 = vld [vmem:[#allocation12 + $0x18] sm:$0xff]
    %v155 = vld [vmem:[#allocation14] sm:$0xff]
    %v156 = vld [vmem:[#allocation14 + $0x8] sm:$0xff]
    %v157 = vld [vmem:[#allocation14 + $0x10] sm:$0xff]
    %v158 = vld [vmem:[#allocation14 + $0x18] sm:$0xff]
    %v159 = vld [vmem:[#allocation15] sm:$0xff]
    %v160 = vld [vmem:[#allocation15 + $0x8] sm:$0xff]
    %v161 = vld [vmem:[#allocation15 + $0x10] sm:$0xff]
    %v162 = vld [vmem:[#allocation15 + $0x18] sm:$0xff]
    %v163 = vld [vmem:[#allocation17] sm:$0xff]
    %v164 = vld [vmem:[#allocation17 + $0x8] sm:$0xff]
    %v165 = vld [vmem:[#allocation17 + $0x10] sm:$0xff]
    %v166 = vld [vmem:[#allocation17 + $0x18] sm:$0xff]
    %v167 = vld [vmem:[#allocation17 + $0x20] sm:$0xff]
    %v168 = vld [vmem:[#allocation17 + $0x28] sm:$0xff]
    %v169 = vld [vmem:[#allocation17 + $0x30] sm:$0xff]
    %v170 = vld [vmem:[#allocation17 + $0x38] sm:$0xff]
    %v171 = vld [vmem:[#allocation18] sm:$0xff]
    %v172 = vld [vmem:[#allocation18 + $0x8] sm:$0xff]
    %v173 = vld [vmem:[#allocation18 + $0x10] sm:$0xff]
    %v174 = vld [vmem:[#allocation18 + $0x18] sm:$0xff]
    %v175 = vld [vmem:[#allocation18 + $0x20] sm:$0xff]
    %v176 = vld [vmem:[#allocation18 + $0x28] sm:$0xff]
    %v177 = vld [vmem:[#allocation18 + $0x30] sm:$0xff]
    %v178 = vld [vmem:[#allocation18 + $0x38] sm:$0xff]
    %v179 = vld [vmem:[#allocation18 + $0x40] sm:$0xff]
    %v180 = vld [vmem:[#allocation18 + $0x48] sm:$0xff]
    %v181 = vld [vmem:[#allocation18 + $0x50] sm:$0xff]
    %v182 = vld [vmem:[#allocation18 + $0x58] sm:$0xff]
    %v183 = vld [vmem:[#allocation18 + $0x60] sm:$0xff]
    %v184 = vld [vmem:[#allocation18 + $0x68] sm:$0xff]
    %v185 = vld [vmem:[#allocation18 + $0x70] sm:$0xff]
    %v186 = vld [vmem:[#allocation18 + $0x78] sm:$0xff]
    %v187 = vld [vmem:[#allocation18 + $0x80] sm:$0xff]
    %v188 = vld [vmem:[#allocation18 + $0x88] sm:$0xff]
    %v189 = vld [vmem:[#allocation18 + $0x90] sm:$0xff]
    %v190 = vld [vmem:[#allocation18 + $0x98] sm:$0xff]
    %v191 = vld [vmem:[#allocation18 + $0xa0] sm:$0xff]
    %v192 = vld [vmem:[#allocation18 + $0xa8] sm:$0xff]
    %v193 = vld [vmem:[#allocation18 + $0xb0] sm:$0xff]
    %v194 = vld [vmem:[#allocation18 + $0xb8] sm:$0xff]
    %v195 = vld [vmem:[#allocation18 + $0xc0] sm:$0xff]
    %v196 = vld [vmem:[#allocation18 + $0xc8] sm:$0xff]
    %v197 = vld [vmem:[#allocation18 + $0xd0] sm:$0xff]
    %v198 = vld [vmem:[#allocation18 + $0xd8] sm:$0xff]
    %v199 = vld [vmem:[#allocation18 + $0xe0] sm:$0xff]
    %v200 = vld [vmem:[#allocation18 + $0xe8] sm:$0xff]
    %v201 = vld [vmem:[#allocation18 + $0xf0] sm:$0xff]
    %v202 = vld [vmem:[#allocation18 + $0xf8] sm:$0xff]
    %v203 = vld [vmem:[%s4] sm:$0x1]
    %v205 = vlaneseq
    %v206 = vshrl.u32 %v205, 7
    %v207 = vsub.s32 0, %v206
    %v208 = vrot.slane %v203, %v207
    %v210 = vld [vmem:[%s7] sm:$0x1]
    %v212 = vlaneseq
    %v213 = vshrl.u32 %v212, 7
    %v214 = vsub.s32 0, %v213
    %v215 = vrot.slane %v210, %v214
    %v217 = vld [vmem:[%s9] sm:$0x3]
    %v219 = vlaneseq
    %v220 = vshrl.u32 %v219, 7
    %v221 = vsub.s32 0, %v220
    %v222 = vrot.slane %v217, %v221
    %v223 = vlaneseq
    %v224 = vshrl.u32 %v223, 7
    %v225 = vsub.s32 1, %v224
    %v226 = vrot.slane %v217, %v225
    %v229 = vld [vmem:[%s11] sm:$0x1]
    %v231 = vlaneseq
    %v232 = vshrl.u32 %v231, 7
    %v233 = vsub.s32 0, %v232
    %v234 = vrot.slane %v229, %v233
    %v236 = vld [vmem:[#allocation6] sm:$0xff]
    %vm237 = vcmask 261120
    %v239 = vsel %vm237, %v236, 0
    %241 = vmatprep.subr.mxu0 0.0
    %242 = vmatpush1.msra.mxu0 %v151
    %243 = vmatprep.subr.mxu0 0.0
    %244 = vmatpush1.msra.mxu0 %v152
    %245 = vmatprep.subr.mxu0 0.0
    %246 = vmatpush1.msra.mxu0 %v153
    %247 = vmatprep.subr.mxu0 0.0
    %248 = vmatpush1.msra.mxu0 %v154
    %249 = vmatprep.subr.mxu0 0.0
    %250 = vmatpush1.msra.mxu0 0.0
    %251 = vmatprep.subr.mxu0 0.0
    %252 = vmatpush1.msra.mxu0 0.0
    %253 = vmatprep.subr.mxu0 0.0
    %254 = vmatpush1.msra.mxu0 0.0
    %255 = vmatprep.subr.mxu0 0.0
    %256 = vmatpush1.msra.mxu0 0.0
    %257 = vmatprep.subr.mxu0 0.0
    %258 = vmatpush1.msra.mxu0 0.0
    %259 = vmatprep.subr.mxu0 0.0
    %260 = vmatpush1.msra.mxu0 0.0
    %261 = vmatprep.subr.mxu0 0.0
    %262 = vmatpush1.msra.mxu0 0.0
    %263 = vmatprep.subr.mxu0 0.0
    %264 = vmatpush1.msra.mxu0 0.0
    %265 = vmatprep.subr.mxu0 0.0
    %266 = vmatpush1.msra.mxu0 0.0
    %267 = vmatprep.subr.mxu0 0.0
    %268 = vmatpush1.msra.mxu0 0.0
    %269 = vmatprep.subr.mxu0 0.0
    %270 = vmatpush1.msra.mxu0 0.0
    %271 = vmatprep.subr.mxu0 0.0
    %272 = vmatpush1.msra.mxu0 0.0
    %273 = vmatprep.subr.mxu0 0.0
    %274 = vmatpush1.msra.mxu0 0.0
    %275 = vmatprep.subr.mxu0 0.0
    %276 = vmatpush1.msra.mxu0 0.0
    %277 = vmatprep.subr.mxu0 0.0
    %278 = vmatpush1.msra.mxu0 0.0
    %279 = vmatprep.subr.mxu0 0.0
    %280 = vmatpush1.msra.mxu0 0.0
    %281 = vmatprep.subr.mxu0 0.0
    %282 = vmatpush1.msra.mxu0 0.0
    %283 = vmatprep.subr.mxu0 0.0
    %284 = vmatpush1.msra.mxu0 0.0
    %285 = vmatprep.subr.mxu0 0.0
    %286 = vmatpush1.msra.mxu0 0.0
    %287 = vmatprep.subr.mxu0 0.0
    %288 = vmatpush1.msra.mxu0 0.0
    %289 = vmatprep.subr.mxu0 0.0
    %290 = vmatpush1.msra.mxu0 0.0
    %291 = vmatprep.subr.mxu0 0.0
    %292 = vmatpush1.msra.mxu0 0.0
    %293 = vmatprep.subr.mxu0 0.0
    %294 = vmatpush1.msra.mxu0 0.0
    %295 = vmatprep.subr.mxu0 0.0
    %296 = vmatpush1.msra.mxu0 0.0
    %297 = vmatprep.subr.mxu0 0.0
    %298 = vmatpush1.msra.mxu0 0.0
    %299 = vmatprep.subr.mxu0 0.0
    %300 = vmatpush1.msra.mxu0 0.0
    %301 = vmatprep.subr.mxu0 0.0
    %302 = vmatpush1.msra.mxu0 0.0
    %303 = vmatprep.subr.mxu0 0.0
    %304 = vmatpush1.msra.mxu0 0.0
    %305 = vmatprep.mubr.f32.mxu0 0.0
    %306 = vmatmul.mubr.f32.gmra.mrb[0].mxu0 %v239
    %v307 = vpop.f32.mrb[0].mxu0
    %v308 = vadd.f32 %v208, %v307
    %v309 = vpop.f32.mrb[0].mxu0
    %310 = vdwg.mxu0
    %v311 = vmax.f32 %v308, 0.0
    %v313 = vsel %vm237, %v311, 0
    %315 = vmatprep.subr.mxu0 0.0
    %316 = vmatpush1.msra.mxu0 %v155
    %317 = vmatprep.subr.mxu0 0.0
    %318 = vmatpush1.msra.mxu0 %v156
    %319 = vmatprep.subr.mxu0 0.0
    %320 = vmatpush1.msra.mxu0 %v157
    %321 = vmatprep.subr.mxu0 0.0
    %322 = vmatpush1.msra.mxu0 %v158
    %323 = vmatprep.subr.mxu0 0.0
    %324 = vmatpush1.msra.mxu0 0.0
    %325 = vmatprep.subr.mxu0 0.0
    %326 = vmatpush1.msra.mxu0 0.0
    %327 = vmatprep.subr.mxu0 0.0
    %328 = vmatpush1.msra.mxu0 0.0
    %329 = vmatprep.subr.mxu0 0.0
    %330 = vmatpush1.msra.mxu0 0.0
    %331 = vmatprep.subr.mxu0 0.0
    %332 = vmatpush1.msra.mxu0 0.0
    %333 = vmatprep.subr.mxu0 0.0
    %334 = vmatpush1.msra.mxu0 0.0
    %335 = vmatprep.subr.mxu0 0.0
    %336 = vmatpush1.msra.mxu0 0.0
    %337 = vmatprep.subr.mxu0 0.0
    %338 = vmatpush1.msra.mxu0 0.0
    %339 = vmatprep.subr.mxu0 0.0
    %340 = vmatpush1.msra.mxu0 0.0
    %341 = vmatprep.subr.mxu0 0.0
    %342 = vmatpush1.msra.mxu0 0.0
    %343 = vmatprep.subr.mxu0 0.0
    %344 = vmatpush1.msra.mxu0 0.0
    %345 = vmatprep.subr.mxu0 0.0
    %346 = vmatpush1.msra.mxu0 0.0
    %347 = vmatprep.subr.mxu0 0.0
    %348 = vmatpush1.msra.mxu0 0.0
    %349 = vmatprep.subr.mxu0 0.0
    %350 = vmatpush1.msra.mxu0 0.0
    %351 = vmatprep.subr.mxu0 0.0
    %352 = vmatpush1.msra.mxu0 0.0
    %353 = vmatprep.subr.mxu0 0.0
    %354 = vmatpush1.msra.mxu0 0.0
    %355 = vmatprep.subr.mxu0 0.0
    %356 = vmatpush1.msra.mxu0 0.0
    %357 = vmatprep.subr.mxu0 0.0
    %358 = vmatpush1.msra.mxu0 0.0
    %359 = vmatprep.subr.mxu0 0.0
    %360 = vmatpush1.msra.mxu0 0.0
    %361 = vmatprep.subr.mxu0 0.0
    %362 = vmatpush1.msra.mxu0 0.0
    %363 = vmatprep.subr.mxu0 0.0
    %364 = vmatpush1.msra.mxu0 0.0
    %365 = vmatprep.subr.mxu0 0.0
    %366 = vmatpush1.msra.mxu0 0.0
    %367 = vmatprep.subr.mxu0 0.0
    %368 = vmatpush1.msra.mxu0 0.0
    %369 = vmatprep.subr.mxu0 0.0
    %370 = vmatpush1.msra.mxu0 0.0
    %371 = vmatprep.subr.mxu0 0.0
    %372 = vmatpush1.msra.mxu0 0.0
    %373 = vmatprep.subr.mxu0 0.0
    %374 = vmatpush1.msra.mxu0 0.0
    %375 = vmatprep.subr.mxu0 0.0
    %376 = vmatpush1.msra.mxu0 0.0
    %377 = vmatprep.subr.mxu0 0.0
    %378 = vmatpush1.msra.mxu0 0.0
    %379 = vmatprep.mubr.f32.mxu0 0.0
    %380 = vmatmul.mubr.f32.gmra.mrb[0].mxu0 %v313
    %v381 = vpop.f32.mrb[0].mxu0
    %v382 = vadd.f32 %v215, %v381
    %v383 = vpop.f32.mrb[0].mxu0
    %384 = vdwg.mxu0
    %385 = vst [vmem:[#allocation2] sm:$0xff] %v382
    %s386 = scalar_lea.vmem [#allocation6], 8
    %v387 = vld [vmem:[%s386] sm:$0xff]
    %v389 = vsel %vm237, %v387, 0
    %391 = vmatprep.subr.mxu0 0.0
    %392 = vmatpush1.msra.mxu0 %v151
    %393 = vmatprep.subr.mxu0 0.0
    %394 = vmatpush1.msra.mxu0 %v152
    %395 = vmatprep.subr.mxu0 0.0
    %396 = vmatpush1.msra.mxu0 %v153
    %397 = vmatprep.subr.mxu0 0.0
    %398 = vmatpush1.msra.mxu0 %v154
    %399 = vmatprep.subr.mxu0 0.0
    %400 = vmatpush1.msra.mxu0 0.0
    %401 = vmatprep.subr.mxu0 0.0
    %402 = vmatpush1.msra.mxu0 0.0
    %403 = vmatprep.subr.mxu0 0.0
    %404 = vmatpush1.msra.mxu0 0.0
    %405 = vmatprep.subr.mxu0 0.0
    %406 = vmatpush1.msra.mxu0 0.0
    %407 = vmatprep.subr.mxu0 0.0
    %408 = vmatpush1.msra.mxu0 0.0
    %409 = vmatprep.subr.mxu0 0.0
    %410 = vmatpush1.msra.mxu0 0.0
    %411 = vmatprep.subr.mxu0 0.0
    %412 = vmatpush1.msra.mxu0 0.0
    %413 = vmatprep.subr.mxu0 0.0
    %414 = vmatpush1.msra.mxu0 0.0
    %415 = vmatprep.subr.mxu0 0.0
    %416 = vmatpush1.msra.mxu0 0.0
    %417 = vmatprep.subr.mxu0 0.0
    %418 = vmatpush1.msra.mxu0 0.0
    %419 = vmatprep.subr.mxu0 0.0
    %420 = vmatpush1.msra.mxu0 0.0
    %421 = vmatprep.subr.mxu0 0.0
    %422 = vmatpush1.msra.mxu0 0.0
    %423 = vmatprep.subr.mxu0 0.0
    %424 = vmatpush1.msra.mxu0 0.0
    %425 = vmatprep.subr.mxu0 0.0
    %426 = vmatpush1.msra.mxu0 0.0
    %427 = vmatprep.subr.mxu0 0.0
    %428 = vmatpush1.msra.mxu0 0.0
    %429 = vmatprep.subr.mxu0 0.0
    %430 = vmatpush1.msra.mxu0 0.0
    %431 = vmatprep.subr.mxu0 0.0
    %432 = vmatpush1.msra.mxu0 0.0
    %433 = vmatprep.subr.mxu0 0.0
    %434 = vmatpush1.msra.mxu0 0.0
    %435 = vmatprep.subr.mxu0 0.0
    %436 = vmatpush1.msra.mxu0 0.0
    %437 = vmatprep.subr.mxu0 0.0
    %438 = vmatpush1.msra.mxu0 0.0
    %439 = vmatprep.subr.mxu0 0.0
    %440 = vmatpush1.msra.mxu0 0.0
    %441 = vmatprep.subr.mxu0 0.0
    %442 = vmatpush1.msra.mxu0 0.0
    %443 = vmatprep.subr.mxu0 0.0
    %444 = vmatpush1.msra.mxu0 0.0
    %445 = vmatprep.subr.mxu0 0.0
    %446 = vmatpush1.msra.mxu0 0.0
    %447 = vmatprep.subr.mxu0 0.0
    %448 = vmatpush1.msra.mxu0 0.0
    %449 = vmatprep.subr.mxu0 0.0
    %450 = vmatpush1.msra.mxu0 0.0
    %451 = vmatprep.subr.mxu0 0.0
    %452 = vmatpush1.msra.mxu0 0.0
    %453 = vmatprep.subr.mxu0 0.0
    %454 = vmatpush1.msra.mxu0 0.0
    %455 = vmatprep.mubr.f32.mxu0 0.0
    %456 = vmatmul.mubr.f32.gmra.mrb[0].mxu0 %v389
    %v457 = vpop.f32.mrb[0].mxu0
    %v458 = vadd.f32 %v208, %v457
    %v459 = vpop.f32.mrb[0].mxu0
    %460 = vdwg.mxu0
    %v461 = vmax.f32 %v458, 0.0
    %v463 = vsel %vm237, %v461, 0
    %465 = vmatprep.subr.mxu0 0.0
    %466 = vmatpush1.msra.mxu0 %v155
    %467 = vmatprep.subr.mxu0 0.0
    %468 = vmatpush1.msra.mxu0 %v156
    %469 = vmatprep.subr.mxu0 0.0
    %470 = vmatpush1.msra.mxu0 %v157
    %471 = vmatprep.subr.mxu0 0.0
    %472 = vmatpush1.msra.mxu0 %v158
    %473 = vmatprep.subr.mxu0 0.0
    %474 = vmatpush1.msra.mxu0 0.0
    %475 = vmatprep.subr.mxu0 0.0
    %476 = vmatpush1.msra.mxu0 0.0
    %477 = vmatprep.subr.mxu0 0.0
    %478 = vmatpush1.msra.mxu0 0.0
    %479 = vmatprep.subr.mxu0 0.0
    %480 = vmatpush1.msra.mxu0 0.0
    %481 = vmatprep.subr.mxu0 0.0
    %482 = vmatpush1.msra.mxu0 0.0
    %483 = vmatprep.subr.mxu0 0.0
    %484 = vmatpush1.msra.mxu0 0.0
    %485 = vmatprep.subr.mxu0 0.0
    %486 = vmatpush1.msra.mxu0 0.0
    %487 = vmatprep.subr.mxu0 0.0
    %488 = vmatpush1.msra.mxu0 0.0
    %489 = vmatprep.subr.mxu0 0.0
    %490 = vmatpush1.msra.mxu0 0.0
    %491 = vmatprep.subr.mxu0 0.0
    %492 = vmatpush1.msra.mxu0 0.0
    %493 = vmatprep.subr.mxu0 0.0
    %494 = vmatpush1.msra.mxu0 0.0
    %495 = vmatprep.subr.mxu0 0.0
    %496 = vmatpush1.msra.mxu0 0.0
    %497 = vmatprep.subr.mxu0 0.0
    %498 = vmatpush1.msra.mxu0 0.0
    %499 = vmatprep.subr.mxu0 0.0
    %500 = vmatpush1.msra.mxu0 0.0
    %501 = vmatprep.subr.mxu0 0.0
    %502 = vmatpush1.msra.mxu0 0.0
    %503 = vmatprep.subr.mxu0 0.0
    %504 = vmatpush1.msra.mxu0 0.0
    %505 = vmatprep.subr.mxu0 0.0
    %506 = vmatpush1.msra.mxu0 0.0
    %507 = vmatprep.subr.mxu0 0.0
    %508 = vmatpush1.msra.mxu0 0.0
    %509 = vmatprep.subr.mxu0 0.0
    %510 = vmatpush1.msra.mxu0 0.0
    %511 = vmatprep.subr.mxu0 0.0
    %512 = vmatpush1.msra.mxu0 0.0
    %513 = vmatprep.subr.mxu0 0.0
    %514 = vmatpush1.msra.mxu0 0.0
    %515 = vmatprep.subr.mxu0 0.0
    %516 = vmatpush1.msra.mxu0 0.0
    %517 = vmatprep.subr.mxu0 0.0
    %518 = vmatpush1.msra.mxu0 0.0
    %519 = vmatprep.subr.mxu0 0.0
    %520 = vmatpush1.msra.mxu0 0.0
    %521 = vmatprep.subr.mxu0 0.0
    %522 = vmatpush1.msra.mxu0 0.0
    %523 = vmatprep.subr.mxu0 0.0
    %524 = vmatpush1.msra.mxu0 0.0
    %525 = vmatprep.subr.mxu0 0.0
    %526 = vmatpush1.msra.mxu0 0.0
    %527 = vmatprep.subr.mxu0 0.0
    %528 = vmatpush1.msra.mxu0 0.0
    %529 = vmatprep.mubr.f32.mxu0 0.0
    %530 = vmatmul.mubr.f32.gmra.mrb[0].mxu0 %v463
    %v531 = vpop.f32.mrb[0].mxu0
    %v532 = vadd.f32 %v215, %v531
    %v533 = vpop.f32.mrb[0].mxu0
    %534 = vdwg.mxu0
    %s535 = scalar_lea.vmem [#allocation2], 8
    %536 = vst [vmem:[%s535] sm:$0xff] %v532
    %s537 = scalar_lea.vmem [#allocation6], 16
    %v538 = vld [vmem:[%s537] sm:$0xff]
    %v540 = vsel %vm237, %v538, 0
    %542 = vmatprep.subr.mxu0 0.0
    %543 = vmatpush1.msra.mxu0 %v151
    %544 = vmatprep.subr.mxu0 0.0
    %545 = vmatpush1.msra.mxu0 %v152
    %546 = vmatprep.subr.mxu0 0.0
    %547 = vmatpush1.msra.mxu0 %v153
    %548 = vmatprep.subr.mxu0 0.0
    %549 = vmatpush1.msra.mxu0 %v154
    %550 = vmatprep.subr.mxu0 0.0
    %551 = vmatpush1.msra.mxu0 0.0
    %552 = vmatprep.subr.mxu0 0.0
    %553 = vmatpush1.msra.mxu0 0.0
    %554 = vmatprep.subr.mxu0 0.0
    %555 = vmatpush1.msra.mxu0 0.0
    %556 = vmatprep.subr.mxu0 0.0
    %557 = vmatpush1.msra.mxu0 0.0
    %558 = vmatprep.subr.mxu0 0.0
    %559 = vmatpush1.msra.mxu0 0.0
    %560 = vmatprep.subr.mxu0 0.0
    %561 = vmatpush1.msra.mxu0 0.0
    %562 = vmatprep.subr.mxu0 0.0
    %563 = vmatpush1.msra.mxu0 0.0
    %564 = vmatprep.subr.mxu0 0.0
    %565 = vmatpush1.msra.mxu0 0.0
    %566 = vmatprep.subr.mxu0 0.0
    %567 = vmatpush1.msra.mxu0 0.0
    %568 = vmatprep.subr.mxu0 0.0
    %569 = vmatpush1.msra.mxu0 0.0
    %570 = vmatprep.subr.mxu0 0.0
    %571 = vmatpush1.msra.mxu0 0.0
    %572 = vmatprep.subr.mxu0 0.0
    %573 = vmatpush1.msra.mxu0 0.0
    %574 = vmatprep.subr.mxu0 0.0
    %575 = vmatpush1.msra.mxu0 0.0
    %576 = vmatprep.subr.mxu0 0.0
    %577 = vmatpush1.msra.mxu0 0.0
    %578 = vmatprep.subr.mxu0 0.0
    %579 = vmatpush1.msra.mxu0 0.0
    %580 = vmatprep.subr.mxu0 0.0
    %581 = vmatpush1.msra.mxu0 0.0
    %582 = vmatprep.subr.mxu0 0.0
    %583 = vmatpush1.msra.mxu0 0.0
    %584 = vmatprep.subr.mxu0 0.0
    %585 = vmatpush1.msra.mxu0 0.0
    %586 = vmatprep.subr.mxu0 0.0
    %587 = vmatpush1.msra.mxu0 0.0
    %588 = vmatprep.subr.mxu0 0.0
    %589 = vmatpush1.msra.mxu0 0.0
    %590 = vmatprep.subr.mxu0 0.0
    %591 = vmatpush1.msra.mxu0 0.0
    %592 = vmatprep.subr.mxu0 0.0
    %593 = vmatpush1.msra.mxu0 0.0
    %594 = vmatprep.subr.mxu0 0.0
    %595 = vmatpush1.msra.mxu0 0.0
    %596 = vmatprep.subr.mxu0 0.0
    %597 = vmatpush1.msra.mxu0 0.0
    %598 = vmatprep.subr.mxu0 0.0
    %599 = vmatpush1.msra.mxu0 0.0
    %600 = vmatprep.subr.mxu0 0.0
    %601 = vmatpush1.msra.mxu0 0.0
    %602 = vmatprep.subr.mxu0 0.0
    %603 = vmatpush1.msra.mxu0 0.0
    %604 = vmatprep.subr.mxu0 0.0
    %605 = vmatpush1.msra.mxu0 0.0
    %606 = vmatprep.mubr.f32.mxu0 0.0
    %607 = vmatmul.mubr.f32.gmra.mrb[0].mxu0 %v540
    %v608 = vpop.f32.mrb[0].mxu0
    %v609 = vadd.f32 %v208, %v608
    %v610 = vpop.f32.mrb[0].mxu0
    %611 = vdwg.mxu0
    %v612 = vmax.f32 %v609, 0.0
    %v614 = vsel %vm237, %v612, 0
    %616 = vmatprep.subr.mxu0 0.0
    %617 = vmatpush1.msra.mxu0 %v155
    %618 = vmatprep.subr.mxu0 0.0
    %619 = vmatpush1.msra.mxu0 %v156
    %620 = vmatprep.subr.mxu0 0.0
    %621 = vmatpush1.msra.mxu0 %v157
    %622 = vmatprep.subr.mxu0 0.0
    %623 = vmatpush1.msra.mxu0 %v158
    %624 = vmatprep.subr.mxu0 0.0
    %625 = vmatpush1.msra.mxu0 0.0
    %626 = vmatprep.subr.mxu0 0.0
    %627 = vmatpush1.msra.mxu0 0.0
    %628 = vmatprep.subr.mxu0 0.0
    %629 = vmatpush1.msra.mxu0 0.0
    %630 = vmatprep.subr.mxu0 0.0
    %631 = vmatpush1.msra.mxu0 0.0
    %632 = vmatprep.subr.mxu0 0.0
    %633 = vmatpush1.msra.mxu0 0.0
    %634 = vmatprep.subr.mxu0 0.0
    %635 = vmatpush1.msra.mxu0 0.0
    %636 = vmatprep.subr.mxu0 0.0
    %637 = vmatpush1.msra.mxu0 0.0
    %638 = vmatprep.subr.mxu0 0.0
    %639 = vmatpush1.msra.mxu0 0.0
    %640 = vmatprep.subr.mxu0 0.0
    %641 = vmatpush1.msra.mxu0 0.0
    %642 = vmatprep.subr.mxu0 0.0
    %643 = vmatpush1.msra.mxu0 0.0
    %644 = vmatprep.subr.mxu0 0.0
    %645 = vmatpush1.msra.mxu0 0.0
    %646 = vmatprep.subr.mxu0 0.0
    %647 = vmatpush1.msra.mxu0 0.0
    %648 = vmatprep.subr.mxu0 0.0
    %649 = vmatpush1.msra.mxu0 0.0
    %650 = vmatprep.subr.mxu0 0.0
    %651 = vmatpush1.msra.mxu0 0.0
    %652 = vmatprep.subr.mxu0 0.0
    %653 = vmatpush1.msra.mxu0 0.0
    %654 = vmatprep.subr.mxu0 0.0
    %655 = vmatpush1.msra.mxu0 0.0
    %656 = vmatprep.subr.mxu0 0.0
    %657 = vmatpush1.msra.mxu0 0.0
    %658 = vmatprep.subr.mxu0 0.0
    %659 = vmatpush1.msra.mxu0 0.0
    %660 = vmatprep.subr.mxu0 0.0
    %661 = vmatpush1.msra.mxu0 0.0
    %662 = vmatprep.subr.mxu0 0.0
    %663 = vmatpush1.msra.mxu0 0.0
    %664 = vmatprep.subr.mxu0 0.0
    %665 = vmatpush1.msra.mxu0 0.0
    %666 = vmatprep.subr.mxu0 0.0
    %667 = vmatpush1.msra.mxu0 0.0
    %668 = vmatprep.subr.mxu0 0.0
    %669 = vmatpush1.msra.mxu0 0.0
    %670 = vmatprep.subr.mxu0 0.0
    %671 = vmatpush1.msra.mxu0 0.0
    %672 = vmatprep.subr.mxu0 0.0
    %673 = vmatpush1.msra.mxu0 0.0
    %674 = vmatprep.subr.mxu0 0.0
    %675 = vmatpush1.msra.mxu0 0.0
    %676 = vmatprep.subr.mxu0 0.0
    %677 = vmatpush1.msra.mxu0 0.0
    %678 = vmatprep.subr.mxu0 0.0
    %679 = vmatpush1.msra.mxu0 0.0
    %680 = vmatprep.mubr.f32.mxu0 0.0
    %681 = vmatmul.mubr.f32.gmra.mrb[0].mxu0 %v614
    %v682 = vpop.f32.mrb[0].mxu0
    %v683 = vadd.f32 %v215, %v682
    %v684 = vpop.f32.mrb[0].mxu0
    %685 = vdwg.mxu0
    %s686 = scalar_lea.vmem [#allocation2], 16
    %687 = vst [vmem:[%s686] sm:$0xff] %v683
    %s688 = scalar_lea.vmem [#allocation6], 24
    %v689 = vld [vmem:[%s688] sm:$0xff]
    %v691 = vsel %vm237, %v689, 0
    %693 = vmatprep.subr.mxu0 0.0
    %694 = vmatpush1.msra.mxu0 %v151
    %695 = vmatprep.subr.mxu0 0.0
    %696 = vmatpush1.msra.mxu0 %v152
    %697 = vmatprep.subr.mxu0 0.0
    %698 = vmatpush1.msra.mxu0 %v153
    %699 = vmatprep.subr.mxu0 0.0
    %700 = vmatpush1.msra.mxu0 %v154
    %701 = vmatprep.subr.mxu0 0.0
    %702 = vmatpush1.msra.mxu0 0.0
    %703 = vmatprep.subr.mxu0 0.0
    %704 = vmatpush1.msra.mxu0 0.0
    %705 = vmatprep.subr.mxu0 0.0
    %706 = vmatpush1.msra.mxu0 0.0
    %707 = vmatprep.subr.mxu0 0.0
    %708 = vmatpush1.msra.mxu0 0.0
    %709 = vmatprep.subr.mxu0 0.0
    %710 = vmatpush1.msra.mxu0 0.0
    %711 = vmatprep.subr.mxu0 0.0
    %712 = vmatpush1.msra.mxu0 0.0
    %713 = vmatprep.subr.mxu0 0.0
    %714 = vmatpush1.msra.mxu0 0.0
    %715 = vmatprep.subr.mxu0 0.0
    %716 = vmatpush1.msra.mxu0 0.0
    %717 = vmatprep.subr.mxu0 0.0
    %718 = vmatpush1.msra.mxu0 0.0
    %719 = vmatprep.subr.mxu0 0.0
    %720 = vmatpush1.msra.mxu0 0.0
    %721 = vmatprep.subr.mxu0 0.0
    %722 = vmatpush1.msra.mxu0 0.0
    %723 = vmatprep.subr.mxu0 0.0
    %724 = vmatpush1.msra.mxu0 0.0
    %725 = vmatprep.subr.mxu0 0.0
    %726 = vmatpush1.msra.mxu0 0.0
    %727 = vmatprep.subr.mxu0 0.0
    %728 = vmatpush1.msra.mxu0 0.0
    %729 = vmatprep.subr.mxu0 0.0
    %730 = vmatpush1.msra.mxu0 0.0
    %731 = vmatprep.subr.mxu0 0.0
    %732 = vmatpush1.msra.mxu0 0.0
    %733 = vmatprep.subr.mxu0 0.0
    %734 = vmatpush1.msra.mxu0 0.0
    %735 = vmatprep.subr.mxu0 0.0
    %736 = vmatpush1.msra.mxu0 0.0
    %737 = vmatprep.subr.mxu0 0.0
    %738 = vmatpush1.msra.mxu0 0.0
    %739 = vmatprep.subr.mxu0 0.0
    %740 = vmatpush1.msra.mxu0 0.0
    %741 = vmatprep.subr.mxu0 0.0
    %742 = vmatpush1.msra.mxu0 0.0
    %743 = vmatprep.subr.mxu0 0.0
    %744 = vmatpush1.msra.mxu0 0.0
    %745 = vmatprep.subr.mxu0 0.0
    %746 = vmatpush1.msra.mxu0 0.0
    %747 = vmatprep.subr.mxu0 0.0
    %748 = vmatpush1.msra.mxu0 0.0
    %749 = vmatprep.subr.mxu0 0.0
    %750 = vmatpush1.msra.mxu0 0.0
    %751 = vmatprep.subr.mxu0 0.0
    %752 = vmatpush1.msra.mxu0 0.0
    %753 = vmatprep.subr.mxu0 0.0
    %754 = vmatpush1.msra.mxu0 0.0
    %755 = vmatprep.subr.mxu0 0.0
    %756 = vmatpush1.msra.mxu0 0.0
    %757 = vmatprep.mubr.f32.mxu0 0.0
    %758 = vmatmul.mubr.f32.gmra.mrb[0].mxu0 %v691
    %v759 = vpop.f32.mrb[0].mxu0
    %v760 = vadd.f32 %v208, %v759
    %v761 = vpop.f32.mrb[0].mxu0
    %762 = vdwg.mxu0
    %v763 = vmax.f32 %v760, 0.0
    %v765 = vsel %vm237, %v763, 0
    %767 = vmatprep.subr.mxu0 0.0
    %768 = vmatpush1.msra.mxu0 %v155
    %769 = vmatprep.subr.mxu0 0.0
    %770 = vmatpush1.msra.mxu0 %v156
    %771 = vmatprep.subr.mxu0 0.0
    %772 = vmatpush1.msra.mxu0 %v157
    %773 = vmatprep.subr.mxu0 0.0
    %774 = vmatpush1.msra.mxu0 %v158
    %775 = vmatprep.subr.mxu0 0.0
    %776 = vmatpush1.msra.mxu0 0.0
    %777 = vmatprep.subr.mxu0 0.0
    %778 = vmatpush1.msra.mxu0 0.0
    %779 = vmatprep.subr.mxu0 0.0
    %780 = vmatpush1.msra.mxu0 0.0
    %781 = vmatprep.subr.mxu0 0.0
    %782 = vmatpush1.msra.mxu0 0.0
    %783 = vmatprep.subr.mxu0 0.0
    %784 = vmatpush1.msra.mxu0 0.0
    %785 = vmatprep.subr.mxu0 0.0
    %786 = vmatpush1.msra.mxu0 0.0
    %787 = vmatprep.subr.mxu0 0.0
    %788 = vmatpush1.msra.mxu0 0.0
    %789 = vmatprep.subr.mxu0 0.0
    %790 = vmatpush1.msra.mxu0 0.0
    %791 = vmatprep.subr.mxu0 0.0
    %792 = vmatpush1.msra.mxu0 0.0
    %793 = vmatprep.subr.mxu0 0.0
    %794 = vmatpush1.msra.mxu0 0.0
    %795 = vmatprep.subr.mxu0 0.0
    %796 = vmatpush1.msra.mxu0 0.0
    %797 = vmatprep.subr.mxu0 0.0
    %798 = vmatpush1.msra.mxu0 0.0
    %799 = vmatprep.subr.mxu0 0.0
    %800 = vmatpush1.msra.mxu0 0.0
    %801 = vmatprep.subr.mxu0 0.0
    %802 = vmatpush1.msra.mxu0 0.0
    %803 = vmatprep.subr.mxu0 0.0
    %804 = vmatpush1.msra.mxu0 0.0
    %805 = vmatprep.subr.mxu0 0.0
    %806 = vmatpush1.msra.mxu0 0.0
    %807 = vmatprep.subr.mxu0 0.0
    %808 = vmatpush1.msra.mxu0 0.0
    %809 = vmatprep.subr.mxu0 0.0
    %810 = vmatpush1.msra.mxu0 0.0
    %811 = vmatprep.subr.mxu0 0.0
    %812 = vmatpush1.msra.mxu0 0.0
    %813 = vmatprep.subr.mxu0 0.0
    %814 = vmatpush1.msra.mxu0 0.0
    %815 = vmatprep.subr.mxu0 0.0
    %816 = vmatpush1.msra.mxu0 0.0
    %817 = vmatprep.subr.mxu0 0.0
    %818 = vmatpush1.msra.mxu0 0.0
    %819 = vmatprep.subr.mxu0 0.0
    %820 = vmatpush1.msra.mxu0 0.0
    %821 = vmatprep.subr.mxu0 0.0
    %822 = vmatpush1.msra.mxu0 0.0
    %823 = vmatprep.subr.mxu0 0.0
    %824 = vmatpush1.msra.mxu0 0.0
    %825 = vmatprep.subr.mxu0 0.0
    %826 = vmatpush1.msra.mxu0 0.0
    %827 = vmatprep.subr.mxu0 0.0
    %828 = vmatpush1.msra.mxu0 0.0
    %829 = vmatprep.subr.mxu0 0.0
    %830 = vmatpush1.msra.mxu0 0.0
    %831 = vmatprep.mubr.f32.mxu0 0.0
    %832 = vmatmul.mubr.f32.gmra.mrb[0].mxu0 %v765
    %v833 = vpop.f32.mrb[0].mxu0
    %v834 = vadd.f32 %v215, %v833
    %v835 = vpop.f32.mrb[0].mxu0
    %836 = vdwg.mxu0
    %s837 = scalar_lea.vmem [#allocation2], 24
    %838 = vst [vmem:[%s837] sm:$0xff] %v834
    %s839 = scalar_lea.vmem [#allocation6], 32
    %v840 = vld [vmem:[%s839] sm:$0xff]
    %v842 = vsel %vm237, %v840, 0
    %844 = vmatprep.subr.mxu0 0.0
    %845 = vmatpush1.msra.mxu0 %v151
    %846 = vmatprep.subr.mxu0 0.0
    %847 = vmatpush1.msra.mxu0 %v152
    %848 = vmatprep.subr.mxu0 0.0
    %849 = vmatpush1.msra.mxu0 %v153
    %850 = vmatprep.subr.mxu0 0.0
    %851 = vmatpush1.msra.mxu0 %v154
    %852 = vmatprep.subr.mxu0 0.0
    %853 = vmatpush1.msra.mxu0 0.0
    %854 = vmatprep.subr.mxu0 0.0
    %855 = vmatpush1.msra.mxu0 0.0
    %856 = vmatprep.subr.mxu0 0.0
    %857 = vmatpush1.msra.mxu0 0.0
    %858 = vmatprep.subr.mxu0 0.0
    %859 = vmatpush1.msra.mxu0 0.0
    %860 = vmatprep.subr.mxu0 0.0
    %861 = vmatpush1.msra.mxu0 0.0
    %862 = vmatprep.subr.mxu0 0.0
    %863 = vmatpush1.msra.mxu0 0.0
    %864 = vmatprep.subr.mxu0 0.0
    %865 = vmatpush1.msra.mxu0 0.0
    %866 = vmatprep.subr.mxu0 0.0
    %867 = vmatpush1.msra.mxu0 0.0
    %868 = vmatprep.subr.mxu0 0.0
    %869 = vmatpush1.msra.mxu0 0.0
    %870 = vmatprep.subr.mxu0 0.0
    %871 = vmatpush1.msra.mxu0 0.0
    %872 = vmatprep.subr.mxu0 0.0
    %873 = vmatpush1.msra.mxu0 0.0
    %874 = vmatprep.subr.mxu0 0.0
    %875 = vmatpush1.msra.mxu0 0.0
    %876 = vmatprep.subr.mxu0 0.0
    %877 = vmatpush1.msra.mxu0 0.0
    %878 = vmatprep.subr.mxu0 0.0
    %879 = vmatpush1.msra.mxu0 0.0
    %880 = vmatprep.subr.mxu0 0.0
    %881 = vmatpush1.msra.mxu0 0.0
    %882 = vmatprep.subr.mxu0 0.0
    %883 = vmatpush1.msra.mxu0 0.0
    %884 = vmatprep.subr.mxu0 0.0
    %885 = vmatpush1.msra.mxu0 0.0
    %886 = vmatprep.subr.mxu0 0.0
    %887 = vmatpush1.msra.mxu0 0.0
    %888 = vmatprep.subr.mxu0 0.0
    %889 = vmatpush1.msra.mxu0 0.0
    %890 = vmatprep.subr.mxu0 0.0
    %891 = vmatpush1.msra.mxu0 0.0
    %892 = vmatprep.subr.mxu0 0.0
    %893 = vmatpush1.msra.mxu0 0.0
    %894 = vmatprep.subr.mxu0 0.0
    %895 = vmatpush1.msra.mxu0 0.0
    %896 = vmatprep.subr.mxu0 0.0
    %897 = vmatpush1.msra.mxu0 0.0
    %898 = vmatprep.subr.mxu0 0.0
    %899 = vmatpush1.msra.mxu0 0.0
    %900 = vmatprep.subr.mxu0 0.0
    %901 = vmatpush1.msra.mxu0 0.0
    %902 = vmatprep.subr.mxu0 0.0
    %903 = vmatpush1.msra.mxu0 0.0
    %904 = vmatprep.subr.mxu0 0.0
    %905 = vmatpush1.msra.mxu0 0.0
    %906 = vmatprep.subr.mxu0 0.0
    %907 = vmatpush1.msra.mxu0 0.0
    %908 = vmatprep.mubr.f32.mxu0 0.0
    %909 = vmatmul.mubr.f32.gmra.mrb[0].mxu0 %v842
    %v910 = vpop.f32.mrb[0].mxu0
    %v911 = vadd.f32 %v208, %v910
    %v912 = vpop.f32.mrb[0].mxu0
    %913 = vdwg.mxu0
    %v914 = vmax.f32 %v911, 0.0
    %v916 = vsel %vm237, %v914, 0
    %918 = vmatprep.subr.mxu0 0.0
    %919 = vmatpush1.msra.mxu0 %v155
    %920 = vmatprep.subr.mxu0 0.0
    %921 = vmatpush1.msra.mxu0 %v156
    %922 = vmatprep.subr.mxu0 0.0
    %923 = vmatpush1.msra.mxu0 %v157
    %924 = vmatprep.subr.mxu0 0.0
    %925 = vmatpush1.msra.mxu0 %v158
    %926 = vmatprep.subr.mxu0 0.0
    %927 = vmatpush1.msra.mxu0 0.0
    %928 = vmatprep.subr.mxu0 0.0
    %929 = vmatpush1.msra.mxu0 0.0
    %930 = vmatprep.subr.mxu0 0.0
    %931 = vmatpush1.msra.mxu0 0.0
    %932 = vmatprep.subr.mxu0 0.0
    %933 = vmatpush1.msra.mxu0 0.0
    %934 = vmatprep.subr.mxu0 0.0
    %935 = vmatpush1.msra.mxu0 0.0
    %936 = vmatprep.subr.mxu0 0.0
    %937 = vmatpush1.msra.mxu0 0.0
    %938 = vmatprep.subr.mxu0 0.0
    %939 = vmatpush1.msra.mxu0 0.0
    %940 = vmatprep.subr.mxu0 0.0
    %941 = vmatpush1.msra.mxu0 0.0
    %942 = vmatprep.subr.mxu0 0.0
    %943 = vmatpush1.msra.mxu0 0.0
    %944 = vmatprep.subr.mxu0 0.0
    %945 = vmatpush1.msra.mxu0 0.0
    %946 = vmatprep.subr.mxu0 0.0
    %947 = vmatpush1.msra.mxu0 0.0
    %948 = vmatprep.subr.mxu0 0.0
    %949 = vmatpush1.msra.mxu0 0.0
    %950 = vmatprep.subr.mxu0 0.0
    %951 = vmatpush1.msra.mxu0 0.0
    %952 = vmatprep.subr.mxu0 0.0
    %953 = vmatpush1.msra.mxu0 0.0
    %954 = vmatprep.subr.mxu0 0.0
    %955 = vmatpush1.msra.mxu0 0.0
    %956 = vmatprep.subr.mxu0 0.0
    %957 = vmatpush1.msra.mxu0 0.0
    %958 = vmatprep.subr.mxu0 0.0
    %959 = vmatpush1.msra.mxu0 0.0
    %960 = vmatprep.subr.mxu0 0.0
    %961 = vmatpush1.msra.mxu0 0.0
    %962 = vmatprep.subr.mxu0 0.0
    %963 = vmatpush1.msra.mxu0 0.0
    %964 = vmatprep.subr.mxu0 0.0
    %965 = vmatpush1.msra.mxu0 0.0
    %966 = vmatprep.subr.mxu0 0.0
    %967 = vmatpush1.msra.mxu0 0.0
    %968 = vmatprep.subr.mxu0 0.0
    %969 = vmatpush1.msra.mxu0 0.0
    %970 = vmatprep.subr.mxu0 0.0
    %971 = vmatpush1.msra.mxu0 0.0
    %972 = vmatprep.subr.mxu0 0.0
    %973 = vmatpush1.msra.mxu0 0.0
    %974 = vmatprep.subr.mxu0 0.0
    %975 = vmatpush1.msra.mxu0 0.0
    %976 = vmatprep.subr.mxu0 0.0
    %977 = vmatpush1.msra.mxu0 0.0
    %978 = vmatprep.subr.mxu0 0.0
    %979 = vmatpush1.msra.mxu0 0.0
    %980 = vmatprep.subr.mxu0 0.0
    %981 = vmatpush1.msra.mxu0 0.0
    %982 = vmatprep.mubr.f32.mxu0 0.0
    %983 = vmatmul.mubr.f32.gmra.mrb[0].mxu0 %v916
    %v984 = vpop.f32.mrb[0].mxu0
    %v985 = vadd.f32 %v215, %v984
    %v986 = vpop.f32.mrb[0].mxu0
    %987 = vdwg.mxu0
    %s988 = scalar_lea.vmem [#allocation2], 32
    %989 = vst [vmem:[%s988] sm:$0xff] %v985
    %s990 = scalar_lea.vmem [#allocation6], 40
    %v991 = vld [vmem:[%s990] sm:$0xff]
    %v993 = vsel %vm237, %v991, 0
    %995 = vmatprep.subr.mxu0 0.0
    %996 = vmatpush1.msra.mxu0 %v151
    %997 = vmatprep.subr.mxu0 0.0
    %998 = vmatpush1.msra.mxu0 %v152
    %999 = vmatprep.subr.mxu0 0.0
    %1000 = vmatpush1.msra.mxu0 %v153
    %1001 = vmatprep.subr.mxu0 0.0
    %1002 = vmatpush1.msra.mxu0 %v154
    %1003 = vmatprep.subr.mxu0 0.0
    %1004 = vmatpush1.msra.mxu0 0.0
    %1005 = vmatprep.subr.mxu0 0.0
    %1006 = vmatpush1.msra.mxu0 0.0
    %1007 = vmatprep.subr.mxu0 0.0
    %1008 = vmatpush1.msra.mxu0 0.0
    %1009 = vmatprep.subr.mxu0 0.0
    %1010 = vmatpush1.msra.mxu0 0.0
    %1011 = vmatprep.subr.mxu0 0.0
    %1012 = vmatpush1.msra.mxu0 0.0
    %1013 = vmatprep.subr.mxu0 0.0
    %1014 = vmatpush1.msra.mxu0 0.0
    %1015 = vmatprep.subr.mxu0 0.0
    %1016 = vmatpush1.msra.mxu0 0.0
    %1017 = vmatprep.subr.mxu0 0.0
    %1018 = vmatpush1.msra.mxu0 0.0
    %1019 = vmatprep.subr.mxu0 0.0
    %1020 = vmatpush1.msra.mxu0 0.0
    %1021 = vmatprep.subr.mxu0 0.0
    %1022 = vmatpush1.msra.mxu0 0.0
    %1023 = vmatprep.subr.mxu0 0.0
    %1024 = vmatpush1.msra.mxu0 0.0
    %1025 = vmatprep.subr.mxu0 0.0
    %1026 = vmatpush1.msra.mxu0 0.0
    %1027 = vmatprep.subr.mxu0 0.0
    %1028 = vmatpush1.msra.mxu0 0.0
    %1029 = vmatprep.subr.mxu0 0.0
    %1030 = vmatpush1.msra.mxu0 0.0
    %1031 = vmatprep.subr.mxu0 0.0
    %1032 = vmatpush1.msra.mxu0 0.0
    %1033 = vmatprep.subr.mxu0 0.0
    %1034 = vmatpush1.msra.mxu0 0.0
    %1035 = vmatprep.subr.mxu0 0.0
    %1036 = vmatpush1.msra.mxu0 0.0
    %1037 = vmatprep.subr.mxu0 0.0
    %1038 = vmatpush1.msra.mxu0 0.0
    %1039 = vmatprep.subr.mxu0 0.0
    %1040 = vmatpush1.msra.mxu0 0.0
    %1041 = vmatprep.subr.mxu0 0.0
    %1042 = vmatpush1.msra.mxu0 0.0
    %1043 = vmatprep.subr.mxu0 0.0
    %1044 = vmatpush1.msra.mxu0 0.0
    %1045 = vmatprep.subr.mxu0 0.0
    %1046 = vmatpush1.msra.mxu0 0.0
    %1047 = vmatprep.subr.mxu0 0.0
    %1048 = vmatpush1.msra.mxu0 0.0
    %1049 = vmatprep.subr.mxu0 0.0
    %1050 = vmatpush1.msra.mxu0 0.0
    %1051 = vmatprep.subr.mxu0 0.0
    %1052 = vmatpush1.msra.mxu0 0.0
    %1053 = vmatprep.subr.mxu0 0.0
    %1054 = vmatpush1.msra.mxu0 0.0
    %1055 = vmatprep.subr.mxu0 0.0
    %1056 = vmatpush1.msra.mxu0 0.0
    %1057 = vmatprep.subr.mxu0 0.0
    %1058 = vmatpush1.msra.mxu0 0.0
    %1059 = vmatprep.mubr.f32.mxu0 0.0
    %1060 = vmatmul.mubr.f32.gmra.mrb[0].mxu0 %v993
    %v1061 = vpop.f32.mrb[0].mxu0
    %v1062 = vadd.f32 %v208, %v1061
    %v1063 = vpop.f32.mrb[0].mxu0
    %1064 = vdwg.mxu0
    %v1065 = vmax.f32 %v1062, 0.0
    %v1067 = vsel %vm237, %v1065, 0
    %1069 = vmatprep.subr.mxu0 0.0
    %1070 = vmatpush1.msra.mxu0 %v155
    %1071 = vmatprep.subr.mxu0 0.0
    %1072 = vmatpush1.msra.mxu0 %v156
    %1073 = vmatprep.subr.mxu0 0.0
    %1074 = vmatpush1.msra.mxu0 %v157
    %1075 = vmatprep.subr.mxu0 0.0
    %1076 = vmatpush1.msra.mxu0 %v158
    %1077 = vmatprep.subr.mxu0 0.0
    %1078 = vmatpush1.msra.mxu0 0.0
    %1079 = vmatprep.subr.mxu0 0.0
    %1080 = vmatpush1.msra.mxu0 0.0
    %1081 = vmatprep.subr.mxu0 0.0
    %1082 = vmatpush1.msra.mxu0 0.0
    %1083 = vmatprep.subr.mxu0 0.0
    %1084 = vmatpush1.msra.mxu0 0.0
    %1085 = vmatprep.subr.mxu0 0.0
    %1086 = vmatpush1.msra.mxu0 0.0
    %1087 = vmatprep.subr.mxu0 0.0
    %1088 = vmatpush1.msra.mxu0 0.0
    %1089 = vmatprep.subr.mxu0 0.0
    %1090 = vmatpush1.msra.mxu0 0.0
    %1091 = vmatprep.subr.mxu0 0.0
    %1092 = vmatpush1.msra.mxu0 0.0
    %1093 = vmatprep.subr.mxu0 0.0
    %1094 = vmatpush1.msra.mxu0 0.0
    %1095 = vmatprep.subr.mxu0 0.0
    %1096 = vmatpush1.msra.mxu0 0.0
    %1097 = vmatprep.subr.mxu0 0.0
    %1098 = vmatpush1.msra.mxu0 0.0
    %1099 = vmatprep.subr.mxu0 0.0
    %1100 = vmatpush1.msra.mxu0 0.0
    %1101 = vmatprep.subr.mxu0 0.0
    %1102 = vmatpush1.msra.mxu0 0.0
    %1103 = vmatprep.subr.mxu0 0.0
    %1104 = vmatpush1.msra.mxu0 0.0
    %1105 = vmatprep.subr.mxu0 0.0
    %1106 = vmatpush1.msra.mxu0 0.0
    %1107 = vmatprep.subr.mxu0 0.0
    %1108 = vmatpush1.msra.mxu0 0.0
    %1109 = vmatprep.subr.mxu0 0.0
    %1110 = vmatpush1.msra.mxu0 0.0
    %1111 = vmatprep.subr.mxu0 0.0
    %1112 = vmatpush1.msra.mxu0 0.0
    %1113 = vmatprep.subr.mxu0 0.0
    %1114 = vmatpush1.msra.mxu0 0.0
    %1115 = vmatprep.subr.mxu0 0.0
    %1116 = vmatpush1.msra.mxu0 0.0
    %1117 = vmatprep.subr.mxu0 0.0
    %1118 = vmatpush1.msra.mxu0 0.0
    %1119 = vmatprep.subr.mxu0 0.0
    %1120 = vmatpush1.msra.mxu0 0.0
    %1121 = vmatprep.subr.mxu0 0.0
    %1122 = vmatpush1.msra.mxu0 0.0
    %1123 = vmatprep.subr.mxu0 0.0
    %1124 = vmatpush1.msra.mxu0 0.0
    %1125 = vmatprep.subr.mxu0 0.0
    %1126 = vmatpush1.msra.mxu0 0.0
    %1127 = vmatprep.subr.mxu0 0.0
    %1128 = vmatpush1.msra.mxu0 0.0
    %1129 = vmatprep.subr.mxu0 0.0
    %1130 = vmatpush1.msra.mxu0 0.0
    %1131 = vmatprep.subr.mxu0 0.0
    %1132 = vmatpush1.msra.mxu0 0.0
    %1133 = vmatprep.mubr.f32.mxu0 0.0
    %1134 = vmatmul.mubr.f32.gmra.mrb[0].mxu0 %v1067
    %v1135 = vpop.f32.mrb[0].mxu0
    %v1136 = vadd.f32 %v215, %v1135
    %v1137 = vpop.f32.mrb[0].mxu0
    %1138 = vdwg.mxu0
    %s1139 = scalar_lea.vmem [#allocation2], 40
    %1140 = vst [vmem:[%s1139] sm:$0xff] %v1136
    %s1141 = scalar_lea.vmem [#allocation6], 48
    %v1142 = vld [vmem:[%s1141] sm:$0xff]
    %v1144 = vsel %vm237, %v1142, 0
    %1146 = vmatprep.subr.mxu0 0.0
    %1147 = vmatpush1.msra.mxu0 %v151
    %1148 = vmatprep.subr.mxu0 0.0
    %1149 = vmatpush1.msra.mxu0 %v152
    %1150 = vmatprep.subr.mxu0 0.0
    %1151 = vmatpush1.msra.mxu0 %v153
    %1152 = vmatprep.subr.mxu0 0.0
    %1153 = vmatpush1.msra.mxu0 %v154
    %1154 = vmatprep.subr.mxu0 0.0
    %1155 = vmatpush1.msra.mxu0 0.0
    %1156 = vmatprep.subr.mxu0 0.0
    %1157 = vmatpush1.msra.mxu0 0.0
    %1158 = vmatprep.subr.mxu0 0.0
    %1159 = vmatpush1.msra.mxu0 0.0
    %1160 = vmatprep.subr.mxu0 0.0
    %1161 = vmatpush1.msra.mxu0 0.0
    %1162 = vmatprep.subr.mxu0 0.0
    %1163 = vmatpush1.msra.mxu0 0.0
    %1164 = vmatprep.subr.mxu0 0.0
    %1165 = vmatpush1.msra.mxu0 0.0
    %1166 = vmatprep.subr.mxu0 0.0
    %1167 = vmatpush1.msra.mxu0 0.0
    %1168 = vmatprep.subr.mxu0 0.0
    %1169 = vmatpush1.msra.mxu0 0.0
    %1170 = vmatprep.subr.mxu0 0.0
    %1171 = vmatpush1.msra.mxu0 0.0
    %1172 = vmatprep.subr.mxu0 0.0
    %1173 = vmatpush1.msra.mxu0 0.0
    %1174 = vmatprep.subr.mxu0 0.0
    %1175 = vmatpush1.msra.mxu0 0.0
    %1176 = vmatprep.subr.mxu0 0.0
    %1177 = vmatpush1.msra.mxu0 0.0
    %1178 = vmatprep.subr.mxu0 0.0
    %1179 = vmatpush1.msra.mxu0 0.0
    %1180 = vmatprep.subr.mxu0 0.0
    %1181 = vmatpush1.msra.mxu0 0.0
    %1182 = vmatprep.subr.mxu0 0.0
    %1183 = vmatpush1.msra.mxu0 0.0
    %1184 = vmatprep.subr.mxu0 0.0
    %1185 = vmatpush1.msra.mxu0 0.0
    %1186 = vmatprep.subr.mxu0 0.0
    %1187 = vmatpush1.msra.mxu0 0.0
    %1188 = vmatprep.subr.mxu0 0.0
    %1189 = vmatpush1.msra.mxu0 0.0
    %1190 = vmatprep.subr.mxu0 0.0
    %1191 = vmatpush1.msra.mxu0 0.0
    %1192 = vmatprep.subr.mxu0 0.0
    %1193 = vmatpush1.msra.mxu0 0.0
    %1194 = vmatprep.subr.mxu0 0.0
    %1195 = vmatpush1.msra.mxu0 0.0
    %1196 = vmatprep.subr.mxu0 0.0
    %1197 = vmatpush1.msra.mxu0 0.0
    %1198 = vmatprep.subr.mxu0 0.0
    %1199 = vmatpush1.msra.mxu0 0.0
    %1200 = vmatprep.subr.mxu0 0.0
    %1201 = vmatpush1.msra.mxu0 0.0
    %1202 = vmatprep.subr.mxu0 0.0
    %1203 = vmatpush1.msra.mxu0 0.0
    %1204 = vmatprep.subr.mxu0 0.0
    %1205 = vmatpush1.msra.mxu0 0.0
    %1206 = vmatprep.subr.mxu0 0.0
    %1207 = vmatpush1.msra.mxu0 0.0
    %1208 = vmatprep.subr.mxu0 0.0
    %1209 = vmatpush1.msra.mxu0 0.0
    %1210 = vmatprep.mubr.f32.mxu0 0.0
    %1211 = vmatmul.mubr.f32.gmra.mrb[0].mxu0 %v1144
    %v1212 = vpop.f32.mrb[0].mxu0
    %v1213 = vadd.f32 %v208, %v1212
    %v1214 = vpop.f32.mrb[0].mxu0
    %1215 = vdwg.mxu0
    %v1216 = vmax.f32 %v1213, 0.0
    %v1218 = vsel %vm237, %v1216, 0
    %1220 = vmatprep.subr.mxu0 0.0
    %1221 = vmatpush1.msra.mxu0 %v155
    %1222 = vmatprep.subr.mxu0 0.0
    %1223 = vmatpush1.msra.mxu0 %v156
    %1224 = vmatprep.subr.mxu0 0.0
    %1225 = vmatpush1.msra.mxu0 %v157
    %1226 = vmatprep.subr.mxu0 0.0
    %1227 = vmatpush1.msra.mxu0 %v158
    %1228 = vmatprep.subr.mxu0 0.0
    %1229 = vmatpush1.msra.mxu0 0.0
    %1230 = vmatprep.subr.mxu0 0.0
    %1231 = vmatpush1.msra.mxu0 0.0
    %1232 = vmatprep.subr.mxu0 0.0
    %1233 = vmatpush1.msra.mxu0 0.0
    %1234 = vmatprep.subr.mxu0 0.0
    %1235 = vmatpush1.msra.mxu0 0.0
    %1236 = vmatprep.subr.mxu0 0.0
    %1237 = vmatpush1.msra.mxu0 0.0
    %1238 = vmatprep.subr.mxu0 0.0
    %1239 = vmatpush1.msra.mxu0 0.0
    %1240 = vmatprep.subr.mxu0 0.0
    %1241 = vmatpush1.msra.mxu0 0.0
    %1242 = vmatprep.subr.mxu0 0.0
    %1243 = vmatpush1.msra.mxu0 0.0
    %1244 = vmatprep.subr.mxu0 0.0
    %1245 = vmatpush1.msra.mxu0 0.0
    %1246 = vmatprep.subr.mxu0 0.0
    %1247 = vmatpush1.msra.mxu0 0.0
    %1248 = vmatprep.subr.mxu0 0.0
    %1249 = vmatpush1.msra.mxu0 0.0
    %1250 = vmatprep.subr.mxu0 0.0
    %1251 = vmatpush1.msra.mxu0 0.0
    %1252 = vmatprep.subr.mxu0 0.0
    %1253 = vmatpush1.msra.mxu0 0.0
    %1254 = vmatprep.subr.mxu0 0.0
    %1255 = vmatpush1.msra.mxu0 0.0
    %1256 = vmatprep.subr.mxu0 0.0
    %1257 = vmatpush1.msra.mxu0 0.0
    %1258 = vmatprep.subr.mxu0 0.0
    %1259 = vmatpush1.msra.mxu0 0.0
    %1260 = vmatprep.subr.mxu0 0.0
    %1261 = vmatpush1.msra.mxu0 0.0
    %1262 = vmatprep.subr.mxu0 0.0
    %1263 = vmatpush1.msra.mxu0 0.0
    %1264 = vmatprep.subr.mxu0 0.0
    %1265 = vmatpush1.msra.mxu0 0.0
    %1266 = vmatprep.subr.mxu0 0.0
    %1267 = vmatpush1.msra.mxu0 0.0
    %1268 = vmatprep.subr.mxu0 0.0
    %1269 = vmatpush1.msra.mxu0 0.0
    %1270 = vmatprep.subr.mxu0 0.0
    %1271 = vmatpush1.msra.mxu0 0.0
    %1272 = vmatprep.subr.mxu0 0.0
    %1273 = vmatpush1.msra.mxu0 0.0
    %1274 = vmatprep.subr.mxu0 0.0
    %1275 = vmatpush1.msra.mxu0 0.0
    %1276 = vmatprep.subr.mxu0 0.0
    %1277 = vmatpush1.msra.mxu0 0.0
    %1278 = vmatprep.subr.mxu0 0.0
    %1279 = vmatpush1.msra.mxu0 0.0
    %1280 = vmatprep.subr.mxu0 0.0
    %1281 = vmatpush1.msra.mxu0 0.0
    %1282 = vmatprep.subr.mxu0 0.0
    %1283 = vmatpush1.msra.mxu0 0.0
    %1284 = vmatprep.mubr.f32.mxu0 0.0
    %1285 = vmatmul.mubr.f32.gmra.mrb[0].mxu0 %v1218
    %v1286 = vpop.f32.mrb[0].mxu0
    %v1287 = vadd.f32 %v215, %v1286
    %v1288 = vpop.f32.mrb[0].mxu0
    %1289 = vdwg.mxu0
    %s1290 = scalar_lea.vmem [#allocation2], 48
    %1291 = vst [vmem:[%s1290] sm:$0xff] %v1287
    %s1292 = scalar_lea.vmem [#allocation6], 56
    %v1293 = vld [vmem:[%s1292] sm:$0xff]
    %v1295 = vsel %vm237, %v1293, 0
    %1297 = vmatprep.subr.mxu0 0.0
    %1298 = vmatpush1.msra.mxu0 %v151
    %1299 = vmatprep.subr.mxu0 0.0
    %1300 = vmatpush1.msra.mxu0 %v152
    %1301 = vmatprep.subr.mxu0 0.0
    %1302 = vmatpush1.msra.mxu0 %v153
    %1303 = vmatprep.subr.mxu0 0.0
    %1304 = vmatpush1.msra.mxu0 %v154
    %1305 = vmatprep.subr.mxu0 0.0
    %1306 = vmatpush1.msra.mxu0 0.0
    %1307 = vmatprep.subr.mxu0 0.0
    %1308 = vmatpush1.msra.mxu0 0.0
    %1309 = vmatprep.subr.mxu0 0.0
    %1310 = vmatpush1.msra.mxu0 0.0
    %1311 = vmatprep.subr.mxu0 0.0
    %1312 = vmatpush1.msra.mxu0 0.0
    %1313 = vmatprep.subr.mxu0 0.0
    %1314 = vmatpush1.msra.mxu0 0.0
    %1315 = vmatprep.subr.mxu0 0.0
    %1316 = vmatpush1.msra.mxu0 0.0
    %1317 = vmatprep.subr.mxu0 0.0
    %1318 = vmatpush1.msra.mxu0 0.0
    %1319 = vmatprep.subr.mxu0 0.0
    %1320 = vmatpush1.msra.mxu0 0.0
    %1321 = vmatprep.subr.mxu0 0.0
    %1322 = vmatpush1.msra.mxu0 0.0
    %1323 = vmatprep.subr.mxu0 0.0
    %1324 = vmatpush1.msra.mxu0 0.0
    %1325 = vmatprep.subr.mxu0 0.0
    %1326 = vmatpush1.msra.mxu0 0.0
    %1327 = vmatprep.subr.mxu0 0.0
    %1328 = vmatpush1.msra.mxu0 0.0
    %1329 = vmatprep.subr.mxu0 0.0
    %1330 = vmatpush1.msra.mxu0 0.0
    %1331 = vmatprep.subr.mxu0 0.0
    %1332 = vmatpush1.msra.mxu0 0.0
    %1333 = vmatprep.subr.mxu0 0.0
    %1334 = vmatpush1.msra.mxu0 0.0
    %1335 = vmatprep.subr.mxu0 0.0
    %1336 = vmatpush1.msra.mxu0 0.0
    %1337 = vmatprep.subr.mxu0 0.0
    %1338 = vmatpush1.msra.mxu0 0.0
    %1339 = vmatprep.subr.mxu0 0.0
    %1340 = vmatpush1.msra.mxu0 0.0
    %1341 = vmatprep.subr.mxu0 0.0
    %1342 = vmatpush1.msra.mxu0 0.0
    %1343 = vmatprep.subr.mxu0 0.0
    %1344 = vmatpush1.msra.mxu0 0.0
    %1345 = vmatprep.subr.mxu0 0.0
    %1346 = vmatpush1.msra.mxu0 0.0
    %1347 = vmatprep.subr.mxu0 0.0
    %1348 = vmatpush1.msra.mxu0 0.0
    %1349 = vmatprep.subr.mxu0 0.0
    %1350 = vmatpush1.msra.mxu0 0.0
    %1351 = vmatprep.subr.mxu0 0.0
    %1352 = vmatpush1.msra.mxu0 0.0
    %1353 = vmatprep.subr.mxu0 0.0
    %1354 = vmatpush1.msra.mxu0 0.0
    %1355 = vmatprep.subr.mxu0 0.0
    %1356 = vmatpush1.msra.mxu0 0.0
    %1357 = vmatprep.subr.mxu0 0.0
    %1358 = vmatpush1.msra.mxu0 0.0
    %1359 = vmatprep.subr.mxu0 0.0
    %1360 = vmatpush1.msra.mxu0 0.0
    %1361 = vmatprep.mubr.f32.mxu0 0.0
    %1362 = vmatmul.mubr.f32.gmra.mrb[0].mxu0 %v1295
    %v1363 = vpop.f32.mrb[0].mxu0
    %v1364 = vadd.f32 %v208, %v1363
    %v1365 = vpop.f32.mrb[0].mxu0
    %1366 = vdwg.mxu0
    %v1367 = vmax.f32 %v1364, 0.0
    %v1369 = vsel %vm237, %v1367, 0
    %1371 = vmatprep.subr.mxu0 0.0
    %1372 = vmatpush1.msra.mxu0 %v155
    %1373 = vmatprep.subr.mxu0 0.0
    %1374 = vmatpush1.msra.mxu0 %v156
    %1375 = vmatprep.subr.mxu0 0.0
    %1376 = vmatpush1.msra.mxu0 %v157
    %1377 = vmatprep.subr.mxu0 0.0
    %1378 = vmatpush1.msra.mxu0 %v158
    %1379 = vmatprep.subr.mxu0 0.0
    %1380 = vmatpush1.msra.mxu0 0.0
    %1381 = vmatprep.subr.mxu0 0.0
    %1382 = vmatpush1.msra.mxu0 0.0
    %1383 = vmatprep.subr.mxu0 0.0
    %1384 = vmatpush1.msra.mxu0 0.0
    %1385 = vmatprep.subr.mxu0 0.0
    %1386 = vmatpush1.msra.mxu0 0.0
    %1387 = vmatprep.subr.mxu0 0.0
    %1388 = vmatpush1.msra.mxu0 0.0
    %1389 = vmatprep.subr.mxu0 0.0
    %1390 = vmatpush1.msra.mxu0 0.0
    %1391 = vmatprep.subr.mxu0 0.0
    %1392 = vmatpush1.msra.mxu0 0.0
    %1393 = vmatprep.subr.mxu0 0.0
    %1394 = vmatpush1.msra.mxu0 0.0
    %1395 = vmatprep.subr.mxu0 0.0
    %1396 = vmatpush1.msra.mxu0 0.0
    %1397 = vmatprep.subr.mxu0 0.0
    %1398 = vmatpush1.msra.mxu0 0.0
    %1399 = vmatprep.subr.mxu0 0.0
    %1400 = vmatpush1.msra.mxu0 0.0
    %1401 = vmatprep.subr.mxu0 0.0
    %1402 = vmatpush1.msra.mxu0 0.0
    %1403 = vmatprep.subr.mxu0 0.0
    %1404 = vmatpush1.msra.mxu0 0.0
    %1405 = vmatprep.subr.mxu0 0.0
    %1406 = vmatpush1.msra.mxu0 0.0
    %1407 = vmatprep.subr.mxu0 0.0
    %1408 = vmatpush1.msra.mxu0 0.0
    %1409 = vmatprep.subr.mxu0 0.0
    %1410 = vmatpush1.msra.mxu0 0.0
    %1411 = vmatprep.subr.mxu0 0.0
    %1412 = vmatpush1.msra.mxu0 0.0
    %1413 = vmatprep.subr.mxu0 0.0
    %1414 = vmatpush1.msra.mxu0 0.0
    %1415 = vmatprep.subr.mxu0 0.0
    %1416 = vmatpush1.msra.mxu0 0.0
    %1417 = vmatprep.subr.mxu0 0.0
    %1418 = vmatpush1.msra.mxu0 0.0
    %1419 = vmatprep.subr.mxu0 0.0
    %1420 = vmatpush1.msra.mxu0 0.0
    %1421 = vmatprep.subr.mxu0 0.0
    %1422 = vmatpush1.msra.mxu0 0.0
    %1423 = vmatprep.subr.mxu0 0.0
    %1424 = vmatpush1.msra.mxu0 0.0
    %1425 = vmatprep.subr.mxu0 0.0
    %1426 = vmatpush1.msra.mxu0 0.0
    %1427 = vmatprep.subr.mxu0 0.0
    %1428 = vmatpush1.msra.mxu0 0.0
    %1429 = vmatprep.subr.mxu0 0.0
    %1430 = vmatpush1.msra.mxu0 0.0
    %1431 = vmatprep.subr.mxu0 0.0
    %1432 = vmatpush1.msra.mxu0 0.0
    %1433 = vmatprep.subr.mxu0 0.0
    %1434 = vmatpush1.msra.mxu0 0.0
    %1435 = vmatprep.mubr.f32.mxu0 0.0
    %1436 = vmatmul.mubr.f32.gmra.mrb[0].mxu0 %v1369
    %v1437 = vpop.f32.mrb[0].mxu0
    %v1438 = vadd.f32 %v215, %v1437
    %v1439 = vpop.f32.mrb[0].mxu0
    %1440 = vdwg.mxu0
    %s1441 = scalar_lea.vmem [#allocation2], 56
    %1442 = vst [vmem:[%s1441] sm:$0xff] %v1438
    %v1443 = vld [vmem:[#allocation9] sm:$0xff]
    %1444 = vst.msk [vmem:[#allocation4] sm:$0xff] %vm237, %v1443
    %v1445 = vld [vmem:[#allocation11] sm:$0xff]
    %1446 = vst.msk [vmem:[#allocation5] sm:$0xff] %vm237, %v1445
    %v1447 = vld [vmem:[#allocation4] sm:$0xff]
    %v1448 = vld [vmem:[#allocation5] sm:$0xff]
    %v1449 = vld [vmem:[#allocation2] sm:$0xff]
    %v1451 = vsel %vm237, %v1447, 0
    %1453 = vmatprep.subr.mxu0 0.0
    %1454 = vmatpush1.msra.mxu0 %v159
    %1455 = vmatprep.subr.mxu0 0.0
    %1456 = vmatpush1.msra.mxu0 %v160
    %1457 = vmatprep.subr.mxu0 0.0
    %1458 = vmatpush1.msra.mxu0 %v161
    %1459 = vmatprep.subr.mxu0 0.0
    %1460 = vmatpush1.msra.mxu0 %v162
    %1461 = vmatprep.subr.mxu0 0.0
    %1462 = vmatpush1.msra.mxu0 0.0
    %1463 = vmatprep.subr.mxu0 0.0
    %1464 = vmatpush1.msra.mxu0 0.0
    %1465 = vmatprep.subr.mxu0 0.0
    %1466 = vmatpush1.msra.mxu0 0.0
    %1467 = vmatprep.subr.mxu0 0.0
    %1468 = vmatpush1.msra.mxu0 0.0
    %1469 = vmatprep.subr.mxu0 0.0
    %1470 = vmatpush1.msra.mxu0 0.0
    %1471 = vmatprep.subr.mxu0 0.0
    %1472 = vmatpush1.msra.mxu0 0.0
    %1473 = vmatprep.subr.mxu0 0.0
    %1474 = vmatpush1.msra.mxu0 0.0
    %1475 = vmatprep.subr.mxu0 0.0
    %1476 = vmatpush1.msra.mxu0 0.0
    %1477 = vmatprep.subr.mxu0 0.0
    %1478 = vmatpush1.msra.mxu0 0.0
    %1479 = vmatprep.subr.mxu0 0.0
    %1480 = vmatpush1.msra.mxu0 0.0
    %1481 = vmatprep.subr.mxu0 0.0
    %1482 = vmatpush1.msra.mxu0 0.0
    %1483 = vmatprep.subr.mxu0 0.0
    %1484 = vmatpush1.msra.mxu0 0.0
    %1485 = vmatprep.subr.mxu0 0.0
    %1486 = vmatpush1.msra.mxu0 0.0
    %1487 = vmatprep.subr.mxu0 0.0
    %1488 = vmatpush1.msra.mxu0 0.0
    %1489 = vmatprep.subr.mxu0 0.0
    %1490 = vmatpush1.msra.mxu0 0.0
    %1491 = vmatprep.subr.mxu0 0.0
    %1492 = vmatpush1.msra.mxu0 0.0
    %1493 = vmatprep.subr.mxu0 0.0
    %1494 = vmatpush1.msra.mxu0 0.0
    %1495 = vmatprep.subr.mxu0 0.0
    %1496 = vmatpush1.msra.mxu0 0.0
    %1497 = vmatprep.subr.mxu0 0.0
    %1498 = vmatpush1.msra.mxu0 0.0
    %1499 = vmatprep.subr.mxu0 0.0
    %1500 = vmatpush1.msra.mxu0 0.0
    %1501 = vmatprep.subr.mxu0 0.0
    %1502 = vmatpush1.msra.mxu0 0.0
    %1503 = vmatprep.subr.mxu0 0.0
    %1504 = vmatpush1.msra.mxu0 0.0
    %1505 = vmatprep.subr.mxu0 0.0
    %1506 = vmatpush1.msra.mxu0 0.0
    %1507 = vmatprep.subr.mxu0 0.0
    %1508 = vmatpush1.msra.mxu0 0.0
    %1509 = vmatprep.subr.mxu0 0.0
    %1510 = vmatpush1.msra.mxu0 0.0
    %1511 = vmatprep.subr.mxu0 0.0
    %1512 = vmatpush1.msra.mxu0 0.0
    %1513 = vmatprep.subr.mxu0 0.0
    %1514 = vmatpush1.msra.mxu0 0.0
    %1515 = vmatprep.subr.mxu0 0.0
    %1516 = vmatpush1.msra.mxu0 0.0
    %1517 = vmatprep.mubr.f32.mxu0 0.0
    %1518 = vmatmul.mubr.f32.gmra.mrb[0].mxu0 %v1451
    %v1519 = vpop.f32.mrb[0].mxu0
    %v1520 = vadd.f32 0.0, %v1519
    %v1521 = vpop.f32.mrb[0].mxu0
    %1522 = vdwg.mxu0
    %v1523 = vadd.f32 %v1449, %v1520
    %v1524 = vsub.f32 0.0, %v1523
    %v1525 = vmul.f32 %v1524, 1.442695
    %v1526 = vpow.pop %v1525
    %v1527 = vadd.f32 %v1526, 1.0
    %v1528 = vrcp.pop %v1527
    %v1529 = vmul.f32 1.0, %v1528
    %v1530 = vtanh.pop %v1523
    %1532 = vrot.lane.b32.xlu0 %v1448, 32
    %v1533 = vpop.permute.xlu0 %1532
    %v1535 = vmul.f32 %v1529, %v1533
    %1537 = vrot.lane.b32.xlu0 %v1530, 64
    %v1538 = vpop.permute.xlu0 %1537
    %v1540 = vmul.f32 %v1529, %v1538
    %1542 = vrot.lane.b32.xlu0 %v1540, 32
    %v1543 = vpop.permute.xlu0 %1542
    %v1545 = vadd.f32 %v1535, %v1543
    %v1546 = vtanh.pop %v1545
    %1548 = vrot.lane.b32.xlu0 %v1546, 64
    %v1549 = vpop.permute.xlu0 %1548
    %v1551 = vmul.f32 %v1529, %v1549
    %1553 = vrot.lane.b32.xlu0 %v1551, 32
    %v1554 = vpop.permute.xlu0 %1553
    %1556 = vst.msk [vmem:[#allocation4] sm:$0xff] %vm237, %v1554
    %1558 = vrot.lane.b32.xlu0 %v1545, 96
    %v1559 = vpop.permute.xlu0 %1558
    %1561 = vst.msk [vmem:[#allocation5] sm:$0xff] %vm237, %v1559
    %1562 = vst.msk [vmem:[#allocation3] sm:$0xff] %vm237, %v1554
    %v1563 = vld [vmem:[#allocation4] sm:$0xff]
    %v1564 = vld [vmem:[#allocation5] sm:$0xff]
    %v1565 = vld [vmem:[%s535] sm:$0xff]
    %v1567 = vsel %vm237, %v1563, 0
    %1569 = vmatprep.subr.mxu0 0.0
    %1570 = vmatpush1.msra.mxu0 %v159
    %1571 = vmatprep.subr.mxu0 0.0
    %1572 = vmatpush1.msra.mxu0 %v160
    %1573 = vmatprep.subr.mxu0 0.0
    %1574 = vmatpush1.msra.mxu0 %v161
    %1575 = vmatprep.subr.mxu0 0.0
    %1576 = vmatpush1.msra.mxu0 %v162
    %1577 = vmatprep.subr.mxu0 0.0
    %1578 = vmatpush1.msra.mxu0 0.0
    %1579 = vmatprep.subr.mxu0 0.0
    %1580 = vmatpush1.msra.mxu0 0.0
    %1581 = vmatprep.subr.mxu0 0.0
    %1582 = vmatpush1.msra.mxu0 0.0
    %1583 = vmatprep.subr.mxu0 0.0
    %1584 = vmatpush1.msra.mxu0 0.0
    %1585 = vmatprep.subr.mxu0 0.0
    %1586 = vmatpush1.msra.mxu0 0.0
    %1587 = vmatprep.subr.mxu0 0.0
    %1588 = vmatpush1.msra.mxu0 0.0
    %1589 = vmatprep.subr.mxu0 0.0
    %1590 = vmatpush1.msra.mxu0 0.0
    %1591 = vmatprep.subr.mxu0 0.0
    %1592 = vmatpush1.msra.mxu0 0.0
    %1593 = vmatprep.subr.mxu0 0.0
    %1594 = vmatpush1.msra.mxu0 0.0
    %1595 = vmatprep.subr.mxu0 0.0
    %1596 = vmatpush1.msra.mxu0 0.0
    %1597 = vmatprep.subr.mxu0 0.0
    %1598 = vmatpush1.msra.mxu0 0.0
    %1599 = vmatprep.subr.mxu0 0.0
    %1600 = vmatpush1.msra.mxu0 0.0
    %1601 = vmatprep.subr.mxu0 0.0
    %1602 = vmatpush1.msra.mxu0 0.0
    %1603 = vmatprep.subr.mxu0 0.0
    %1604 = vmatpush1.msra.mxu0 0.0
    %1605 = vmatprep.subr.mxu0 0.0
    %1606 = vmatpush1.msra.mxu0 0.0
    %1607 = vmatprep.subr.mxu0 0.0
    %1608 = vmatpush1.msra.mxu0 0.0
    %1609 = vmatprep.subr.mxu0 0.0
    %1610 = vmatpush1.msra.mxu0 0.0
    %1611 = vmatprep.subr.mxu0 0.0
    %1612 = vmatpush1.msra.mxu0 0.0
    %1613 = vmatprep.subr.mxu0 0.0
    %1614 = vmatpush1.msra.mxu0 0.0
    %1615 = vmatprep.subr.mxu0 0.0
    %1616 = vmatpush1.msra.mxu0 0.0
    %1617 = vmatprep.subr.mxu0 0.0
    %1618 = vmatpush1.msra.mxu0 0.0
    %1619 = vmatprep.subr.mxu0 0.0
    %1620 = vmatpush1.msra.mxu0 0.0
    %1621 = vmatprep.subr.mxu0 0.0
    %1622 = vmatpush1.msra.mxu0 0.0
    %1623 = vmatprep.subr.mxu0 0.0
    %1624 = vmatpush1.msra.mxu0 0.0
    %1625 = vmatprep.subr.mxu0 0.0
    %1626 = vmatpush1.msra.mxu0 0.0
    %1627 = vmatprep.subr.mxu0 0.0
    %1628 = vmatpush1.msra.mxu0 0.0
    %1629 = vmatprep.subr.mxu0 0.0
    %1630 = vmatpush1.msra.mxu0 0.0
    %1631 = vmatprep.subr.mxu0 0.0
    %1632 = vmatpush1.msra.mxu0 0.0
    %1633 = vmatprep.mubr.f32.mxu0 0.0
    %1634 = vmatmul.mubr.f32.gmra.mrb[0].mxu0 %v1567
    %v1635 = vpop.f32.mrb[0].mxu0
    %v1636 = vadd.f32 0.0, %v1635
    %v1637 = vpop.f32.mrb[0].mxu0
    %1638 = vdwg.mxu0
    %v1639 = vadd.f32 %v1565, %v1636
    %v1640 = vsub.f32 0.0, %v1639
    %v1641 = vmul.f32 %v1640, 1.442695
    %v1642 = vpow.pop %v1641
    %v1643 = vadd.f32 %v1642, 1.0
    %v1644 = vrcp.pop %v1643
    %v1645 = vmul.f32 1.0, %v1644
    %v1646 = vtanh.pop %v1639
    %1648 = vrot.lane.b32.xlu0 %v1564, 32
    %v1649 = vpop.permute.xlu0 %1648
    %v1651 = vmul.f32 %v1645, %v1649
    %1653 = vrot.lane.b32.xlu0 %v1646, 64
    %v1654 = vpop.permute.xlu0 %1653
    %v1656 = vmul.f32 %v1645, %v1654
    %1658 = vrot.lane.b32.xlu0 %v1656, 32
    %v1659 = vpop.permute.xlu0 %1658
    %v1661 = vadd.f32 %v1651, %v1659
    %v1662 = vtanh.pop %v1661
    %1664 = vrot.lane.b32.xlu0 %v1662, 64
    %v1665 = vpop.permute.xlu0 %1664
    %v1667 = vmul.f32 %v1645, %v1665
    %1669 = vrot.lane.b32.xlu0 %v1667, 32
    %v1670 = vpop.permute.xlu0 %1669
    %1672 = vst.msk [vmem:[#allocation4] sm:$0xff] %vm237, %v1670
    %1674 = vrot.lane.b32.xlu0 %v1661, 96
    %v1675 = vpop.permute.xlu0 %1674
    %1677 = vst.msk [vmem:[#allocation5] sm:$0xff] %vm237, %v1675
    %s1678 = scalar_lea.vmem [#allocation3], 8
    %1679 = vst.msk [vmem:[%s1678] sm:$0xff] %vm237, %v1670
    %v1680 = vld [vmem:[#allocation4] sm:$0xff]
    %v1681 = vld [vmem:[#allocation5] sm:$0xff]
    %v1682 = vld [vmem:[%s686] sm:$0xff]
    %v1684 = vsel %vm237, %v1680, 0
    %1686 = vmatprep.subr.mxu0 0.0
    %1687 = vmatpush1.msra.mxu0 %v159
    %1688 = vmatprep.subr.mxu0 0.0
    %1689 = vmatpush1.msra.mxu0 %v160
    %1690 = vmatprep.subr.mxu0 0.0
    %1691 = vmatpush1.msra.mxu0 %v161
    %1692 = vmatprep.subr.mxu0 0.0
    %1693 = vmatpush1.msra.mxu0 %v162
    %1694 = vmatprep.subr.mxu0 0.0
    %1695 = vmatpush1.msra.mxu0 0.0
    %1696 = vmatprep.subr.mxu0 0.0
    %1697 = vmatpush1.msra.mxu0 0.0
    %1698 = vmatprep.subr.mxu0 0.0
    %1699 = vmatpush1.msra.mxu0 0.0
    %1700 = vmatprep.subr.mxu0 0.0
    %1701 = vmatpush1.msra.mxu0 0.0
    %1702 = vmatprep.subr.mxu0 0.0
    %1703 = vmatpush1.msra.mxu0 0.0
    %1704 = vmatprep.subr.mxu0 0.0
    %1705 = vmatpush1.msra.mxu0 0.0
    %1706 = vmatprep.subr.mxu0 0.0
    %1707 = vmatpush1.msra.mxu0 0.0
    %1708 = vmatprep.subr.mxu0 0.0
    %1709 = vmatpush1.msra.mxu0 0.0
    %1710 = vmatprep.subr.mxu0 0.0
    %1711 = vmatpush1.msra.mxu0 0.0
    %1712 = vmatprep.subr.mxu0 0.0
    %1713 = vmatpush1.msra.mxu0 0.0
    %1714 = vmatprep.subr.mxu0 0.0
    %1715 = vmatpush1.msra.mxu0 0.0
    %1716 = vmatprep.subr.mxu0 0.0
    %1717 = vmatpush1.msra.mxu0 0.0
    %1718 = vmatprep.subr.mxu0 0.0
    %1719 = vmatpush1.msra.mxu0 0.0
    %1720 = vmatprep.subr.mxu0 0.0
    %1721 = vmatpush1.msra.mxu0 0.0
    %1722 = vmatprep.subr.mxu0 0.0
    %1723 = vmatpush1.msra.mxu0 0.0
    %1724 = vmatprep.subr.mxu0 0.0
    %1725 = vmatpush1.msra.mxu0 0.0
    %1726 = vmatprep.subr.mxu0 0.0
    %1727 = vmatpush1.msra.mxu0 0.0
    %1728 = vmatprep.subr.mxu0 0.0
    %1729 = vmatpush1.msra.mxu0 0.0
    %1730 = vmatprep.subr.mxu0 0.0
    %1731 = vmatpush1.msra.mxu0 0.0
    %1732 = vmatprep.subr.mxu0 0.0
    %1733 = vmatpush1.msra.mxu0 0.0
    %1734 = vmatprep.subr.mxu0 0.0
    %1735 = vmatpush1.msra.mxu0 0.0
    %1736 = vmatprep.subr.mxu0 0.0
    %1737 = vmatpush1.msra.mxu0 0.0
    %1738 = vmatprep.subr.mxu0 0.0
    %1739 = vmatpush1.msra.mxu0 0.0
    %1740 = vmatprep.subr.mxu0 0.0
    %1741 = vmatpush1.msra.mxu0 0.0
    %1742 = vmatprep.subr.mxu0 0.0
    %1743 = vmatpush1.msra.mxu0 0.0
    %1744 = vmatprep.subr.mxu0 0.0
    %1745 = vmatpush1.msra.mxu0 0.0
    %1746 = vmatprep.subr.mxu0 0.0
    %1747 = vmatpush1.msra.mxu0 0.0
    %1748 = vmatprep.subr.mxu0 0.0
    %1749 = vmatpush1.msra.mxu0 0.0
    %1750 = vmatprep.mubr.f32.mxu0 0.0
    %1751 = vmatmul.mubr.f32.gmra.mrb[0].mxu0 %v1684
    %v1752 = vpop.f32.mrb[0].mxu0
    %v1753 = vadd.f32 0.0, %v1752
    %v1754 = vpop.f32.mrb[0].mxu0
    %1755 = vdwg.mxu0
    %v1756 = vadd.f32 %v1682, %v1753
    %v1757 = vsub.f32 0.0, %v1756
    %v1758 = vmul.f32 %v1757, 1.442695
    %v1759 = vpow.pop %v1758
    %v1760 = vadd.f32 %v1759, 1.0
    %v1761 = vrcp.pop %v1760
    %v1762 = vmul.f32 1.0, %v1761
    %v1763 = vtanh.pop %v1756
    %1765 = vrot.lane.b32.xlu0 %v1681, 32
    %v1766 = vpop.permute.xlu0 %1765
    %v1768 = vmul.f32 %v1762, %v1766
    %1770 = vrot.lane.b32.xlu0 %v1763, 64
    %v1771 = vpop.permute.xlu0 %1770
    %v1773 = vmul.f32 %v1762, %v1771
    %1775 = vrot.lane.b32.xlu0 %v1773, 32
    %v1776 = vpop.permute.xlu0 %1775
    %v1778 = vadd.f32 %v1768, %v1776
    %v1779 = vtanh.pop %v1778
    %1781 = vrot.lane.b32.xlu0 %v1779, 64
    %v1782 = vpop.permute.xlu0 %1781
    %v1784 = vmul.f32 %v1762, %v1782
    %1786 = vrot.lane.b32.xlu0 %v1784, 32
    %v1787 = vpop.permute.xlu0 %1786
    %1789 = vst.msk [vmem:[#allocation4] sm:$0xff] %vm237, %v1787
    %1791 = vrot.lane.b32.xlu0 %v1778, 96
    %v1792 = vpop.permute.xlu0 %1791
    %1794 = vst.msk [vmem:[#allocation5] sm:$0xff] %vm237, %v1792
    %s1795 = scalar_lea.vmem [#allocation3], 16
    %1796 = vst.msk [vmem:[%s1795] sm:$0xff] %vm237, %v1787
    %v1797 = vld [vmem:[#allocation4] sm:$0xff]
    %v1798 = vld [vmem:[#allocation5] sm:$0xff]
    %v1799 = vld [vmem:[%s837] sm:$0xff]
    %v1801 = vsel %vm237, %v1797, 0
    %1803 = vmatprep.subr.mxu0 0.0
    %1804 = vmatpush1.msra.mxu0 %v159
    %1805 = vmatprep.subr.mxu0 0.0
    %1806 = vmatpush1.msra.mxu0 %v160
    %1807 = vmatprep.subr.mxu0 0.0
    %1808 = vmatpush1.msra.mxu0 %v161
    %1809 = vmatprep.subr.mxu0 0.0
    %1810 = vmatpush1.msra.mxu0 %v162
    %1811 = vmatprep.subr.mxu0 0.0
    %1812 = vmatpush1.msra.mxu0 0.0
    %1813 = vmatprep.subr.mxu0 0.0
    %1814 = vmatpush1.msra.mxu0 0.0
    %1815 = vmatprep.subr.mxu0 0.0
    %1816 = vmatpush1.msra.mxu0 0.0
    %1817 = vmatprep.subr.mxu0 0.0
    %1818 = vmatpush1.msra.mxu0 0.0
    %1819 = vmatprep.subr.mxu0 0.0
    %1820 = vmatpush1.msra.mxu0 0.0
    %1821 = vmatprep.subr.mxu0 0.0
    %1822 = vmatpush1.msra.mxu0 0.0
    %1823 = vmatprep.subr.mxu0 0.0
    %1824 = vmatpush1.msra.mxu0 0.0
    %1825 = vmatprep.subr.mxu0 0.0
    %1826 = vmatpush1.msra.mxu0 0.0
    %1827 = vmatprep.subr.mxu0 0.0
    %1828 = vmatpush1.msra.mxu0 0.0
    %1829 = vmatprep.subr.mxu0 0.0
    %1830 = vmatpush1.msra.mxu0 0.0
    %1831 = vmatprep.subr.mxu0 0.0
    %1832 = vmatpush1.msra.mxu0 0.0
    %1833 = vmatprep.subr.mxu0 0.0
    %1834 = vmatpush1.msra.mxu0 0.0
    %1835 = vmatprep.subr.mxu0 0.0
    %1836 = vmatpush1.msra.mxu0 0.0
    %1837 = vmatprep.subr.mxu0 0.0
    %1838 = vmatpush1.msra.mxu0 0.0
    %1839 = vmatprep.subr.mxu0 0.0
    %1840 = vmatpush1.msra.mxu0 0.0
    %1841 = vmatprep.subr.mxu0 0.0
    %1842 = vmatpush1.msra.mxu0 0.0
    %1843 = vmatprep.subr.mxu0 0.0
    %1844 = vmatpush1.msra.mxu0 0.0
    %1845 = vmatprep.subr.mxu0 0.0
    %1846 = vmatpush1.msra.mxu0 0.0
    %1847 = vmatprep.subr.mxu0 0.0
    %1848 = vmatpush1.msra.mxu0 0.0
    %1849 = vmatprep.subr.mxu0 0.0
    %1850 = vmatpush1.msra.mxu0 0.0
    %1851 = vmatprep.subr.mxu0 0.0
    %1852 = vmatpush1.msra.mxu0 0.0
    %1853 = vmatprep.subr.mxu0 0.0
    %1854 = vmatpush1.msra.mxu0 0.0
    %1855 = vmatprep.subr.mxu0 0.0
    %1856 = vmatpush1.msra.mxu0 0.0
    %1857 = vmatprep.subr.mxu0 0.0
    %1858 = vmatpush1.msra.mxu0 0.0
    %1859 = vmatprep.subr.mxu0 0.0
    %1860 = vmatpush1.msra.mxu0 0.0
    %1861 = vmatprep.subr.mxu0 0.0
    %1862 = vmatpush1.msra.mxu0 0.0
    %1863 = vmatprep.subr.mxu0 0.0
    %1864 = vmatpush1.msra.mxu0 0.0
    %1865 = vmatprep.subr.mxu0 0.0
    %1866 = vmatpush1.msra.mxu0 0.0
    %1867 = vmatprep.mubr.f32.mxu0 0.0
    %1868 = vmatmul.mubr.f32.gmra.mrb[0].mxu0 %v1801
    %v1869 = vpop.f32.mrb[0].mxu0
    %v1870 = vadd.f32 0.0, %v1869
    %v1871 = vpop.f32.mrb[0].mxu0
    %1872 = vdwg.mxu0
    %v1873 = vadd.f32 %v1799, %v1870
    %v1874 = vsub.f32 0.0, %v1873
    %v1875 = vmul.f32 %v1874, 1.442695
    %v1876 = vpow.pop %v1875
    %v1877 = vadd.f32 %v1876, 1.0
    %v1878 = vrcp.pop %v1877
    %v1879 = vmul.f32 1.0, %v1878
    %v1880 = vtanh.pop %v1873
    %1882 = vrot.lane.b32.xlu0 %v1798, 32
    %v1883 = vpop.permute.xlu0 %1882
    %v1885 = vmul.f32 %v1879, %v1883
    %1887 = vrot.lane.b32.xlu0 %v1880, 64
    %v1888 = vpop.permute.xlu0 %1887
    %v1890 = vmul.f32 %v1879, %v1888
    %1892 = vrot.lane.b32.xlu0 %v1890, 32
    %v1893 = vpop.permute.xlu0 %1892
    %v1895 = vadd.f32 %v1885, %v1893
    %v1896 = vtanh.pop %v1895
    %1898 = vrot.lane.b32.xlu0 %v1896, 64
    %v1899 = vpop.permute.xlu0 %1898
    %v1901 = vmul.f32 %v1879, %v1899
    %1903 = vrot.lane.b32.xlu0 %v1901, 32
    %v1904 = vpop.permute.xlu0 %1903
    %1906 = vst.msk [vmem:[#allocation4] sm:$0xff] %vm237, %v1904
    %1908 = vrot.lane.b32.xlu0 %v1895, 96
    %v1909 = vpop.permute.xlu0 %1908
    %1911 = vst.msk [vmem:[#allocation5] sm:$0xff] %vm237, %v1909
    %s1912 = scalar_lea.vmem [#allocation3], 24
    %1913 = vst.msk [vmem:[%s1912] sm:$0xff] %vm237, %v1904
    %v1914 = vld [vmem:[#allocation4] sm:$0xff]
    %v1915 = vld [vmem:[#allocation5] sm:$0xff]
    %v1916 = vld [vmem:[%s988] sm:$0xff]
    %v1918 = vsel %vm237, %v1914, 0
    %1920 = vmatprep.subr.mxu0 0.0
    %1921 = vmatpush1.msra.mxu0 %v159
    %1922 = vmatprep.subr.mxu0 0.0
    %1923 = vmatpush1.msra.mxu0 %v160
    %1924 = vmatprep.subr.mxu0 0.0
    %1925 = vmatpush1.msra.mxu0 %v161
    %1926 = vmatprep.subr.mxu0 0.0
    %1927 = vmatpush1.msra.mxu0 %v162
    %1928 = vmatprep.subr.mxu0 0.0
    %1929 = vmatpush1.msra.mxu0 0.0
    %1930 = vmatprep.subr.mxu0 0.0
    %1931 = vmatpush1.msra.mxu0 0.0
    %1932 = vmatprep.subr.mxu0 0.0
    %1933 = vmatpush1.msra.mxu0 0.0
    %1934 = vmatprep.subr.mxu0 0.0
    %1935 = vmatpush1.msra.mxu0 0.0
    %1936 = vmatprep.subr.mxu0 0.0
    %1937 = vmatpush1.msra.mxu0 0.0
    %1938 = vmatprep.subr.mxu0 0.0
    %1939 = vmatpush1.msra.mxu0 0.0
    %1940 = vmatprep.subr.mxu0 0.0
    %1941 = vmatpush1.msra.mxu0 0.0
    %1942 = vmatprep.subr.mxu0 0.0
    %1943 = vmatpush1.msra.mxu0 0.0
    %1944 = vmatprep.subr.mxu0 0.0
    %1945 = vmatpush1.msra.mxu0 0.0
    %1946 = vmatprep.subr.mxu0 0.0
    %1947 = vmatpush1.msra.mxu0 0.0
    %1948 = vmatprep.subr.mxu0 0.0
    %1949 = vmatpush1.msra.mxu0 0.0
    %1950 = vmatprep.subr.mxu0 0.0
    %1951 = vmatpush1.msra.mxu0 0.0
    %1952 = vmatprep.subr.mxu0 0.0
    %1953 = vmatpush1.msra.mxu0 0.0
    %1954 = vmatprep.subr.mxu0 0.0
    %1955 = vmatpush1.msra.mxu0 0.0
    %1956 = vmatprep.subr.mxu0 0.0
    %1957 = vmatpush1.msra.mxu0 0.0
    %1958 = vmatprep.subr.mxu0 0.0
    %1959 = vmatpush1.msra.mxu0 0.0
    %1960 = vmatprep.subr.mxu0 0.0
    %1961 = vmatpush1.msra.mxu0 0.0
    %1962 = vmatprep.subr.mxu0 0.0
    %1963 = vmatpush1.msra.mxu0 0.0
    %1964 = vmatprep.subr.mxu0 0.0
    %1965 = vmatpush1.msra.mxu0 0.0
    %1966 = vmatprep.subr.mxu0 0.0
    %1967 = vmatpush1.msra.mxu0 0.0
    %1968 = vmatprep.subr.mxu0 0.0
    %1969 = vmatpush1.msra.mxu0 0.0
    %1970 = vmatprep.subr.mxu0 0.0
    %1971 = vmatpush1.msra.mxu0 0.0
    %1972 = vmatprep.subr.mxu0 0.0
    %1973 = vmatpush1.msra.mxu0 0.0
    %1974 = vmatprep.subr.mxu0 0.0
    %1975 = vmatpush1.msra.mxu0 0.0
    %1976 = vmatprep.subr.mxu0 0.0
    %1977 = vmatpush1.msra.mxu0 0.0
    %1978 = vmatprep.subr.mxu0 0.0
    %1979 = vmatpush1.msra.mxu0 0.0
    %1980 = vmatprep.subr.mxu0 0.0
    %1981 = vmatpush1.msra.mxu0 0.0
    %1982 = vmatprep.subr.mxu0 0.0
    %1983 = vmatpush1.msra.mxu0 0.0
    %1984 = vmatprep.mubr.f32.mxu0 0.0
    %1985 = vmatmul.mubr.f32.gmra.mrb[0].mxu0 %v1918
    %v1986 = vpop.f32.mrb[0].mxu0
    %v1987 = vadd.f32 0.0, %v1986
    %v1988 = vpop.f32.mrb[0].mxu0
    %1989 = vdwg.mxu0
    %v1990 = vadd.f32 %v1916, %v1987
    %v1991 = vsub.f32 0.0, %v1990
    %v1992 = vmul.f32 %v1991, 1.442695
    %v1993 = vpow.pop %v1992
    %v1994 = vadd.f32 %v1993, 1.0
    %v1995 = vrcp.pop %v1994
    %v1996 = vmul.f32 1.0, %v1995
    %v1997 = vtanh.pop %v1990
    %1999 = vrot.lane.b32.xlu0 %v1915, 32
    %v2000 = vpop.permute.xlu0 %1999
    %v2002 = vmul.f32 %v1996, %v2000
    %2004 = vrot.lane.b32.xlu0 %v1997, 64
    %v2005 = vpop.permute.xlu0 %2004
    %v2007 = vmul.f32 %v1996, %v2005
    %2009 = vrot.lane.b32.xlu0 %v2007, 32
    %v2010 = vpop.permute.xlu0 %2009
    %v2012 = vadd.f32 %v2002, %v2010
    %v2013 = vtanh.pop %v2012
    %2015 = vrot.lane.b32.xlu0 %v2013, 64
    %v2016 = vpop.permute.xlu0 %2015
    %v2018 = vmul.f32 %v1996, %v2016
    %2020 = vrot.lane.b32.xlu0 %v2018, 32
    %v2021 = vpop.permute.xlu0 %2020
    %2023 = vst.msk [vmem:[#allocation4] sm:$0xff] %vm237, %v2021
    %2025 = vrot.lane.b32.xlu0 %v2012, 96
    %v2026 = vpop.permute.xlu0 %2025
    %2028 = vst.msk [vmem:[#allocation5] sm:$0xff] %vm237, %v2026
    %s2029 = scalar_lea.vmem [#allocation3], 32
    %2030 = vst.msk [vmem:[%s2029] sm:$0xff] %vm237, %v2021
    %v2031 = vld [vmem:[#allocation4] sm:$0xff]
    %v2032 = vld [vmem:[#allocation5] sm:$0xff]
    %v2033 = vld [vmem:[%s1139] sm:$0xff]
    %v2035 = vsel %vm237, %v2031, 0
    %2037 = vmatprep.subr.mxu0 0.0
    %2038 = vmatpush1.msra.mxu0 %v159
    %2039 = vmatprep.subr.mxu0 0.0
    %2040 = vmatpush1.msra.mxu0 %v160
    %2041 = vmatprep.subr.mxu0 0.0
    %2042 = vmatpush1.msra.mxu0 %v161
    %2043 = vmatprep.subr.mxu0 0.0
    %2044 = vmatpush1.msra.mxu0 %v162
    %2045 = vmatprep.subr.mxu0 0.0
    %2046 = vmatpush1.msra.mxu0 0.0
    %2047 = vmatprep.subr.mxu0 0.0
    %2048 = vmatpush1.msra.mxu0 0.0
    %2049 = vmatprep.subr.mxu0 0.0
    %2050 = vmatpush1.msra.mxu0 0.0
    %2051 = vmatprep.subr.mxu0 0.0
    %2052 = vmatpush1.msra.mxu0 0.0
    %2053 = vmatprep.subr.mxu0 0.0
    %2054 = vmatpush1.msra.mxu0 0.0
    %2055 = vmatprep.subr.mxu0 0.0
    %2056 = vmatpush1.msra.mxu0 0.0
    %2057 = vmatprep.subr.mxu0 0.0
    %2058 = vmatpush1.msra.mxu0 0.0
    %2059 = vmatprep.subr.mxu0 0.0
    %2060 = vmatpush1.msra.mxu0 0.0
    %2061 = vmatprep.subr.mxu0 0.0
    %2062 = vmatpush1.msra.mxu0 0.0
    %2063 = vmatprep.subr.mxu0 0.0
    %2064 = vmatpush1.msra.mxu0 0.0
    %2065 = vmatprep.subr.mxu0 0.0
    %2066 = vmatpush1.msra.mxu0 0.0
    %2067 = vmatprep.subr.mxu0 0.0
    %2068 = vmatpush1.msra.mxu0 0.0
    %2069 = vmatprep.subr.mxu0 0.0
    %2070 = vmatpush1.msra.mxu0 0.0
    %2071 = vmatprep.subr.mxu0 0.0
    %2072 = vmatpush1.msra.mxu0 0.0
    %2073 = vmatprep.subr.mxu0 0.0
    %2074 = vmatpush1.msra.mxu0 0.0
    %2075 = vmatprep.subr.mxu0 0.0
    %2076 = vmatpush1.msra.mxu0 0.0
    %2077 = vmatprep.subr.mxu0 0.0
    %2078 = vmatpush1.msra.mxu0 0.0
    %2079 = vmatprep.subr.mxu0 0.0
    %2080 = vmatpush1.msra.mxu0 0.0
    %2081 = vmatprep.subr.mxu0 0.0
    %2082 = vmatpush1.msra.mxu0 0.0
    %2083 = vmatprep.subr.mxu0 0.0
    %2084 = vmatpush1.msra.mxu0 0.0
    %2085 = vmatprep.subr.mxu0 0.0
    %2086 = vmatpush1.msra.mxu0 0.0
    %2087 = vmatprep.subr.mxu0 0.0
    %2088 = vmatpush1.msra.mxu0 0.0
    %2089 = vmatprep.subr.mxu0 0.0
    %2090 = vmatpush1.msra.mxu0 0.0
    %2091 = vmatprep.subr.mxu0 0.0
    %2092 = vmatpush1.msra.mxu0 0.0
    %2093 = vmatprep.subr.mxu0 0.0
    %2094 = vmatpush1.msra.mxu0 0.0
    %2095 = vmatprep.subr.mxu0 0.0
    %2096 = vmatpush1.msra.mxu0 0.0
    %2097 = vmatprep.subr.mxu0 0.0
    %2098 = vmatpush1.msra.mxu0 0.0
    %2099 = vmatprep.subr.mxu0 0.0
    %2100 = vmatpush1.msra.mxu0 0.0
    %2101 = vmatprep.mubr.f32.mxu0 0.0
    %2102 = vmatmul.mubr.f32.gmra.mrb[0].mxu0 %v2035
    %v2103 = vpop.f32.mrb[0].mxu0
    %v2104 = vadd.f32 0.0, %v2103
    %v2105 = vpop.f32.mrb[0].mxu0
    %2106 = vdwg.mxu0
    %v2107 = vadd.f32 %v2033, %v2104
    %v2108 = vsub.f32 0.0, %v2107
    %v2109 = vmul.f32 %v2108, 1.442695
    %v2110 = vpow.pop %v2109
    %v2111 = vadd.f32 %v2110, 1.0
    %v2112 = vrcp.pop %v2111
    %v2113 = vmul.f32 1.0, %v2112
    %v2114 = vtanh.pop %v2107
    %2116 = vrot.lane.b32.xlu0 %v2032, 32
    %v2117 = vpop.permute.xlu0 %2116
    %v2119 = vmul.f32 %v2113, %v2117
    %2121 = vrot.lane.b32.xlu0 %v2114, 64
    %v2122 = vpop.permute.xlu0 %2121
    %v2124 = vmul.f32 %v2113, %v2122
    %2126 = vrot.lane.b32.xlu0 %v2124, 32
    %v2127 = vpop.permute.xlu0 %2126
    %v2129 = vadd.f32 %v2119, %v2127
    %v2130 = vtanh.pop %v2129
    %2132 = vrot.lane.b32.xlu0 %v2130, 64
    %v2133 = vpop.permute.xlu0 %2132
    %v2135 = vmul.f32 %v2113, %v2133
    %2137 = vrot.lane.b32.xlu0 %v2135, 32
    %v2138 = vpop.permute.xlu0 %2137
    %2140 = vst.msk [vmem:[#allocation4] sm:$0xff] %vm237, %v2138
    %2142 = vrot.lane.b32.xlu0 %v2129, 96
    %v2143 = vpop.permute.xlu0 %2142
    %2145 = vst.msk [vmem:[#allocation5] sm:$0xff] %vm237, %v2143
    %s2146 = scalar_lea.vmem [#allocation3], 40
    %2147 = vst.msk [vmem:[%s2146] sm:$0xff] %vm237, %v2138
    %v2148 = vld [vmem:[#allocation4] sm:$0xff]
    %v2149 = vld [vmem:[#allocation5] sm:$0xff]
    %v2150 = vld [vmem:[%s1290] sm:$0xff]
    %v2152 = vsel %vm237, %v2148, 0
    %2154 = vmatprep.subr.mxu0 0.0
    %2155 = vmatpush1.msra.mxu0 %v159
    %2156 = vmatprep.subr.mxu0 0.0
    %2157 = vmatpush1.msra.mxu0 %v160
    %2158 = vmatprep.subr.mxu0 0.0
    %2159 = vmatpush1.msra.mxu0 %v161
    %2160 = vmatprep.subr.mxu0 0.0
    %2161 = vmatpush1.msra.mxu0 %v162
    %2162 = vmatprep.subr.mxu0 0.0
    %2163 = vmatpush1.msra.mxu0 0.0
    %2164 = vmatprep.subr.mxu0 0.0
    %2165 = vmatpush1.msra.mxu0 0.0
    %2166 = vmatprep.subr.mxu0 0.0
    %2167 = vmatpush1.msra.mxu0 0.0
    %2168 = vmatprep.subr.mxu0 0.0
    %2169 = vmatpush1.msra.mxu0 0.0
    %2170 = vmatprep.subr.mxu0 0.0
    %2171 = vmatpush1.msra.mxu0 0.0
    %2172 = vmatprep.subr.mxu0 0.0
    %2173 = vmatpush1.msra.mxu0 0.0
    %2174 = vmatprep.subr.mxu0 0.0
    %2175 = vmatpush1.msra.mxu0 0.0
    %2176 = vmatprep.subr.mxu0 0.0
    %2177 = vmatpush1.msra.mxu0 0.0
    %2178 = vmatprep.subr.mxu0 0.0
    %2179 = vmatpush1.msra.mxu0 0.0
    %2180 = vmatprep.subr.mxu0 0.0
    %2181 = vmatpush1.msra.mxu0 0.0
    %2182 = vmatprep.subr.mxu0 0.0
    %2183 = vmatpush1.msra.mxu0 0.0
    %2184 = vmatprep.subr.mxu0 0.0
    %2185 = vmatpush1.msra.mxu0 0.0
    %2186 = vmatprep.subr.mxu0 0.0
    %2187 = vmatpush1.msra.mxu0 0.0
    %2188 = vmatprep.subr.mxu0 0.0
    %2189 = vmatpush1.msra.mxu0 0.0
    %2190 = vmatprep.subr.mxu0 0.0
    %2191 = vmatpush1.msra.mxu0 0.0
    %2192 = vmatprep.subr.mxu0 0.0
    %2193 = vmatpush1.msra.mxu0 0.0
    %2194 = vmatprep.subr.mxu0 0.0
    %2195 = vmatpush1.msra.mxu0 0.0
    %2196 = vmatprep.subr.mxu0 0.0
    %2197 = vmatpush1.msra.mxu0 0.0
    %2198 = vmatprep.subr.mxu0 0.0
    %2199 = vmatpush1.msra.mxu0 0.0
    %2200 = vmatprep.subr.mxu0 0.0
    %2201 = vmatpush1.msra.mxu0 0.0
    %2202 = vmatprep.subr.mxu0 0.0
    %2203 = vmatpush1.msra.mxu0 0.0
    %2204 = vmatprep.subr.mxu0 0.0
    %2205 = vmatpush1.msra.mxu0 0.0
    %2206 = vmatprep.subr.mxu0 0.0
    %2207 = vmatpush1.msra.mxu0 0.0
    %2208 = vmatprep.subr.mxu0 0.0
    %2209 = vmatpush1.msra.mxu0 0.0
    %2210 = vmatprep.subr.mxu0 0.0
    %2211 = vmatpush1.msra.mxu0 0.0
    %2212 = vmatprep.subr.mxu0 0.0
    %2213 = vmatpush1.msra.mxu0 0.0
    %2214 = vmatprep.subr.mxu0 0.0
    %2215 = vmatpush1.msra.mxu0 0.0
    %2216 = vmatprep.subr.mxu0 0.0
    %2217 = vmatpush1.msra.mxu0 0.0
    %2218 = vmatprep.mubr.f32.mxu0 0.0
    %2219 = vmatmul.mubr.f32.gmra.mrb[0].mxu0 %v2152
    %v2220 = vpop.f32.mrb[0].mxu0
    %v2221 = vadd.f32 0.0, %v2220
    %v2222 = vpop.f32.mrb[0].mxu0
    %2223 = vdwg.mxu0
    %v2224 = vadd.f32 %v2150, %v2221
    %v2225 = vsub.f32 0.0, %v2224
    %v2226 = vmul.f32 %v2225, 1.442695
    %v2227 = vpow.pop %v2226
    %v2228 = vadd.f32 %v2227, 1.0
    %v2229 = vrcp.pop %v2228
    %v2230 = vmul.f32 1.0, %v2229
    %v2231 = vtanh.pop %v2224
    %2233 = vrot.lane.b32.xlu0 %v2149, 32
    %v2234 = vpop.permute.xlu0 %2233
    %v2236 = vmul.f32 %v2230, %v2234
    %2238 = vrot.lane.b32.xlu0 %v2231, 64
    %v2239 = vpop.permute.xlu0 %2238
    %v2241 = vmul.f32 %v2230, %v2239
    %2243 = vrot.lane.b32.xlu0 %v2241, 32
    %v2244 = vpop.permute.xlu0 %2243
    %v2246 = vadd.f32 %v2236, %v2244
    %v2247 = vtanh.pop %v2246
    %2249 = vrot.lane.b32.xlu0 %v2247, 64
    %v2250 = vpop.permute.xlu0 %2249
    %v2252 = vmul.f32 %v2230, %v2250
    %2254 = vrot.lane.b32.xlu0 %v2252, 32
    %v2255 = vpop.permute.xlu0 %2254
    %2257 = vst.msk [vmem:[#allocation4] sm:$0xff] %vm237, %v2255
    %2259 = vrot.lane.b32.xlu0 %v2246, 96
    %v2260 = vpop.permute.xlu0 %2259
    %2262 = vst.msk [vmem:[#allocation5] sm:$0xff] %vm237, %v2260
    %s2263 = scalar_lea.vmem [#allocation3], 48
    %2264 = vst.msk [vmem:[%s2263] sm:$0xff] %vm237, %v2255
    %v2265 = vld [vmem:[#allocation4] sm:$0xff]
    %v2266 = vld [vmem:[#allocation5] sm:$0xff]
    %v2267 = vld [vmem:[%s1441] sm:$0xff]
    %v2269 = vsel %vm237, %v2265, 0
    %2271 = vmatprep.subr.mxu0 0.0
    %2272 = vmatpush1.msra.mxu0 %v159
    %2273 = vmatprep.subr.mxu0 0.0
    %2274 = vmatpush1.msra.mxu0 %v160
    %2275 = vmatprep.subr.mxu0 0.0
    %2276 = vmatpush1.msra.mxu0 %v161
    %2277 = vmatprep.subr.mxu0 0.0
    %2278 = vmatpush1.msra.mxu0 %v162
    %2279 = vmatprep.subr.mxu0 0.0
    %2280 = vmatpush1.msra.mxu0 0.0
    %2281 = vmatprep.subr.mxu0 0.0
    %2282 = vmatpush1.msra.mxu0 0.0
    %2283 = vmatprep.subr.mxu0 0.0
    %2284 = vmatpush1.msra.mxu0 0.0
    %2285 = vmatprep.subr.mxu0 0.0
    %2286 = vmatpush1.msra.mxu0 0.0
    %2287 = vmatprep.subr.mxu0 0.0
    %2288 = vmatpush1.msra.mxu0 0.0
    %2289 = vmatprep.subr.mxu0 0.0
    %2290 = vmatpush1.msra.mxu0 0.0
    %2291 = vmatprep.subr.mxu0 0.0
    %2292 = vmatpush1.msra.mxu0 0.0
    %2293 = vmatprep.subr.mxu0 0.0
    %2294 = vmatpush1.msra.mxu0 0.0
    %2295 = vmatprep.subr.mxu0 0.0
    %2296 = vmatpush1.msra.mxu0 0.0
    %2297 = vmatprep.subr.mxu0 0.0
    %2298 = vmatpush1.msra.mxu0 0.0
    %2299 = vmatprep.subr.mxu0 0.0
    %2300 = vmatpush1.msra.mxu0 0.0
    %2301 = vmatprep.subr.mxu0 0.0
    %2302 = vmatpush1.msra.mxu0 0.0
    %2303 = vmatprep.subr.mxu0 0.0
    %2304 = vmatpush1.msra.mxu0 0.0
    %2305 = vmatprep.subr.mxu0 0.0
    %2306 = vmatpush1.msra.mxu0 0.0
    %2307 = vmatprep.subr.mxu0 0.0
    %2308 = vmatpush1.msra.mxu0 0.0
    %2309 = vmatprep.subr.mxu0 0.0
    %2310 = vmatpush1.msra.mxu0 0.0
    %2311 = vmatprep.subr.mxu0 0.0
    %2312 = vmatpush1.msra.mxu0 0.0
    %2313 = vmatprep.subr.mxu0 0.0
    %2314 = vmatpush1.msra.mxu0 0.0
    %2315 = vmatprep.subr.mxu0 0.0
    %2316 = vmatpush1.msra.mxu0 0.0
    %2317 = vmatprep.subr.mxu0 0.0
    %2318 = vmatpush1.msra.mxu0 0.0
    %2319 = vmatprep.subr.mxu0 0.0
    %2320 = vmatpush1.msra.mxu0 0.0
    %2321 = vmatprep.subr.mxu0 0.0
    %2322 = vmatpush1.msra.mxu0 0.0
    %2323 = vmatprep.subr.mxu0 0.0
    %2324 = vmatpush1.msra.mxu0 0.0
    %2325 = vmatprep.subr.mxu0 0.0
    %2326 = vmatpush1.msra.mxu0 0.0
    %2327 = vmatprep.subr.mxu0 0.0
    %2328 = vmatpush1.msra.mxu0 0.0
    %2329 = vmatprep.subr.mxu0 0.0
    %2330 = vmatpush1.msra.mxu0 0.0
    %2331 = vmatprep.subr.mxu0 0.0
    %2332 = vmatpush1.msra.mxu0 0.0
    %2333 = vmatprep.subr.mxu0 0.0
    %2334 = vmatpush1.msra.mxu0 0.0
    %2335 = vmatprep.mubr.f32.mxu0 0.0
    %2336 = vmatmul.mubr.f32.gmra.mrb[0].mxu0 %v2269
    %v2337 = vpop.f32.mrb[0].mxu0
    %v2338 = vadd.f32 0.0, %v2337
    %v2339 = vpop.f32.mrb[0].mxu0
    %2340 = vdwg.mxu0
    %v2341 = vadd.f32 %v2267, %v2338
    %v2342 = vsub.f32 0.0, %v2341
    %v2343 = vmul.f32 %v2342, 1.442695
    %v2344 = vpow.pop %v2343
    %v2345 = vadd.f32 %v2344, 1.0
    %v2346 = vrcp.pop %v2345
    %v2347 = vmul.f32 1.0, %v2346
    %v2348 = vtanh.pop %v2341
    %2350 = vrot.lane.b32.xlu0 %v2266, 32
    %v2351 = vpop.permute.xlu0 %2350
    %v2353 = vmul.f32 %v2347, %v2351
    %2355 = vrot.lane.b32.xlu0 %v2348, 64
    %v2356 = vpop.permute.xlu0 %2355
    %v2358 = vmul.f32 %v2347, %v2356
    %2360 = vrot.lane.b32.xlu0 %v2358, 32
    %v2361 = vpop.permute.xlu0 %2360
    %v2363 = vadd.f32 %v2353, %v2361
    %v2364 = vtanh.pop %v2363
    %2366 = vrot.lane.b32.xlu0 %v2364, 64
    %v2367 = vpop.permute.xlu0 %2366
    %v2369 = vmul.f32 %v2347, %v2367
    %2371 = vrot.lane.b32.xlu0 %v2369, 32
    %v2372 = vpop.permute.xlu0 %2371
    %2374 = vst.msk [vmem:[#allocation4] sm:$0xff] %vm237, %v2372
    %2376 = vrot.lane.b32.xlu0 %v2363, 96
    %v2377 = vpop.permute.xlu0 %2376
    %2379 = vst.msk [vmem:[#allocation5] sm:$0xff] %vm237, %v2377
    %s2380 = scalar_lea.vmem [#allocation3], 56
    %2381 = vst.msk [vmem:[%s2380] sm:$0xff] %vm237, %v2372
    %v2382 = vld [vmem:[#allocation4] sm:$0xff]
    %2383 = vst.msk [vmem:[#allocation21] sm:$0xff] %vm237, %v2382
    %v2384 = vld [vmem:[#allocation5] sm:$0xff]
    %2385 = vst.msk [vmem:[#allocation23] sm:$0xff] %vm237, %v2384
    %v2386 = vld [vmem:[#allocation3] sm:$0xff]
    %v2388 = vsel %vm237, %v2386, 0
    %2390 = vmatprep.subr.mxu0 %v164
    %2391 = vmatpush1.msra.mxu0 %v163
    %2392 = vmatprep.subr.mxu0 %v166
    %2393 = vmatpush1.msra.mxu0 %v165
    %2394 = vmatprep.subr.mxu0 %v168
    %2395 = vmatpush1.msra.mxu0 %v167
    %2396 = vmatprep.subr.mxu0 %v170
    %2397 = vmatpush1.msra.mxu0 %v169
    %2398 = vmatprep.subr.mxu0 0.0
    %2399 = vmatpush1.msra.mxu0 0.0
    %2400 = vmatprep.subr.mxu0 0.0
    %2401 = vmatpush1.msra.mxu0 0.0
    %2402 = vmatprep.subr.mxu0 0.0
    %2403 = vmatpush1.msra.mxu0 0.0
    %2404 = vmatprep.subr.mxu0 0.0
    %2405 = vmatpush1.msra.mxu0 0.0
    %2406 = vmatprep.subr.mxu0 0.0
    %2407 = vmatpush1.msra.mxu0 0.0
    %2408 = vmatprep.subr.mxu0 0.0
    %2409 = vmatpush1.msra.mxu0 0.0
    %2410 = vmatprep.subr.mxu0 0.0
    %2411 = vmatpush1.msra.mxu0 0.0
    %2412 = vmatprep.subr.mxu0 0.0
    %2413 = vmatpush1.msra.mxu0 0.0
    %2414 = vmatprep.subr.mxu0 0.0
    %2415 = vmatpush1.msra.mxu0 0.0
    %2416 = vmatprep.subr.mxu0 0.0
    %2417 = vmatpush1.msra.mxu0 0.0
    %2418 = vmatprep.subr.mxu0 0.0
    %2419 = vmatpush1.msra.mxu0 0.0
    %2420 = vmatprep.subr.mxu0 0.0
    %2421 = vmatpush1.msra.mxu0 0.0
    %2422 = vmatprep.subr.mxu0 0.0
    %2423 = vmatpush1.msra.mxu0 0.0
    %2424 = vmatprep.subr.mxu0 0.0
    %2425 = vmatpush1.msra.mxu0 0.0
    %2426 = vmatprep.subr.mxu0 0.0
    %2427 = vmatpush1.msra.mxu0 0.0
    %2428 = vmatprep.subr.mxu0 0.0
    %2429 = vmatpush1.msra.mxu0 0.0
    %2430 = vmatprep.subr.mxu0 0.0
    %2431 = vmatpush1.msra.mxu0 0.0
    %2432 = vmatprep.subr.mxu0 0.0
    %2433 = vmatpush1.msra.mxu0 0.0
    %2434 = vmatprep.subr.mxu0 0.0
    %2435 = vmatpush1.msra.mxu0 0.0
    %2436 = vmatprep.subr.mxu0 0.0
    %2437 = vmatpush1.msra.mxu0 0.0
    %2438 = vmatprep.subr.mxu0 0.0
    %2439 = vmatpush1.msra.mxu0 0.0
    %2440 = vmatprep.subr.mxu0 0.0
    %2441 = vmatpush1.msra.mxu0 0.0
    %2442 = vmatprep.subr.mxu0 0.0
    %2443 = vmatpush1.msra.mxu0 0.0
    %2444 = vmatprep.subr.mxu0 0.0
    %2445 = vmatpush1.msra.mxu0 0.0
    %2446 = vmatprep.subr.mxu0 0.0
    %2447 = vmatpush1.msra.mxu0 0.0
    %2448 = vmatprep.subr.mxu0 0.0
    %2449 = vmatpush1.msra.mxu0 0.0
    %2450 = vmatprep.subr.mxu0 0.0
    %2451 = vmatpush1.msra.mxu0 0.0
    %2452 = vmatprep.subr.mxu0 0.0
    %2453 = vmatpush1.msra.mxu0 0.0
    %2454 = vmatprep.mubr.f32.mxu0 0.0
    %2455 = vmatmul.mubr.f32.gmra.mrb[0].mxu0 %v2388
    %v2456 = vpop.f32.mrb[0].mxu0
    %v2457 = vadd.f32 %v222, %v2456
    %v2458 = vpop.f32.mrb[0].mxu0
    %v2459 = vadd.f32 %v226, %v2458
    %2460 = vdwg.mxu0
    %v2461 = vmax.f32 %v2457, 0.0
    %v2462 = vmax.f32 %v2459, 0.0
    %2463 = vmatprep.subr.mxu0 0.0
    %2464 = vmatpush1.msra.mxu0 %v171
    %2465 = vmatprep.subr.mxu0 0.0
    %2466 = vmatpush1.msra.mxu0 %v172
    %2467 = vmatprep.subr.mxu0 0.0
    %2468 = vmatpush1.msra.mxu0 %v173
    %2469 = vmatprep.subr.mxu0 0.0
    %2470 = vmatpush1.msra.mxu0 %v174
    %2471 = vmatprep.subr.mxu0 0.0
    %2472 = vmatpush1.msra.mxu0 %v175
    %2473 = vmatprep.subr.mxu0 0.0
    %2474 = vmatpush1.msra.mxu0 %v176
    %2475 = vmatprep.subr.mxu0 0.0
    %2476 = vmatpush1.msra.mxu0 %v177
    %2477 = vmatprep.subr.mxu0 0.0
    %2478 = vmatpush1.msra.mxu0 %v178
    %2479 = vmatprep.subr.mxu0 0.0
    %2480 = vmatpush1.msra.mxu0 %v179
    %2481 = vmatprep.subr.mxu0 0.0
    %2482 = vmatpush1.msra.mxu0 %v180
    %2483 = vmatprep.subr.mxu0 0.0
    %2484 = vmatpush1.msra.mxu0 %v181
    %2485 = vmatprep.subr.mxu0 0.0
    %2486 = vmatpush1.msra.mxu0 %v182
    %2487 = vmatprep.subr.mxu0 0.0
    %2488 = vmatpush1.msra.mxu0 %v183
    %2489 = vmatprep.subr.mxu0 0.0
    %2490 = vmatpush1.msra.mxu0 %v184
    %2491 = vmatprep.subr.mxu0 0.0
    %2492 = vmatpush1.msra.mxu0 %v185
    %2493 = vmatprep.subr.mxu0 0.0
    %2494 = vmatpush1.msra.mxu0 %v186
    %2495 = vmatprep.subr.mxu0 0.0
    %2496 = vmatpush1.msra.mxu0 %v187
    %2497 = vmatprep.subr.mxu0 0.0
    %2498 = vmatpush1.msra.mxu0 %v188
    %2499 = vmatprep.subr.mxu0 0.0
    %2500 = vmatpush1.msra.mxu0 %v189
    %2501 = vmatprep.subr.mxu0 0.0
    %2502 = vmatpush1.msra.mxu0 %v190
    %2503 = vmatprep.subr.mxu0 0.0
    %2504 = vmatpush1.msra.mxu0 %v191
    %2505 = vmatprep.subr.mxu0 0.0
    %2506 = vmatpush1.msra.mxu0 %v192
    %2507 = vmatprep.subr.mxu0 0.0
    %2508 = vmatpush1.msra.mxu0 %v193
    %2509 = vmatprep.subr.mxu0 0.0
    %2510 = vmatpush1.msra.mxu0 %v194
    %2511 = vmatprep.subr.mxu0 0.0
    %2512 = vmatpush1.msra.mxu0 %v195
    %2513 = vmatprep.subr.mxu0 0.0
    %2514 = vmatpush1.msra.mxu0 %v196
    %2515 = vmatprep.subr.mxu0 0.0
    %2516 = vmatpush1.msra.mxu0 %v197
    %2517 = vmatprep.subr.mxu0 0.0
    %2518 = vmatpush1.msra.mxu0 %v198
    %2519 = vmatprep.subr.mxu0 0.0
    %2520 = vmatpush1.msra.mxu0 %v199
    %2521 = vmatprep.subr.mxu0 0.0
    %2522 = vmatpush1.msra.mxu0 %v200
    %2523 = vmatprep.subr.mxu0 0.0
    %2524 = vmatpush1.msra.mxu0 %v201
    %2525 = vmatprep.subr.mxu0 0.0
    %2526 = vmatpush1.msra.mxu0 %v202
    %2527 = vmatprep.mubr.f32.mxu0 %v2462
    %2528 = vmatmul.mubr.f32.gmra.mrb[0].mxu0 %v2461
    %v2529 = vpop.f32.mrb[0].mxu0
    %v2530 = vadd.f32 %v234, %v2529
    %v2531 = vpop.f32.mrb[0].mxu0
    %2532 = vdwg.mxu0
    %v2533 = vmax.f32 %v2530, 0.0
    %2534 = vst [vmem:[#allocation20] sm:$0xff] %v2533
    %v2535 = vld [vmem:[%s1678] sm:$0xff]
    %v2537 = vsel %vm237, %v2535, 0
    %2539 = vmatprep.subr.mxu0 %v164
    %2540 = vmatpush1.msra.mxu0 %v163
    %2541 = vmatprep.subr.mxu0 %v166
    %2542 = vmatpush1.msra.mxu0 %v165
    %2543 = vmatprep.subr.mxu0 %v168
    %2544 = vmatpush1.msra.mxu0 %v167
    %2545 = vmatprep.subr.mxu0 %v170
    %2546 = vmatpush1.msra.mxu0 %v169
    %2547 = vmatprep.subr.mxu0 0.0
    %2548 = vmatpush1.msra.mxu0 0.0
    %2549 = vmatprep.subr.mxu0 0.0
    %2550 = vmatpush1.msra.mxu0 0.0
    %2551 = vmatprep.subr.mxu0 0.0
    %2552 = vmatpush1.msra.mxu0 0.0
    %2553 = vmatprep.subr.mxu0 0.0
    %2554 = vmatpush1.msra.mxu0 0.0
    %2555 = vmatprep.subr.mxu0 0.0
    %2556 = vmatpush1.msra.mxu0 0.0
    %2557 = vmatprep.subr.mxu0 0.0
    %2558 = vmatpush1.msra.mxu0 0.0
    %2559 = vmatprep.subr.mxu0 0.0
    %2560 = vmatpush1.msra.mxu0 0.0
    %2561 = vmatprep.subr.mxu0 0.0
    %2562 = vmatpush1.msra.mxu0 0.0
    %2563 = vmatprep.subr.mxu0 0.0
    %2564 = vmatpush1.msra.mxu0 0.0
    %2565 = vmatprep.subr.mxu0 0.0
    %2566 = vmatpush1.msra.mxu0 0.0
    %2567 = vmatprep.subr.mxu0 0.0
    %2568 = vmatpush1.msra.mxu0 0.0
    %2569 = vmatprep.subr.mxu0 0.0
    %2570 = vmatpush1.msra.mxu0 0.0
    %2571 = vmatprep.subr.mxu0 0.0
    %2572 = vmatpush1.msra.mxu0 0.0
    %2573 = vmatprep.subr.mxu0 0.0
    %2574 = vmatpush1.msra.mxu0 0.0
    %2575 = vmatprep.subr.mxu0 0.0
    %2576 = vmatpush1.msra.mxu0 0.0
    %2577 = vmatprep.subr.mxu0 0.0
    %2578 = vmatpush1.msra.mxu0 0.0
    %2579 = vmatprep.subr.mxu0 0.0
    %2580 = vmatpush1.msra.mxu0 0.0
    %2581 = vmatprep.subr.mxu0 0.0
    %2582 = vmatpush1.msra.mxu0 0.0
    %2583 = vmatprep.subr.mxu0 0.0
    %2584 = vmatpush1.msra.mxu0 0.0
    %2585 = vmatprep.subr.mxu0 0.0
    %2586 = vmatpush1.msra.mxu0 0.0
    %2587 = vmatprep.subr.mxu0 0.0
    %2588 = vmatpush1.msra.mxu0 0.0
    %2589 = vmatprep.subr.mxu0 0.0
    %2590 = vmatpush1.msra.mxu0 0.0
    %2591 = vmatprep.subr.mxu0 0.0
    %2592 = vmatpush1.msra.mxu0 0.0
    %2593 = vmatprep.subr.mxu0 0.0
    %2594 = vmatpush1.msra.mxu0 0.0
    %2595 = vmatprep.subr.mxu0 0.0
    %2596 = vmatpush1.msra.mxu0 0.0
    %2597 = vmatprep.subr.mxu0 0.0
    %2598 = vmatpush1.msra.mxu0 0.0
    %2599 = vmatprep.subr.mxu0 0.0
    %2600 = vmatpush1.msra.mxu0 0.0
    %2601 = vmatprep.subr.mxu0 0.0
    %2602 = vmatpush1.msra.mxu0 0.0
    %2603 = vmatprep.mubr.f32.mxu0 0.0
    %2604 = vmatmul.mubr.f32.gmra.mrb[0].mxu0 %v2537
    %v2605 = vpop.f32.mrb[0].mxu0
    %v2606 = vadd.f32 %v222, %v2605
    %v2607 = vpop.f32.mrb[0].mxu0
    %v2608 = vadd.f32 %v226, %v2607
    %2609 = vdwg.mxu0
    %v2610 = vmax.f32 %v2606, 0.0
    %v2611 = vmax.f32 %v2608, 0.0
    %2612 = vmatprep.subr.mxu0 0.0
    %2613 = vmatpush1.msra.mxu0 %v171
    %2614 = vmatprep.subr.mxu0 0.0
    %2615 = vmatpush1.msra.mxu0 %v172
    %2616 = vmatprep.subr.mxu0 0.0
    %2617 = vmatpush1.msra.mxu0 %v173
    %2618 = vmatprep.subr.mxu0 0.0
    %2619 = vmatpush1.msra.mxu0 %v174
    %2620 = vmatprep.subr.mxu0 0.0
    %2621 = vmatpush1.msra.mxu0 %v175
    %2622 = vmatprep.subr.mxu0 0.0
    %2623 = vmatpush1.msra.mxu0 %v176
    %2624 = vmatprep.subr.mxu0 0.0
    %2625 = vmatpush1.msra.mxu0 %v177
    %2626 = vmatprep.subr.mxu0 0.0
    %2627 = vmatpush1.msra.mxu0 %v178
    %2628 = vmatprep.subr.mxu0 0.0
    %2629 = vmatpush1.msra.mxu0 %v179
    %2630 = vmatprep.subr.mxu0 0.0
    %2631 = vmatpush1.msra.mxu0 %v180
    %2632 = vmatprep.subr.mxu0 0.0
    %2633 = vmatpush1.msra.mxu0 %v181
    %2634 = vmatprep.subr.mxu0 0.0
    %2635 = vmatpush1.msra.mxu0 %v182
    %2636 = vmatprep.subr.mxu0 0.0
    %2637 = vmatpush1.msra.mxu0 %v183
    %2638 = vmatprep.subr.mxu0 0.0
    %2639 = vmatpush1.msra.mxu0 %v184
    %2640 = vmatprep.subr.mxu0 0.0
    %2641 = vmatpush1.msra.mxu0 %v185
    %2642 = vmatprep.subr.mxu0 0.0
    %2643 = vmatpush1.msra.mxu0 %v186
    %2644 = vmatprep.subr.mxu0 0.0
    %2645 = vmatpush1.msra.mxu0 %v187
    %2646 = vmatprep.subr.mxu0 0.0
    %2647 = vmatpush1.msra.mxu0 %v188
    %2648 = vmatprep.subr.mxu0 0.0
    %2649 = vmatpush1.msra.mxu0 %v189
    %2650 = vmatprep.subr.mxu0 0.0
    %2651 = vmatpush1.msra.mxu0 %v190
    %2652 = vmatprep.subr.mxu0 0.0
    %2653 = vmatpush1.msra.mxu0 %v191
    %2654 = vmatprep.subr.mxu0 0.0
    %2655 = vmatpush1.msra.mxu0 %v192
    %2656 = vmatprep.subr.mxu0 0.0
    %2657 = vmatpush1.msra.mxu0 %v193
    %2658 = vmatprep.subr.mxu0 0.0
    %2659 = vmatpush1.msra.mxu0 %v194
    %2660 = vmatprep.subr.mxu0 0.0
    %2661 = vmatpush1.msra.mxu0 %v195
    %2662 = vmatprep.subr.mxu0 0.0
    %2663 = vmatpush1.msra.mxu0 %v196
    %2664 = vmatprep.subr.mxu0 0.0
    %2665 = vmatpush1.msra.mxu0 %v197
    %2666 = vmatprep.subr.mxu0 0.0
    %2667 = vmatpush1.msra.mxu0 %v198
    %2668 = vmatprep.subr.mxu0 0.0
    %2669 = vmatpush1.msra.mxu0 %v199
    %2670 = vmatprep.subr.mxu0 0.0
    %2671 = vmatpush1.msra.mxu0 %v200
    %2672 = vmatprep.subr.mxu0 0.0
    %2673 = vmatpush1.msra.mxu0 %v201
    %2674 = vmatprep.subr.mxu0 0.0
    %2675 = vmatpush1.msra.mxu0 %v202
    %2676 = vmatprep.mubr.f32.mxu0 %v2611
    %2677 = vmatmul.mubr.f32.gmra.mrb[0].mxu0 %v2610
    %v2678 = vpop.f32.mrb[0].mxu0
    %v2679 = vadd.f32 %v234, %v2678
    %v2680 = vpop.f32.mrb[0].mxu0
    %2681 = vdwg.mxu0
    %v2682 = vmax.f32 %v2679, 0.0
    %s2683 = scalar_lea.vmem [#allocation20], 8
    %2684 = vst [vmem:[%s2683] sm:$0xff] %v2682
    %v2685 = vld [vmem:[%s1795] sm:$0xff]
    %v2687 = vsel %vm237, %v2685, 0
    %2689 = vmatprep.subr.mxu0 %v164
    %2690 = vmatpush1.msra.mxu0 %v163
    %2691 = vmatprep.subr.mxu0 %v166
    %2692 = vmatpush1.msra.mxu0 %v165
    %2693 = vmatprep.subr.mxu0 %v168
    %2694 = vmatpush1.msra.mxu0 %v167
    %2695 = vmatprep.subr.mxu0 %v170
    %2696 = vmatpush1.msra.mxu0 %v169
    %2697 = vmatprep.subr.mxu0 0.0
    %2698 = vmatpush1.msra.mxu0 0.0
    %2699 = vmatprep.subr.mxu0 0.0
    %2700 = vmatpush1.msra.mxu0 0.0
    %2701 = vmatprep.subr.mxu0 0.0
    %2702 = vmatpush1.msra.mxu0 0.0
    %2703 = vmatprep.subr.mxu0 0.0
    %2704 = vmatpush1.msra.mxu0 0.0
    %2705 = vmatprep.subr.mxu0 0.0
    %2706 = vmatpush1.msra.mxu0 0.0
    %2707 = vmatprep.subr.mxu0 0.0
    %2708 = vmatpush1.msra.mxu0 0.0
    %2709 = vmatprep.subr.mxu0 0.0
    %2710 = vmatpush1.msra.mxu0 0.0
    %2711 = vmatprep.subr.mxu0 0.0
    %2712 = vmatpush1.msra.mxu0 0.0
    %2713 = vmatprep.subr.mxu0 0.0
    %2714 = vmatpush1.msra.mxu0 0.0
    %2715 = vmatprep.subr.mxu0 0.0
    %2716 = vmatpush1.msra.mxu0 0.0
    %2717 = vmatprep.subr.mxu0 0.0
    %2718 = vmatpush1.msra.mxu0 0.0
    %2719 = vmatprep.subr.mxu0 0.0
    %2720 = vmatpush1.msra.mxu0 0.0
    %2721 = vmatprep.subr.mxu0 0.0
    %2722 = vmatpush1.msra.mxu0 0.0
    %2723 = vmatprep.subr.mxu0 0.0
    %2724 = vmatpush1.msra.mxu0 0.0
    %2725 = vmatprep.subr.mxu0 0.0
    %2726 = vmatpush1.msra.mxu0 0.0
    %2727 = vmatprep.subr.mxu0 0.0
    %2728 = vmatpush1.msra.mxu0 0.0
    %2729 = vmatprep.subr.mxu0 0.0
    %2730 = vmatpush1.msra.mxu0 0.0
    %2731 = vmatprep.subr.mxu0 0.0
    %2732 = vmatpush1.msra.mxu0 0.0
    %2733 = vmatprep.subr.mxu0 0.0
    %2734 = vmatpush1.msra.mxu0 0.0
    %2735 = vmatprep.subr.mxu0 0.0
    %2736 = vmatpush1.msra.mxu0 0.0
    %2737 = vmatprep.subr.mxu0 0.0
    %2738 = vmatpush1.msra.mxu0 0.0
    %2739 = vmatprep.subr.mxu0 0.0
    %2740 = vmatpush1.msra.mxu0 0.0
    %2741 = vmatprep.subr.mxu0 0.0
    %2742 = vmatpush1.msra.mxu0 0.0
    %2743 = vmatprep.subr.mxu0 0.0
    %2744 = vmatpush1.msra.mxu0 0.0
    %2745 = vmatprep.subr.mxu0 0.0
    %2746 = vmatpush1.msra.mxu0 0.0
    %2747 = vmatprep.subr.mxu0 0.0
    %2748 = vmatpush1.msra.mxu0 0.0
    %2749 = vmatprep.subr.mxu0 0.0
    %2750 = vmatpush1.msra.mxu0 0.0
    %2751 = vmatprep.subr.mxu0 0.0
    %2752 = vmatpush1.msra.mxu0 0.0
    %2753 = vmatprep.mubr.f32.mxu0 0.0
    %2754 = vmatmul.mubr.f32.gmra.mrb[0].mxu0 %v2687
    %v2755 = vpop.f32.mrb[0].mxu0
    %v2756 = vadd.f32 %v222, %v2755
    %v2757 = vpop.f32.mrb[0].mxu0
    %v2758 = vadd.f32 %v226, %v2757
    %2759 = vdwg.mxu0
    %v2760 = vmax.f32 %v2756, 0.0
    %v2761 = vmax.f32 %v2758, 0.0
    %2762 = vmatprep.subr.mxu0 0.0
    %2763 = vmatpush1.msra.mxu0 %v171
    %2764 = vmatprep.subr.mxu0 0.0
    %2765 = vmatpush1.msra.mxu0 %v172
    %2766 = vmatprep.subr.mxu0 0.0
    %2767 = vmatpush1.msra.mxu0 %v173
    %2768 = vmatprep.subr.mxu0 0.0
    %2769 = vmatpush1.msra.mxu0 %v174
    %2770 = vmatprep.subr.mxu0 0.0
    %2771 = vmatpush1.msra.mxu0 %v175
    %2772 = vmatprep.subr.mxu0 0.0
    %2773 = vmatpush1.msra.mxu0 %v176
    %2774 = vmatprep.subr.mxu0 0.0
    %2775 = vmatpush1.msra.mxu0 %v177
    %2776 = vmatprep.subr.mxu0 0.0
    %2777 = vmatpush1.msra.mxu0 %v178
    %2778 = vmatprep.subr.mxu0 0.0
    %2779 = vmatpush1.msra.mxu0 %v179
    %2780 = vmatprep.subr.mxu0 0.0
    %2781 = vmatpush1.msra.mxu0 %v180
    %2782 = vmatprep.subr.mxu0 0.0
    %2783 = vmatpush1.msra.mxu0 %v181
    %2784 = vmatprep.subr.mxu0 0.0
    %2785 = vmatpush1.msra.mxu0 %v182
    %2786 = vmatprep.subr.mxu0 0.0
    %2787 = vmatpush1.msra.mxu0 %v183
    %2788 = vmatprep.subr.mxu0 0.0
    %2789 = vmatpush1.msra.mxu0 %v184
    %2790 = vmatprep.subr.mxu0 0.0
    %2791 = vmatpush1.msra.mxu0 %v185
    %2792 = vmatprep.subr.mxu0 0.0
    %2793 = vmatpush1.msra.mxu0 %v186
    %2794 = vmatprep.subr.mxu0 0.0
    %2795 = vmatpush1.msra.mxu0 %v187
    %2796 = vmatprep.subr.mxu0 0.0
    %2797 = vmatpush1.msra.mxu0 %v188
    %2798 = vmatprep.subr.mxu0 0.0
    %2799 = vmatpush1.msra.mxu0 %v189
    %2800 = vmatprep.subr.mxu0 0.0
    %2801 = vmatpush1.msra.mxu0 %v190
    %2802 = vmatprep.subr.mxu0 0.0
    %2803 = vmatpush1.msra.mxu0 %v191
    %2804 = vmatprep.subr.mxu0 0.0
    %2805 = vmatpush1.msra.mxu0 %v192
    %2806 = vmatprep.subr.mxu0 0.0
    %2807 = vmatpush1.msra.mxu0 %v193
    %2808 = vmatprep.subr.mxu0 0.0
    %2809 = vmatpush1.msra.mxu0 %v194
    %2810 = vmatprep.subr.mxu0 0.0
    %2811 = vmatpush1.msra.mxu0 %v195
    %2812 = vmatprep.subr.mxu0 0.0
    %2813 = vmatpush1.msra.mxu0 %v196
    %2814 = vmatprep.subr.mxu0 0.0
    %2815 = vmatpush1.msra.mxu0 %v197
    %2816 = vmatprep.subr.mxu0 0.0
    %2817 = vmatpush1.msra.mxu0 %v198
    %2818 = vmatprep.subr.mxu0 0.0
    %2819 = vmatpush1.msra.mxu0 %v199
    %2820 = vmatprep.subr.mxu0 0.0
    %2821 = vmatpush1.msra.mxu0 %v200
    %2822 = vmatprep.subr.mxu0 0.0
    %2823 = vmatpush1.msra.mxu0 %v201
    %2824 = vmatprep.subr.mxu0 0.0
    %2825 = vmatpush1.msra.mxu0 %v202
    %2826 = vmatprep.mubr.f32.mxu0 %v2761
    %2827 = vmatmul.mubr.f32.gmra.mrb[0].mxu0 %v2760
    %v2828 = vpop.f32.mrb[0].mxu0
    %v2829 = vadd.f32 %v234, %v2828
    %v2830 = vpop.f32.mrb[0].mxu0
    %2831 = vdwg.mxu0
    %v2832 = vmax.f32 %v2829, 0.0
    %s2833 = scalar_lea.vmem [#allocation20], 16
    %2834 = vst [vmem:[%s2833] sm:$0xff] %v2832
    %v2835 = vld [vmem:[%s1912] sm:$0xff]
    %v2837 = vsel %vm237, %v2835, 0
    %2839 = vmatprep.subr.mxu0 %v164
    %2840 = vmatpush1.msra.mxu0 %v163
    %2841 = vmatprep.subr.mxu0 %v166
    %2842 = vmatpush1.msra.mxu0 %v165
    %2843 = vmatprep.subr.mxu0 %v168
    %2844 = vmatpush1.msra.mxu0 %v167
    %2845 = vmatprep.subr.mxu0 %v170
    %2846 = vmatpush1.msra.mxu0 %v169
    %2847 = vmatprep.subr.mxu0 0.0
    %2848 = vmatpush1.msra.mxu0 0.0
    %2849 = vmatprep.subr.mxu0 0.0
    %2850 = vmatpush1.msra.mxu0 0.0
    %2851 = vmatprep.subr.mxu0 0.0
    %2852 = vmatpush1.msra.mxu0 0.0
    %2853 = vmatprep.subr.mxu0 0.0
    %2854 = vmatpush1.msra.mxu0 0.0
    %2855 = vmatprep.subr.mxu0 0.0
    %2856 = vmatpush1.msra.mxu0 0.0
    %2857 = vmatprep.subr.mxu0 0.0
    %2858 = vmatpush1.msra.mxu0 0.0
    %2859 = vmatprep.subr.mxu0 0.0
    %2860 = vmatpush1.msra.mxu0 0.0
    %2861 = vmatprep.subr.mxu0 0.0
    %2862 = vmatpush1.msra.mxu0 0.0
    %2863 = vmatprep.subr.mxu0 0.0
    %2864 = vmatpush1.msra.mxu0 0.0
    %2865 = vmatprep.subr.mxu0 0.0
    %2866 = vmatpush1.msra.mxu0 0.0
    %2867 = vmatprep.subr.mxu0 0.0
    %2868 = vmatpush1.msra.mxu0 0.0
    %2869 = vmatprep.subr.mxu0 0.0
    %2870 = vmatpush1.msra.mxu0 0.0
    %2871 = vmatprep.subr.mxu0 0.0
    %2872 = vmatpush1.msra.mxu0 0.0
    %2873 = vmatprep.subr.mxu0 0.0
    %2874 = vmatpush1.msra.mxu0 0.0
    %2875 = vmatprep.subr.mxu0 0.0
    %2876 = vmatpush1.msra.mxu0 0.0
    %2877 = vmatprep.subr.mxu0 0.0
    %2878 = vmatpush1.msra.mxu0 0.0
    %2879 = vmatprep.subr.mxu0 0.0
    %2880 = vmatpush1.msra.mxu0 0.0
    %2881 = vmatprep.subr.mxu0 0.0
    %2882 = vmatpush1.msra.mxu0 0.0
    %2883 = vmatprep.subr.mxu0 0.0
    %2884 = vmatpush1.msra.mxu0 0.0
    %2885 = vmatprep.subr.mxu0 0.0
    %2886 = vmatpush1.msra.mxu0 0.0
    %2887 = vmatprep.subr.mxu0 0.0
    %2888 = vmatpush1.msra.mxu0 0.0
    %2889 = vmatprep.subr.mxu0 0.0
    %2890 = vmatpush1.msra.mxu0 0.0
    %2891 = vmatprep.subr.mxu0 0.0
    %2892 = vmatpush1.msra.mxu0 0.0
    %2893 = vmatprep.subr.mxu0 0.0
    %2894 = vmatpush1.msra.mxu0 0.0
    %2895 = vmatprep.subr.mxu0 0.0
    %2896 = vmatpush1.msra.mxu0 0.0
    %2897 = vmatprep.subr.mxu0 0.0
    %2898 = vmatpush1.msra.mxu0 0.0
    %2899 = vmatprep.subr.mxu0 0.0
    %2900 = vmatpush1.msra.mxu0 0.0
    %2901 = vmatprep.subr.mxu0 0.0
    %2902 = vmatpush1.msra.mxu0 0.0
    %2903 = vmatprep.mubr.f32.mxu0 0.0
    %2904 = vmatmul.mubr.f32.gmra.mrb[0].mxu0 %v2837
    %v2905 = vpop.f32.mrb[0].mxu0
    %v2906 = vadd.f32 %v222, %v2905
    %v2907 = vpop.f32.mrb[0].mxu0
    %v2908 = vadd.f32 %v226, %v2907
    %2909 = vdwg.mxu0
    %v2910 = vmax.f32 %v2906, 0.0
    %v2911 = vmax.f32 %v2908, 0.0
    %2912 = vmatprep.subr.mxu0 0.0
    %2913 = vmatpush1.msra.mxu0 %v171
    %2914 = vmatprep.subr.mxu0 0.0
    %2915 = vmatpush1.msra.mxu0 %v172
    %2916 = vmatprep.subr.mxu0 0.0
    %2917 = vmatpush1.msra.mxu0 %v173
    %2918 = vmatprep.subr.mxu0 0.0
    %2919 = vmatpush1.msra.mxu0 %v174
    %2920 = vmatprep.subr.mxu0 0.0
    %2921 = vmatpush1.msra.mxu0 %v175
    %2922 = vmatprep.subr.mxu0 0.0
    %2923 = vmatpush1.msra.mxu0 %v176
    %2924 = vmatprep.subr.mxu0 0.0
    %2925 = vmatpush1.msra.mxu0 %v177
    %2926 = vmatprep.subr.mxu0 0.0
    %2927 = vmatpush1.msra.mxu0 %v178
    %2928 = vmatprep.subr.mxu0 0.0
    %2929 = vmatpush1.msra.mxu0 %v179
    %2930 = vmatprep.subr.mxu0 0.0
    %2931 = vmatpush1.msra.mxu0 %v180
    %2932 = vmatprep.subr.mxu0 0.0
    %2933 = vmatpush1.msra.mxu0 %v181
    %2934 = vmatprep.subr.mxu0 0.0
    %2935 = vmatpush1.msra.mxu0 %v182
    %2936 = vmatprep.subr.mxu0 0.0
    %2937 = vmatpush1.msra.mxu0 %v183
    %2938 = vmatprep.subr.mxu0 0.0
    %2939 = vmatpush1.msra.mxu0 %v184
    %2940 = vmatprep.subr.mxu0 0.0
    %2941 = vmatpush1.msra.mxu0 %v185
    %2942 = vmatprep.subr.mxu0 0.0
    %2943 = vmatpush1.msra.mxu0 %v186
    %2944 = vmatprep.subr.mxu0 0.0
    %2945 = vmatpush1.msra.mxu0 %v187
    %2946 = vmatprep.subr.mxu0 0.0
    %2947 = vmatpush1.msra.mxu0 %v188
    %2948 = vmatprep.subr.mxu0 0.0
    %2949 = vmatpush1.msra.mxu0 %v189
    %2950 = vmatprep.subr.mxu0 0.0
    %2951 = vmatpush1.msra.mxu0 %v190
    %2952 = vmatprep.subr.mxu0 0.0
    %2953 = vmatpush1.msra.mxu0 %v191
    %2954 = vmatprep.subr.mxu0 0.0
    %2955 = vmatpush1.msra.mxu0 %v192
    %2956 = vmatprep.subr.mxu0 0.0
    %2957 = vmatpush1.msra.mxu0 %v193
    %2958 = vmatprep.subr.mxu0 0.0
    %2959 = vmatpush1.msra.mxu0 %v194
    %2960 = vmatprep.subr.mxu0 0.0
    %2961 = vmatpush1.msra.mxu0 %v195
    %2962 = vmatprep.subr.mxu0 0.0
    %2963 = vmatpush1.msra.mxu0 %v196
    %2964 = vmatprep.subr.mxu0 0.0
    %2965 = vmatpush1.msra.mxu0 %v197
    %2966 = vmatprep.subr.mxu0 0.0
    %2967 = vmatpush1.msra.mxu0 %v198
    %2968 = vmatprep.subr.mxu0 0.0
    %2969 = vmatpush1.msra.mxu0 %v199
    %2970 = vmatprep.subr.mxu0 0.0
    %2971 = vmatpush1.msra.mxu0 %v200
    %2972 = vmatprep.subr.mxu0 0.0
    %2973 = vmatpush1.msra.mxu0 %v201
    %2974 = vmatprep.subr.mxu0 0.0
    %2975 = vmatpush1.msra.mxu0 %v202
    %2976 = vmatprep.mubr.f32.mxu0 %v2911
    %2977 = vmatmul.mubr.f32.gmra.mrb[0].mxu0 %v2910
    %v2978 = vpop.f32.mrb[0].mxu0
    %v2979 = vadd.f32 %v234, %v2978
    %v2980 = vpop.f32.mrb[0].mxu0
    %2981 = vdwg.mxu0
    %v2982 = vmax.f32 %v2979, 0.0
    %s2983 = scalar_lea.vmem [#allocation20], 24
    %2984 = vst [vmem:[%s2983] sm:$0xff] %v2982
    %v2985 = vld [vmem:[%s2029] sm:$0xff]
    %v2987 = vsel %vm237, %v2985, 0
    %2989 = vmatprep.subr.mxu0 %v164
    %2990 = vmatpush1.msra.mxu0 %v163
    %2991 = vmatprep.subr.mxu0 %v166
    %2992 = vmatpush1.msra.mxu0 %v165
    %2993 = vmatprep.subr.mxu0 %v168
    %2994 = vmatpush1.msra.mxu0 %v167
    %2995 = vmatprep.subr.mxu0 %v170
    %2996 = vmatpush1.msra.mxu0 %v169
    %2997 = vmatprep.subr.mxu0 0.0
    %2998 = vmatpush1.msra.mxu0 0.0
    %2999 = vmatprep.subr.mxu0 0.0
    %3000 = vmatpush1.msra.mxu0 0.0
    %3001 = vmatprep.subr.mxu0 0.0
    %3002 = vmatpush1.msra.mxu0 0.0
    %3003 = vmatprep.subr.mxu0 0.0
    %3004 = vmatpush1.msra.mxu0 0.0
    %3005 = vmatprep.subr.mxu0 0.0
    %3006 = vmatpush1.msra.mxu0 0.0
    %3007 = vmatprep.subr.mxu0 0.0
    %3008 = vmatpush1.msra.mxu0 0.0
    %3009 = vmatprep.subr.mxu0 0.0
    %3010 = vmatpush1.msra.mxu0 0.0
    %3011 = vmatprep.subr.mxu0 0.0
    %3012 = vmatpush1.msra.mxu0 0.0
    %3013 = vmatprep.subr.mxu0 0.0
    %3014 = vmatpush1.msra.mxu0 0.0
    %3015 = vmatprep.subr.mxu0 0.0
    %3016 = vmatpush1.msra.mxu0 0.0
    %3017 = vmatprep.subr.mxu0 0.0
    %3018 = vmatpush1.msra.mxu0 0.0
    %3019 = vmatprep.subr.mxu0 0.0
    %3020 = vmatpush1.msra.mxu0 0.0
    %3021 = vmatprep.subr.mxu0 0.0
    %3022 = vmatpush1.msra.mxu0 0.0
    %3023 = vmatprep.subr.mxu0 0.0
    %3024 = vmatpush1.msra.mxu0 0.0
    %3025 = vmatprep.subr.mxu0 0.0
    %3026 = vmatpush1.msra.mxu0 0.0
    %3027 = vmatprep.subr.mxu0 0.0
    %3028 = vmatpush1.msra.mxu0 0.0
    %3029 = vmatprep.subr.mxu0 0.0
    %3030 = vmatpush1.msra.mxu0 0.0
    %3031 = vmatprep.subr.mxu0 0.0
    %3032 = vmatpush1.msra.mxu0 0.0
    %3033 = vmatprep.subr.mxu0 0.0
    %3034 = vmatpush1.msra.mxu0 0.0
    %3035 = vmatprep.subr.mxu0 0.0
    %3036 = vmatpush1.msra.mxu0 0.0
    %3037 = vmatprep.subr.mxu0 0.0
    %3038 = vmatpush1.msra.mxu0 0.0
    %3039 = vmatprep.subr.mxu0 0.0
    %3040 = vmatpush1.msra.mxu0 0.0
    %3041 = vmatprep.subr.mxu0 0.0
    %3042 = vmatpush1.msra.mxu0 0.0
    %3043 = vmatprep.subr.mxu0 0.0
    %3044 = vmatpush1.msra.mxu0 0.0
    %3045 = vmatprep.subr.mxu0 0.0
    %3046 = vmatpush1.msra.mxu0 0.0
    %3047 = vmatprep.subr.mxu0 0.0
    %3048 = vmatpush1.msra.mxu0 0.0
    %3049 = vmatprep.subr.mxu0 0.0
    %3050 = vmatpush1.msra.mxu0 0.0
    %3051 = vmatprep.subr.mxu0 0.0
    %3052 = vmatpush1.msra.mxu0 0.0
    %3053 = vmatprep.mubr.f32.mxu0 0.0
    %3054 = vmatmul.mubr.f32.gmra.mrb[0].mxu0 %v2987
    %v3055 = vpop.f32.mrb[0].mxu0
    %v3056 = vadd.f32 %v222, %v3055
    %v3057 = vpop.f32.mrb[0].mxu0
    %v3058 = vadd.f32 %v226, %v3057
    %3059 = vdwg.mxu0
    %v3060 = vmax.f32 %v3056, 0.0
    %v3061 = vmax.f32 %v3058, 0.0
    %3062 = vmatprep.subr.mxu0 0.0
    %3063 = vmatpush1.msra.mxu0 %v171
    %3064 = vmatprep.subr.mxu0 0.0
    %3065 = vmatpush1.msra.mxu0 %v172
    %3066 = vmatprep.subr.mxu0 0.0
    %3067 = vmatpush1.msra.mxu0 %v173
    %3068 = vmatprep.subr.mxu0 0.0
    %3069 = vmatpush1.msra.mxu0 %v174
    %3070 = vmatprep.subr.mxu0 0.0
    %3071 = vmatpush1.msra.mxu0 %v175
    %3072 = vmatprep.subr.mxu0 0.0
    %3073 = vmatpush1.msra.mxu0 %v176
    %3074 = vmatprep.subr.mxu0 0.0
    %3075 = vmatpush1.msra.mxu0 %v177
    %3076 = vmatprep.subr.mxu0 0.0
    %3077 = vmatpush1.msra.mxu0 %v178
    %3078 = vmatprep.subr.mxu0 0.0
    %3079 = vmatpush1.msra.mxu0 %v179
    %3080 = vmatprep.subr.mxu0 0.0
    %3081 = vmatpush1.msra.mxu0 %v180
    %3082 = vmatprep.subr.mxu0 0.0
    %3083 = vmatpush1.msra.mxu0 %v181
    %3084 = vmatprep.subr.mxu0 0.0
    %3085 = vmatpush1.msra.mxu0 %v182
    %3086 = vmatprep.subr.mxu0 0.0
    %3087 = vmatpush1.msra.mxu0 %v183
    %3088 = vmatprep.subr.mxu0 0.0
    %3089 = vmatpush1.msra.mxu0 %v184
    %3090 = vmatprep.subr.mxu0 0.0
    %3091 = vmatpush1.msra.mxu0 %v185
    %3092 = vmatprep.subr.mxu0 0.0
    %3093 = vmatpush1.msra.mxu0 %v186
    %3094 = vmatprep.subr.mxu0 0.0
    %3095 = vmatpush1.msra.mxu0 %v187
    %3096 = vmatprep.subr.mxu0 0.0
    %3097 = vmatpush1.msra.mxu0 %v188
    %3098 = vmatprep.subr.mxu0 0.0
    %3099 = vmatpush1.msra.mxu0 %v189
    %3100 = vmatprep.subr.mxu0 0.0
    %3101 = vmatpush1.msra.mxu0 %v190
    %3102 = vmatprep.subr.mxu0 0.0
    %3103 = vmatpush1.msra.mxu0 %v191
    %3104 = vmatprep.subr.mxu0 0.0
    %3105 = vmatpush1.msra.mxu0 %v192
    %3106 = vmatprep.subr.mxu0 0.0
    %3107 = vmatpush1.msra.mxu0 %v193
    %3108 = vmatprep.subr.mxu0 0.0
    %3109 = vmatpush1.msra.mxu0 %v194
    %3110 = vmatprep.subr.mxu0 0.0
    %3111 = vmatpush1.msra.mxu0 %v195
    %3112 = vmatprep.subr.mxu0 0.0
    %3113 = vmatpush1.msra.mxu0 %v196
    %3114 = vmatprep.subr.mxu0 0.0
    %3115 = vmatpush1.msra.mxu0 %v197
    %3116 = vmatprep.subr.mxu0 0.0
    %3117 = vmatpush1.msra.mxu0 %v198
    %3118 = vmatprep.subr.mxu0 0.0
    %3119 = vmatpush1.msra.mxu0 %v199
    %3120 = vmatprep.subr.mxu0 0.0
    %3121 = vmatpush1.msra.mxu0 %v200
    %3122 = vmatprep.subr.mxu0 0.0
    %3123 = vmatpush1.msra.mxu0 %v201
    %3124 = vmatprep.subr.mxu0 0.0
    %3125 = vmatpush1.msra.mxu0 %v202
    %3126 = vmatprep.mubr.f32.mxu0 %v3061
    %3127 = vmatmul.mubr.f32.gmra.mrb[0].mxu0 %v3060
    %v3128 = vpop.f32.mrb[0].mxu0
    %v3129 = vadd.f32 %v234, %v3128
    %v3130 = vpop.f32.mrb[0].mxu0
    %3131 = vdwg.mxu0
    %v3132 = vmax.f32 %v3129, 0.0
    %s3133 = scalar_lea.vmem [#allocation20], 32
    %3134 = vst [vmem:[%s3133] sm:$0xff] %v3132
    %v3135 = vld [vmem:[%s2146] sm:$0xff]
    %v3137 = vsel %vm237, %v3135, 0
    %3139 = vmatprep.subr.mxu0 %v164
    %3140 = vmatpush1.msra.mxu0 %v163
    %3141 = vmatprep.subr.mxu0 %v166
    %3142 = vmatpush1.msra.mxu0 %v165
    %3143 = vmatprep.subr.mxu0 %v168
    %3144 = vmatpush1.msra.mxu0 %v167
    %3145 = vmatprep.subr.mxu0 %v170
    %3146 = vmatpush1.msra.mxu0 %v169
    %3147 = vmatprep.subr.mxu0 0.0
    %3148 = vmatpush1.msra.mxu0 0.0
    %3149 = vmatprep.subr.mxu0 0.0
    %3150 = vmatpush1.msra.mxu0 0.0
    %3151 = vmatprep.subr.mxu0 0.0
    %3152 = vmatpush1.msra.mxu0 0.0
    %3153 = vmatprep.subr.mxu0 0.0
    %3154 = vmatpush1.msra.mxu0 0.0
    %3155 = vmatprep.subr.mxu0 0.0
    %3156 = vmatpush1.msra.mxu0 0.0
    %3157 = vmatprep.subr.mxu0 0.0
    %3158 = vmatpush1.msra.mxu0 0.0
    %3159 = vmatprep.subr.mxu0 0.0
    %3160 = vmatpush1.msra.mxu0 0.0
    %3161 = vmatprep.subr.mxu0 0.0
    %3162 = vmatpush1.msra.mxu0 0.0
    %3163 = vmatprep.subr.mxu0 0.0
    %3164 = vmatpush1.msra.mxu0 0.0
    %3165 = vmatprep.subr.mxu0 0.0
    %3166 = vmatpush1.msra.mxu0 0.0
    %3167 = vmatprep.subr.mxu0 0.0
    %3168 = vmatpush1.msra.mxu0 0.0
    %3169 = vmatprep.subr.mxu0 0.0
    %3170 = vmatpush1.msra.mxu0 0.0
    %3171 = vmatprep.subr.mxu0 0.0
    %3172 = vmatpush1.msra.mxu0 0.0
    %3173 = vmatprep.subr.mxu0 0.0
    %3174 = vmatpush1.msra.mxu0 0.0
    %3175 = vmatprep.subr.mxu0 0.0
    %3176 = vmatpush1.msra.mxu0 0.0
    %3177 = vmatprep.subr.mxu0 0.0
    %3178 = vmatpush1.msra.mxu0 0.0
    %3179 = vmatprep.subr.mxu0 0.0
    %3180 = vmatpush1.msra.mxu0 0.0
    %3181 = vmatprep.subr.mxu0 0.0
    %3182 = vmatpush1.msra.mxu0 0.0
    %3183 = vmatprep.subr.mxu0 0.0
    %3184 = vmatpush1.msra.mxu0 0.0
    %3185 = vmatprep.subr.mxu0 0.0
    %3186 = vmatpush1.msra.mxu0 0.0
    %3187 = vmatprep.subr.mxu0 0.0
    %3188 = vmatpush1.msra.mxu0 0.0
    %3189 = vmatprep.subr.mxu0 0.0
    %3190 = vmatpush1.msra.mxu0 0.0
    %3191 = vmatprep.subr.mxu0 0.0
    %3192 = vmatpush1.msra.mxu0 0.0
    %3193 = vmatprep.subr.mxu0 0.0
    %3194 = vmatpush1.msra.mxu0 0.0
    %3195 = vmatprep.subr.mxu0 0.0
    %3196 = vmatpush1.msra.mxu0 0.0
    %3197 = vmatprep.subr.mxu0 0.0
    %3198 = vmatpush1.msra.mxu0 0.0
    %3199 = vmatprep.subr.mxu0 0.0
    %3200 = vmatpush1.msra.mxu0 0.0
    %3201 = vmatprep.subr.mxu0 0.0
    %3202 = vmatpush1.msra.mxu0 0.0
    %3203 = vmatprep.mubr.f32.mxu0 0.0
    %3204 = vmatmul.mubr.f32.gmra.mrb[0].mxu0 %v3137
    %v3205 = vpop.f32.mrb[0].mxu0
    %v3206 = vadd.f32 %v222, %v3205
    %v3207 = vpop.f32.mrb[0].mxu0
    %v3208 = vadd.f32 %v226, %v3207
    %3209 = vdwg.mxu0
    %v3210 = vmax.f32 %v3206, 0.0
    %v3211 = vmax.f32 %v3208, 0.0
    %3212 = vmatprep.subr.mxu0 0.0
    %3213 = vmatpush1.msra.mxu0 %v171
    %3214 = vmatprep.subr.mxu0 0.0
    %3215 = vmatpush1.msra.mxu0 %v172
    %3216 = vmatprep.subr.mxu0 0.0
    %3217 = vmatpush1.msra.mxu0 %v173
    %3218 = vmatprep.subr.mxu0 0.0
    %3219 = vmatpush1.msra.mxu0 %v174
    %3220 = vmatprep.subr.mxu0 0.0
    %3221 = vmatpush1.msra.mxu0 %v175
    %3222 = vmatprep.subr.mxu0 0.0
    %3223 = vmatpush1.msra.mxu0 %v176
    %3224 = vmatprep.subr.mxu0 0.0
    %3225 = vmatpush1.msra.mxu0 %v177
    %3226 = vmatprep.subr.mxu0 0.0
    %3227 = vmatpush1.msra.mxu0 %v178
    %3228 = vmatprep.subr.mxu0 0.0
    %3229 = vmatpush1.msra.mxu0 %v179
    %3230 = vmatprep.subr.mxu0 0.0
    %3231 = vmatpush1.msra.mxu0 %v180
    %3232 = vmatprep.subr.mxu0 0.0
    %3233 = vmatpush1.msra.mxu0 %v181
    %3234 = vmatprep.subr.mxu0 0.0
    %3235 = vmatpush1.msra.mxu0 %v182
    %3236 = vmatprep.subr.mxu0 0.0
    %3237 = vmatpush1.msra.mxu0 %v183
    %3238 = vmatprep.subr.mxu0 0.0
    %3239 = vmatpush1.msra.mxu0 %v184
    %3240 = vmatprep.subr.mxu0 0.0
    %3241 = vmatpush1.msra.mxu0 %v185
    %3242 = vmatprep.subr.mxu0 0.0
    %3243 = vmatpush1.msra.mxu0 %v186
    %3244 = vmatprep.subr.mxu0 0.0
    %3245 = vmatpush1.msra.mxu0 %v187
    %3246 = vmatprep.subr.mxu0 0.0
    %3247 = vmatpush1.msra.mxu0 %v188
    %3248 = vmatprep.subr.mxu0 0.0
    %3249 = vmatpush1.msra.mxu0 %v189
    %3250 = vmatprep.subr.mxu0 0.0
    %3251 = vmatpush1.msra.mxu0 %v190
    %3252 = vmatprep.subr.mxu0 0.0
    %3253 = vmatpush1.msra.mxu0 %v191
    %3254 = vmatprep.subr.mxu0 0.0
    %3255 = vmatpush1.msra.mxu0 %v192
    %3256 = vmatprep.subr.mxu0 0.0
    %3257 = vmatpush1.msra.mxu0 %v193
    %3258 = vmatprep.subr.mxu0 0.0
    %3259 = vmatpush1.msra.mxu0 %v194
    %3260 = vmatprep.subr.mxu0 0.0
    %3261 = vmatpush1.msra.mxu0 %v195
    %3262 = vmatprep.subr.mxu0 0.0
    %3263 = vmatpush1.msra.mxu0 %v196
    %3264 = vmatprep.subr.mxu0 0.0
    %3265 = vmatpush1.msra.mxu0 %v197
    %3266 = vmatprep.subr.mxu0 0.0
    %3267 = vmatpush1.msra.mxu0 %v198
    %3268 = vmatprep.subr.mxu0 0.0
    %3269 = vmatpush1.msra.mxu0 %v199
    %3270 = vmatprep.subr.mxu0 0.0
    %3271 = vmatpush1.msra.mxu0 %v200
    %3272 = vmatprep.subr.mxu0 0.0
    %3273 = vmatpush1.msra.mxu0 %v201
    %3274 = vmatprep.subr.mxu0 0.0
    %3275 = vmatpush1.msra.mxu0 %v202
    %3276 = vmatprep.mubr.f32.mxu0 %v3211
    %3277 = vmatmul.mubr.f32.gmra.mrb[0].mxu0 %v3210
    %v3278 = vpop.f32.mrb[0].mxu0
    %v3279 = vadd.f32 %v234, %v3278
    %v3280 = vpop.f32.mrb[0].mxu0
    %3281 = vdwg.mxu0
    %v3282 = vmax.f32 %v3279, 0.0
    %s3283 = scalar_lea.vmem [#allocation20], 40
    %3284 = vst [vmem:[%s3283] sm:$0xff] %v3282
    %v3285 = vld [vmem:[%s2263] sm:$0xff]
    %v3287 = vsel %vm237, %v3285, 0
    %3289 = vmatprep.subr.mxu0 %v164
    %3290 = vmatpush1.msra.mxu0 %v163
    %3291 = vmatprep.subr.mxu0 %v166
    %3292 = vmatpush1.msra.mxu0 %v165
    %3293 = vmatprep.subr.mxu0 %v168
    %3294 = vmatpush1.msra.mxu0 %v167
    %3295 = vmatprep.subr.mxu0 %v170
    %3296 = vmatpush1.msra.mxu0 %v169
    %3297 = vmatprep.subr.mxu0 0.0
    %3298 = vmatpush1.msra.mxu0 0.0
    %3299 = vmatprep.subr.mxu0 0.0
    %3300 = vmatpush1.msra.mxu0 0.0
    %3301 = vmatprep.subr.mxu0 0.0
    %3302 = vmatpush1.msra.mxu0 0.0
    %3303 = vmatprep.subr.mxu0 0.0
    %3304 = vmatpush1.msra.mxu0 0.0
    %3305 = vmatprep.subr.mxu0 0.0
    %3306 = vmatpush1.msra.mxu0 0.0
    %3307 = vmatprep.subr.mxu0 0.0
    %3308 = vmatpush1.msra.mxu0 0.0
    %3309 = vmatprep.subr.mxu0 0.0
    %3310 = vmatpush1.msra.mxu0 0.0
    %3311 = vmatprep.subr.mxu0 0.0
    %3312 = vmatpush1.msra.mxu0 0.0
    %3313 = vmatprep.subr.mxu0 0.0
    %3314 = vmatpush1.msra.mxu0 0.0
    %3315 = vmatprep.subr.mxu0 0.0
    %3316 = vmatpush1.msra.mxu0 0.0
    %3317 = vmatprep.subr.mxu0 0.0
    %3318 = vmatpush1.msra.mxu0 0.0
    %3319 = vmatprep.subr.mxu0 0.0
    %3320 = vmatpush1.msra.mxu0 0.0
    %3321 = vmatprep.subr.mxu0 0.0
    %3322 = vmatpush1.msra.mxu0 0.0
    %3323 = vmatprep.subr.mxu0 0.0
    %3324 = vmatpush1.msra.mxu0 0.0
    %3325 = vmatprep.subr.mxu0 0.0
    %3326 = vmatpush1.msra.mxu0 0.0
    %3327 = vmatprep.subr.mxu0 0.0
    %3328 = vmatpush1.msra.mxu0 0.0
    %3329 = vmatprep.subr.mxu0 0.0
    %3330 = vmatpush1.msra.mxu0 0.0
    %3331 = vmatprep.subr.mxu0 0.0
    %3332 = vmatpush1.msra.mxu0 0.0
    %3333 = vmatprep.subr.mxu0 0.0
    %3334 = vmatpush1.msra.mxu0 0.0
    %3335 = vmatprep.subr.mxu0 0.0
    %3336 = vmatpush1.msra.mxu0 0.0
    %3337 = vmatprep.subr.mxu0 0.0
    %3338 = vmatpush1.msra.mxu0 0.0
    %3339 = vmatprep.subr.mxu0 0.0
    %3340 = vmatpush1.msra.mxu0 0.0
    %3341 = vmatprep.subr.mxu0 0.0
    %3342 = vmatpush1.msra.mxu0 0.0
    %3343 = vmatprep.subr.mxu0 0.0
    %3344 = vmatpush1.msra.mxu0 0.0
    %3345 = vmatprep.subr.mxu0 0.0
    %3346 = vmatpush1.msra.mxu0 0.0
    %3347 = vmatprep.subr.mxu0 0.0
    %3348 = vmatpush1.msra.mxu0 0.0
    %3349 = vmatprep.subr.mxu0 0.0
    %3350 = vmatpush1.msra.mxu0 0.0
    %3351 = vmatprep.subr.mxu0 0.0
    %3352 = vmatpush1.msra.mxu0 0.0
    %3353 = vmatprep.mubr.f32.mxu0 0.0
    %3354 = vmatmul.mubr.f32.gmra.mrb[0].mxu0 %v3287
    %v3355 = vpop.f32.mrb[0].mxu0
    %v3356 = vadd.f32 %v222, %v3355
    %v3357 = vpop.f32.mrb[0].mxu0
    %v3358 = vadd.f32 %v226, %v3357
    %3359 = vdwg.mxu0
    %v3360 = vmax.f32 %v3356, 0.0
    %v3361 = vmax.f32 %v3358, 0.0
    %3362 = vmatprep.subr.mxu0 0.0
    %3363 = vmatpush1.msra.mxu0 %v171
    %3364 = vmatprep.subr.mxu0 0.0
    %3365 = vmatpush1.msra.mxu0 %v172
    %3366 = vmatprep.subr.mxu0 0.0
    %3367 = vmatpush1.msra.mxu0 %v173
    %3368 = vmatprep.subr.mxu0 0.0
    %3369 = vmatpush1.msra.mxu0 %v174
    %3370 = vmatprep.subr.mxu0 0.0
    %3371 = vmatpush1.msra.mxu0 %v175
    %3372 = vmatprep.subr.mxu0 0.0
    %3373 = vmatpush1.msra.mxu0 %v176
    %3374 = vmatprep.subr.mxu0 0.0
    %3375 = vmatpush1.msra.mxu0 %v177
    %3376 = vmatprep.subr.mxu0 0.0
    %3377 = vmatpush1.msra.mxu0 %v178
    %3378 = vmatprep.subr.mxu0 0.0
    %3379 = vmatpush1.msra.mxu0 %v179
    %3380 = vmatprep.subr.mxu0 0.0
    %3381 = vmatpush1.msra.mxu0 %v180
    %3382 = vmatprep.subr.mxu0 0.0
    %3383 = vmatpush1.msra.mxu0 %v181
    %3384 = vmatprep.subr.mxu0 0.0
    %3385 = vmatpush1.msra.mxu0 %v182
    %3386 = vmatprep.subr.mxu0 0.0
    %3387 = vmatpush1.msra.mxu0 %v183
    %3388 = vmatprep.subr.mxu0 0.0
    %3389 = vmatpush1.msra.mxu0 %v184
    %3390 = vmatprep.subr.mxu0 0.0
    %3391 = vmatpush1.msra.mxu0 %v185
    %3392 = vmatprep.subr.mxu0 0.0
    %3393 = vmatpush1.msra.mxu0 %v186
    %3394 = vmatprep.subr.mxu0 0.0
    %3395 = vmatpush1.msra.mxu0 %v187
    %3396 = vmatprep.subr.mxu0 0.0
    %3397 = vmatpush1.msra.mxu0 %v188
    %3398 = vmatprep.subr.mxu0 0.0
    %3399 = vmatpush1.msra.mxu0 %v189
    %3400 = vmatprep.subr.mxu0 0.0
    %3401 = vmatpush1.msra.mxu0 %v190
    %3402 = vmatprep.subr.mxu0 0.0
    %3403 = vmatpush1.msra.mxu0 %v191
    %3404 = vmatprep.subr.mxu0 0.0
    %3405 = vmatpush1.msra.mxu0 %v192
    %3406 = vmatprep.subr.mxu0 0.0
    %3407 = vmatpush1.msra.mxu0 %v193
    %3408 = vmatprep.subr.mxu0 0.0
    %3409 = vmatpush1.msra.mxu0 %v194
    %3410 = vmatprep.subr.mxu0 0.0
    %3411 = vmatpush1.msra.mxu0 %v195
    %3412 = vmatprep.subr.mxu0 0.0
    %3413 = vmatpush1.msra.mxu0 %v196
    %3414 = vmatprep.subr.mxu0 0.0
    %3415 = vmatpush1.msra.mxu0 %v197
    %3416 = vmatprep.subr.mxu0 0.0
    %3417 = vmatpush1.msra.mxu0 %v198
    %3418 = vmatprep.subr.mxu0 0.0
    %3419 = vmatpush1.msra.mxu0 %v199
    %3420 = vmatprep.subr.mxu0 0.0
    %3421 = vmatpush1.msra.mxu0 %v200
    %3422 = vmatprep.subr.mxu0 0.0
    %3423 = vmatpush1.msra.mxu0 %v201
    %3424 = vmatprep.subr.mxu0 0.0
    %3425 = vmatpush1.msra.mxu0 %v202
    %3426 = vmatprep.mubr.f32.mxu0 %v3361
    %3427 = vmatmul.mubr.f32.gmra.mrb[0].mxu0 %v3360
    %v3428 = vpop.f32.mrb[0].mxu0
    %v3429 = vadd.f32 %v234, %v3428
    %v3430 = vpop.f32.mrb[0].mxu0
    %3431 = vdwg.mxu0
    %v3432 = vmax.f32 %v3429, 0.0
    %s3433 = scalar_lea.vmem [#allocation20], 48
    %3434 = vst [vmem:[%s3433] sm:$0xff] %v3432
    %v3435 = vld [vmem:[%s2380] sm:$0xff]
    %v3437 = vsel %vm237, %v3435, 0
    %3439 = vmatprep.subr.mxu0 %v164
    %3440 = vmatpush1.msra.mxu0 %v163
    %3441 = vmatprep.subr.mxu0 %v166
    %3442 = vmatpush1.msra.mxu0 %v165
    %3443 = vmatprep.subr.mxu0 %v168
    %3444 = vmatpush1.msra.mxu0 %v167
    %3445 = vmatprep.subr.mxu0 %v170
    %3446 = vmatpush1.msra.mxu0 %v169
    %3447 = vmatprep.subr.mxu0 0.0
    %3448 = vmatpush1.msra.mxu0 0.0
    %3449 = vmatprep.subr.mxu0 0.0
    %3450 = vmatpush1.msra.mxu0 0.0
    %3451 = vmatprep.subr.mxu0 0.0
    %3452 = vmatpush1.msra.mxu0 0.0
    %3453 = vmatprep.subr.mxu0 0.0
    %3454 = vmatpush1.msra.mxu0 0.0
    %3455 = vmatprep.subr.mxu0 0.0
    %3456 = vmatpush1.msra.mxu0 0.0
    %3457 = vmatprep.subr.mxu0 0.0
    %3458 = vmatpush1.msra.mxu0 0.0
    %3459 = vmatprep.subr.mxu0 0.0
    %3460 = vmatpush1.msra.mxu0 0.0
    %3461 = vmatprep.subr.mxu0 0.0
    %3462 = vmatpush1.msra.mxu0 0.0
    %3463 = vmatprep.subr.mxu0 0.0
    %3464 = vmatpush1.msra.mxu0 0.0
    %3465 = vmatprep.subr.mxu0 0.0
    %3466 = vmatpush1.msra.mxu0 0.0
    %3467 = vmatprep.subr.mxu0 0.0
    %3468 = vmatpush1.msra.mxu0 0.0
    %3469 = vmatprep.subr.mxu0 0.0
    %3470 = vmatpush1.msra.mxu0 0.0
    %3471 = vmatprep.subr.mxu0 0.0
    %3472 = vmatpush1.msra.mxu0 0.0
    %3473 = vmatprep.subr.mxu0 0.0
    %3474 = vmatpush1.msra.mxu0 0.0
    %3475 = vmatprep.subr.mxu0 0.0
    %3476 = vmatpush1.msra.mxu0 0.0
    %3477 = vmatprep.subr.mxu0 0.0
    %3478 = vmatpush1.msra.mxu0 0.0
    %3479 = vmatprep.subr.mxu0 0.0
    %3480 = vmatpush1.msra.mxu0 0.0
    %3481 = vmatprep.subr.mxu0 0.0
    %3482 = vmatpush1.msra.mxu0 0.0
    %3483 = vmatprep.subr.mxu0 0.0
    %3484 = vmatpush1.msra.mxu0 0.0
    %3485 = vmatprep.subr.mxu0 0.0
    %3486 = vmatpush1.msra.mxu0 0.0
    %3487 = vmatprep.subr.mxu0 0.0
    %3488 = vmatpush1.msra.mxu0 0.0
    %3489 = vmatprep.subr.mxu0 0.0
    %3490 = vmatpush1.msra.mxu0 0.0
    %3491 = vmatprep.subr.mxu0 0.0
    %3492 = vmatpush1.msra.mxu0 0.0
    %3493 = vmatprep.subr.mxu0 0.0
    %3494 = vmatpush1.msra.mxu0 0.0
    %3495 = vmatprep.subr.mxu0 0.0
    %3496 = vmatpush1.msra.mxu0 0.0
    %3497 = vmatprep.subr.mxu0 0.0
    %3498 = vmatpush1.msra.mxu0 0.0
    %3499 = vmatprep.subr.mxu0 0.0
    %3500 = vmatpush1.msra.mxu0 0.0
    %3501 = vmatprep.subr.mxu0 0.0
    %3502 = vmatpush1.msra.mxu0 0.0
    %3503 = vmatprep.mubr.f32.mxu0 0.0
    %3504 = vmatmul.mubr.f32.gmra.mrb[0].mxu0 %v3437
    %v3505 = vpop.f32.mrb[0].mxu0
    %v3506 = vadd.f32 %v222, %v3505
    %v3507 = vpop.f32.mrb[0].mxu0
    %v3508 = vadd.f32 %v226, %v3507
    %3509 = vdwg.mxu0
    %v3510 = vmax.f32 %v3506, 0.0
    %v3511 = vmax.f32 %v3508, 0.0
    %3512 = vmatprep.subr.mxu0 0.0
    %3513 = vmatpush1.msra.mxu0 %v171
    %3514 = vmatprep.subr.mxu0 0.0
    %3515 = vmatpush1.msra.mxu0 %v172
    %3516 = vmatprep.subr.mxu0 0.0
    %3517 = vmatpush1.msra.mxu0 %v173
    %3518 = vmatprep.subr.mxu0 0.0
    %3519 = vmatpush1.msra.mxu0 %v174
    %3520 = vmatprep.subr.mxu0 0.0
    %3521 = vmatpush1.msra.mxu0 %v175
    %3522 = vmatprep.subr.mxu0 0.0
    %3523 = vmatpush1.msra.mxu0 %v176
    %3524 = vmatprep.subr.mxu0 0.0
    %3525 = vmatpush1.msra.mxu0 %v177
    %3526 = vmatprep.subr.mxu0 0.0
    %3527 = vmatpush1.msra.mxu0 %v178
    %3528 = vmatprep.subr.mxu0 0.0
    %3529 = vmatpush1.msra.mxu0 %v179
    %3530 = vmatprep.subr.mxu0 0.0
    %3531 = vmatpush1.msra.mxu0 %v180
    %3532 = vmatprep.subr.mxu0 0.0
    %3533 = vmatpush1.msra.mxu0 %v181
    %3534 = vmatprep.subr.mxu0 0.0
    %3535 = vmatpush1.msra.mxu0 %v182
    %3536 = vmatprep.subr.mxu0 0.0
    %3537 = vmatpush1.msra.mxu0 %v183
    %3538 = vmatprep.subr.mxu0 0.0
    %3539 = vmatpush1.msra.mxu0 %v184
    %3540 = vmatprep.subr.mxu0 0.0
    %3541 = vmatpush1.msra.mxu0 %v185
    %3542 = vmatprep.subr.mxu0 0.0
    %3543 = vmatpush1.msra.mxu0 %v186
    %3544 = vmatprep.subr.mxu0 0.0
    %3545 = vmatpush1.msra.mxu0 %v187
    %3546 = vmatprep.subr.mxu0 0.0
    %3547 = vmatpush1.msra.mxu0 %v188
    %3548 = vmatprep.subr.mxu0 0.0
    %3549 = vmatpush1.msra.mxu0 %v189
    %3550 = vmatprep.subr.mxu0 0.0
    %3551 = vmatpush1.msra.mxu0 %v190
    %3552 = vmatprep.subr.mxu0 0.0
    %3553 = vmatpush1.msra.mxu0 %v191
    %3554 = vmatprep.subr.mxu0 0.0
    %3555 = vmatpush1.msra.mxu0 %v192
    %3556 = vmatprep.subr.mxu0 0.0
    %3557 = vmatpush1.msra.mxu0 %v193
    %3558 = vmatprep.subr.mxu0 0.0
    %3559 = vmatpush1.msra.mxu0 %v194
    %3560 = vmatprep.subr.mxu0 0.0
    %3561 = vmatpush1.msra.mxu0 %v195
    %3562 = vmatprep.subr.mxu0 0.0
    %3563 = vmatpush1.msra.mxu0 %v196
    %3564 = vmatprep.subr.mxu0 0.0
    %3565 = vmatpush1.msra.mxu0 %v197
    %3566 = vmatprep.subr.mxu0 0.0
    %3567 = vmatpush1.msra.mxu0 %v198
    %3568 = vmatprep.subr.mxu0 0.0
    %3569 = vmatpush1.msra.mxu0 %v199
    %3570 = vmatprep.subr.mxu0 0.0
    %3571 = vmatpush1.msra.mxu0 %v200
    %3572 = vmatprep.subr.mxu0 0.0
    %3573 = vmatpush1.msra.mxu0 %v201
    %3574 = vmatprep.subr.mxu0 0.0
    %3575 = vmatpush1.msra.mxu0 %v202
    %3576 = vmatprep.mubr.f32.mxu0 %v3511
    %3577 = vmatmul.mubr.f32.gmra.mrb[0].mxu0 %v3510
    %v3578 = vpop.f32.mrb[0].mxu0
    %v3579 = vadd.f32 %v234, %v3578
    %v3580 = vpop.f32.mrb[0].mxu0
    %3581 = vdwg.mxu0
    %v3582 = vmax.f32 %v3579, 0.0
    %s3583 = scalar_lea.vmem [#allocation20], 56
    %3584 = vst [vmem:[%s3583] sm:$0xff] %v3582
    // Predicated region
    $region82: #{tpu_custom_call.1} parent=1 // pred_check
      _
    $region83: #{tpu_custom_call.1} parent=1 // pred_check_branch
      %3586 = sbr.rel (0) target = $region85
    $region84: #{tpu_custom_call.1} parent=1 // pred_region
      %s3588 = ssub.s32 1024, 1024
      %3589 = vsyncadd [#allocation8], %s3588
      %s3590 = sshll.u32 [#allocation20], 4
      %s3591 = int_to_ptr.vmem [resolvable:$true] %s3590
      %3596 = dma.vmem_to_hbm [thread:$0]  %s3591, 1024, %s12, [#allocation8], 128, 128, 8
    $region85: #{tpu_custom_call.1} parent=1 // pred_fallthru
      _
    // Predicated region
    $region86: #{tpu_custom_call.1} parent=1 // pred_check
      _
    $region87: #{tpu_custom_call.1} parent=1 // pred_check_branch
      %3598 = sbr.rel (0) target = $region89
    $region88: #{tpu_custom_call.1} parent=1 // pred_region
      %s3600 = ssub.s32 128, 128
      %3601 = vsyncadd [#allocation22], %s3600
      %s3603 = sshll.u32 [#allocation21], 4
      %s3604 = int_to_ptr.vmem [resolvable:$true] %s3603
      %3606 = dma.vmem_to_hbm [thread:$0]  %s3604, 128, %s13, [#allocation22]
    $region89: #{tpu_custom_call.1} parent=1 // pred_fallthru
      _
    // Predicated region
    $region90: #{tpu_custom_call.1} parent=1 // pred_check
      _
    $region91: #{tpu_custom_call.1} parent=1 // pred_check_branch
      %3608 = sbr.rel (0) target = $region93
    $region92: #{tpu_custom_call.1} parent=1 // pred_region
      %s3610 = ssub.s32 128, 128
      %3611 = vsyncadd [#allocation22], %s3610
      %s3613 = sshll.u32 [#allocation23], 4
      %s3614 = int_to_ptr.vmem [resolvable:$true] %s3613
      %3616 = dma.vmem_to_hbm [thread:$0]  %s3614, 128, %s14, [#allocation22]
    $region93: #{tpu_custom_call.1} parent=1 // pred_fallthru
      _
    // Predicated region
    $region94: #{tpu_custom_call.1} parent=1 // pred_check
      _
    $region95: #{tpu_custom_call.1} parent=1 // pred_check_branch
      %3618 = sbr.rel (0) target = $region97
    $region96: #{tpu_custom_call.1} parent=1 // pred_region
      %3619 = dma.done [#allocation8], 1024
    $region97: #{tpu_custom_call.1} parent=1 // pred_fallthru
      _
    // Predicated region
    $region98: #{tpu_custom_call.1} parent=1 // pred_check
      _
    $region99: #{tpu_custom_call.1} parent=1 // pred_check_branch
      %3621 = sbr.rel (0) target = $region101
    $region100: #{tpu_custom_call.1} parent=1 // pred_region
      %3622 = dma.done [#allocation22], 128
    $region101: #{tpu_custom_call.1} parent=1 // pred_fallthru
      _
    // Predicated region
    $region102: #{tpu_custom_call.1} parent=1 // pred_check
      _
    $region103: #{tpu_custom_call.1} parent=1 // pred_check_branch
      %3624 = sbr.rel (0) target = $region105
    $region104: #{tpu_custom_call.1} parent=1 // pred_region
      %3625 = dma.done [#allocation22], 128
    $region105: #{tpu_custom_call.1} parent=1 // pred_fallthru
      _
    %3626 = vsyncpa [#allocation7], 1
    %3627 = vsyncpa [#allocation10], 1
    %3628 = vsyncpa [#allocation13], 1
    %3629 = vsyncpa [#allocation16], 1
    %3630 = vsyncpa [#allocation19], 1
    %3631 = vsyncpa [#allocation8], 1
    %3632 = vsyncpa [#allocation22], 1

</llo_original>
